<compile_context>
chip_gen: v5e
topology: v5e:2x2
jax: 0.10.0
libtpu: 0.0.40
codegen_flags: <defaults>
</compile_context>

<pallas_src>
import jax
import jax.numpy as jnp
from jax import lax
from jax.experimental import pallas as pl
from jax.experimental.pallas import tpu as pltpu


# --------------------------------------------------------------------------
# small helpers
# --------------------------------------------------------------------------

def _round_up(x, m):
    return ((x + m - 1) // m) * m


def _pick_block_b(B, max_blk=8):
    """Batch-block size: amortize per-grid-step overhead but keep >= 2 grid
    steps when possible (v7x: 2 TensorCores), and divide B exactly."""
    blk = min(max_blk, B)
    if B >= 2:
        blk = min(blk, max(1, B // 2))
    while B % blk:
        blk -= 1
    return blk


# --------------------------------------------------------------------------
# Pallas kernels
# --------------------------------------------------------------------------

def conv_relu_pool_kernel(p_ref, w_ref, b_ref, o_ref):
    """Fused 3x3 same-conv (single MXU matmul for the whole batch block; the
    9 taps are folded into K) + bias + ReLU + 2x2/stride-2 max-pool.

    p_ref: (bb*4*P_pad, K)  bf16 im2col patches, quadrant-major per image;
                            each quadrant is zero-padded to P_pad (mult of 8)
                            rows so all pool slices below are sublane-aligned
    w_ref: (K, Cout)        bf16 folded conv weight (K = round_up(9*Cin, 8))
    b_ref: (1, Cout)        f32 bias
    o_ref: (bb, P, Cout)    bf16 pooled activations
    """
    bb, P, _ = o_ref.shape
    Mi = p_ref.shape[0] // bb          # 4 * P_pad rows per image
    Pp = Mi // 4                       # P_pad (multiple of 8)

    z = jnp.dot(p_ref[...], w_ref[...], preferred_element_type=jnp.float32)
    z = jnp.maximum(z + b_ref[...], 0.0)

    for i in range(bb):                # static unroll over the batch block
        base = i * Mi                  # all offsets are multiples of 8
        q0 = z[base + 0 * Pp: base + 0 * Pp + P]
        q1 = z[base + 1 * Pp: base + 1 * Pp + P]
        q2 = z[base + 2 * Pp: base + 2 * Pp + P]
        q3 = z[base + 3 * Pp: base + 3 * Pp + P]
        o_ref[i] = jnp.maximum(jnp.maximum(q0, q1),
                               jnp.maximum(q2, q3)).astype(o_ref.dtype)


def mlp_kernel(x_ref, w1_ref, b1_ref, w2_ref, b2_ref, o_ref):
    """fc1 + ReLU + fc2 fused. fc2 output is pre-padded to 128 lanes so the
    final store is lane-dense."""
    h = jnp.dot(x_ref[0], w1_ref[...], preferred_element_type=jnp.float32)
    h = jnp.maximum(h + b1_ref[...], 0.0).astype(w2_ref.dtype)
    o_ref[0] = (jnp.dot(h, w2_ref[...], preferred_element_type=jnp.float32)
                + b2_ref[...]).astype(o_ref.dtype)


# --------------------------------------------------------------------------
# pallas_call wrappers
# --------------------------------------------------------------------------

def conv_relu_pool(patches2d, w, b, *, batch, p_out, p_pad, cout):
    Mi = 4 * p_pad
    K = patches2d.shape[1]
    bb = _pick_block_b(batch)
    return pl.pallas_call(
        conv_relu_pool_kernel,
        out_shape=jax.ShapeDtypeStruct((batch, p_out, cout), jnp.bfloat16),
        grid=(batch // bb,),
        in_specs=[
            pl.BlockSpec((bb * Mi, K), lambda i: (i, 0)),
            pl.BlockSpec((K, cout), lambda i: (0, 0)),
            pl.BlockSpec((1, cout), lambda i: (0, 0)),
        ],
        out_specs=pl.BlockSpec((bb, p_out, cout), lambda i: (i, 0, 0)),
        compiler_params=pltpu.CompilerParams(
            dimension_semantics=("parallel",)),
    )(patches2d, w, b)


def mlp(x, w1, b1, w2, b2):
    B, Din = x.shape
    Dh, Do = w1.shape[1], w2.shape[1]
    bb = _pick_block_b(B)
    nb = B // bb
    x3 = x.reshape(nb, bb, Din)
    out = pl.pallas_call(
        mlp_kernel,
        out_shape=jax.ShapeDtypeStruct((nb, bb, Do), jnp.float32),
        grid=(nb,),
        in_specs=[
            pl.BlockSpec((1, bb, Din), lambda i: (i, 0, 0)),
            pl.BlockSpec((Din, Dh), lambda i: (0, 0)),
            pl.BlockSpec((1, Dh), lambda i: (0, 0)),
            pl.BlockSpec((Dh, Do), lambda i: (0, 0)),
            pl.BlockSpec((1, Do), lambda i: (0, 0)),
        ],
        out_specs=pl.BlockSpec((1, bb, Do), lambda i: (i, 0, 0)),
        compiler_params=pltpu.CompilerParams(
            dimension_semantics=("parallel",)),
    )(x3, w1, b1, w2, b2)
    return out.reshape(B, Do)


# --------------------------------------------------------------------------
# layout plumbing (XLA side): im2col with pool-friendly, aligned row ordering
# --------------------------------------------------------------------------

def im2col_pool_order(x_nhwc):
    """(B,H,W,C) -> ((B*4*P_pad, K_pad), P, P_pad, K_pad) im2col patches for
    a 3x3 same-padded conv.  Per image, rows are quadrant-major: quadrant
    q = 2r+s (r,s in {0,1}) holds conv-output position (2ph+r, 2pw+s) at row
    ph*(W/2)+pw, so the fused 2x2/s2 max-pool in the kernel is a max over 4
    row blocks.  Each quadrant is zero-padded from P to P_pad (multiple of 8)
    rows so those blocks stay sublane-aligned."""
    B, H, W, C = x_nhwc.shape
    P = (H // 2) * (W // 2)
    K = 9 * C
    P_pad = _round_up(P, 8)
    K_pad = _round_up(K, 8)
    xp = jnp.pad(x_nhwc, ((0, 0), (1, 1), (1, 1), (0, 0)))
    taps = [xp[:, dh:dh + H, dw:dw + W, :]
            for dh in range(3) for dw in range(3)]
    t = jnp.stack(taps, axis=-2)                             # (B, H, W, 9, C)
    quads = [t[:, r::2, s::2] for r in (0, 1) for s in (0, 1)]
    q = jnp.stack(quads, axis=1).reshape(B, 4, P, K)         # quadrant-major
    q = jnp.pad(q, ((0, 0), (0, 0), (0, P_pad - P), (0, K_pad - K)))
    return q.reshape(B * 4 * P_pad, K_pad), P, P_pad, K_pad


def prepare_params(params):
    """One-time conversion of PyTorch-layout params to kernel layout."""
    c1w, c1b, c2w, c2b, f1w, f1b, f2w, f2b = params

    def fold_conv_w(w_hwio):
        kh, kw, cin, cout = w_hwio.shape
        k = kh * kw * cin
        wm = w_hwio.reshape(k, cout)                    # row = (dh*3+dw)*Cin+ci
        kp = _round_up(k, 8)
        return jnp.pad(wm, ((0, kp - k), (0, 0))).astype(jnp.bfloat16)

    # fc1: permute rows once so the plain HWC flatten of the pooled conv2
    # output matches PyTorch's NCHW `view(-1, 64*7*7)` semantics.
    f1w_hwc = f1w.reshape(64, 7, 7, 128).transpose(1, 2, 0, 3).reshape(3136, 128)

    # fc2: zero-pad output dim 10 -> 128 for a lane-dense store.
    f2w_p = jnp.pad(f2w, ((0, 0), (0, 128 - f2w.shape[1])))
    f2b_p = jnp.pad(f2b, ((0, 0), (0, 128 - f2b.shape[1])))

    return (fold_conv_w(c1w), c1b.astype(jnp.float32),
            fold_conv_w(c2w), c2b.astype(jnp.float32),
            f1w_hwc.astype(jnp.bfloat16), f1b.astype(jnp.float32),
            f2w_p.astype(jnp.bfloat16), f2b_p.astype(jnp.float32))


def cnn_forward(x_nchw, kparams):
    w1, b1, w2, b2, f1w, f1b, f2w, f2b = kparams
    B = x_nchw.shape[0]

    # NCHW -> NHWC, bf16 activations for the MXU (f32 accumulate in-kernel).
    x = jnp.transpose(x_nchw, (0, 2, 3, 1)).astype(jnp.bfloat16)  # (B,28,28,1)

    # conv1 + ReLU + 2x2 maxpool (fused)
    p1, P1, Pp1, _ = im2col_pool_order(x)                    # (B*4*200, 16)
    y1 = conv_relu_pool(p1, w1, b1, batch=B, p_out=P1, p_pad=Pp1, cout=32)
    #                                                         (B,196,32)=14x14x32

    # conv2 + ReLU + 2x2 maxpool (fused)
    p2, P2, Pp2, _ = im2col_pool_order(y1.reshape(B, 14, 14, 32))  # (B*4*56, 288)
    y2 = conv_relu_pool(p2, w2, b2, batch=B, p_out=P2, p_pad=Pp2, cout=64)
    #                                                         (B,49,64)=7x7x64

    # HWC flatten (fc1 weight rows were permuted once to match).
    feat = y2.reshape(B, 64 * 7 * 7)

    logits = mlp(feat, f1w, f1b, f2w, f2b)                   # (B,128); cols>=10 zero
    return logits[:, :10]


# --------------------------------------------------------------------------
# Pure-JAX f32 reference (PyTorch semantics) for the correctness check
# --------------------------------------------------------------------------

def ref_forward(x_nchw, params):
    (c1w, c1b, c2w, c2b, f1w, f1b, f2w, f2b) = params
    x = x_nchw.astype(jnp.float32)

    def conv(x, w_hwio, b, cout):
        w = jnp.transpose(w_hwio, (3, 2, 0, 1))  # OIHW
        dn = lax.conv_dimension_numbers(x.shape, w.shape, ('NCHW', 'OIHW', 'NCHW'))
        y = lax.conv_general_dilated(x, w, (1, 1), ((1, 1), (1, 1)),
                                     dimension_numbers=dn)
        return jnp.maximum(y + b.reshape(1, cout, 1, 1), 0.0)

    def pool(x):
        return lax.reduce_window(x, -jnp.inf, lax.max,
                                 (1, 1, 2, 2), (1, 1, 2, 2), 'VALID')

    y = pool(conv(x, c1w, c1b, 32))
    y = pool(conv(y, c2w, c2b, 64))
    feat = y.reshape(y.shape[0], -1)                    # NCHW flatten
    h = jnp.maximum(feat @ f1w + f1b, 0.0)
    return h @ f2w + f2b


# --------------------------------------------------------------------------

def init_params(key):
    ks = jax.random.split(key, 8)
    c1w = jax.random.normal(ks[0], (3, 3, 1, 32), jnp.float32) * 0.10   # HWIO
    c1b = jax.random.normal(ks[1], (1, 32), jnp.float32) * 0.10
    c2w = jax.random.normal(ks[2], (3, 3, 32, 64), jnp.float32) * 0.05  # HWIO
    c2b = jax.random.normal(ks[3], (1, 64), jnp.float32) * 0.10
    f1w = jax.random.normal(ks[4], (64 * 7 * 7, 128), jnp.float32) * 0.02
    f1b = jax.random.normal(ks[5], (1, 128), jnp.float32) * 0.10
    f2w = jax.random.normal(ks[6], (128, 10), jnp.float32) * 0.10
    f2b = jax.random.normal(ks[7], (1, 10), jnp.float32) * 0.10
    return (c1w, c1b, c2w, c2b, f1w, f1b, f2w, f2b)


if __name__ == "__main__":
    key = jax.random.PRNGKey(0)
    pkey, xkey = jax.random.split(key)
    params = init_params(pkey)
    kparams = prepare_params(params)   # weight repack/permute/pad done once

    # Module implies 28x28 single-channel input (64*7*7 after two 2x pools).
    x = jax.random.normal(xkey, (2, 1, 28, 28), jnp.float32)

    out = jax.jit(cnn_forward)(x, kparams)
    out = jax.block_until_ready(out)

    ref = jax.block_until_ready(ref_forward(x, params))
    assert out.shape == (2, 10), out.shape
    # bf16 matmul operands (f32 accumulate) => loose-but-safe tolerance.
    assert jnp.allclose(out, ref, rtol=5e-2, atol=5e-2), \
        f"mismatch, max abs err = {jnp.max(jnp.abs(out - ref))}"

    print("KERNEL_OK")
</pallas_src>

<mosaic_0001>
module attributes {stable_mosaic.version = 11 : i64} {
  func.func @conv_relu_pool_kernel(%arg0: i32, %arg1: memref<800x16xbf16, #tpu.memory_space<vmem>>, %arg2: memref<16x32xbf16, #tpu.memory_space<vmem>>, %arg3: memref<1x32xf32, #tpu.memory_space<vmem>>, %arg4: memref<1x196x32xbf16, #tpu.memory_space<vmem>>) attributes {dimension_semantics = [#tpu.dimension_semantics<parallel>], iteration_bounds = array<i64: 2>, scalar_prefetch = 0 : i64, scratch_operands = 0 : i64, tpu.core_type = #tpu.core_type<tc>, window_params = [{transform_indices = @transform_0, window_bounds = array<i64: 800, 16>}, {pipeline_mode = #tpu.pipeline_mode<synchronous>, transform_indices = @transform_1, window_bounds = array<i64: 16, 32>}, {pipeline_mode = #tpu.pipeline_mode<synchronous>, transform_indices = @transform_2, window_bounds = array<i64: 1, 32>}, {transform_indices = @transform_3, window_bounds = array<i64: 1, 196, 32>}]} {
    %c0 = arith.constant 0 : index
    %c0_0 = arith.constant 0 : index
    %0 = vector.load %arg1[%c0, %c0_0] : memref<800x16xbf16, #tpu.memory_space<vmem>>, vector<800x16xbf16>
    %c0_1 = arith.constant 0 : index
    %c0_2 = arith.constant 0 : index
    %1 = vector.load %arg2[%c0_1, %c0_2] : memref<16x32xbf16, #tpu.memory_space<vmem>>, vector<16x32xbf16>
    %cst = arith.constant dense<0.000000e+00> : vector<800x32xf32>
    %2 = tpu.matmul %0, %1, %cst {dimension_numbers = #tpu.dot_dimension_numbers<[1], [0], [0], [1], [0, 0, 1, 1], [], []>} : vector<800x16xbf16>, vector<16x32xbf16>, vector<800x32xf32> -> vector<800x32xf32>
    %c0_3 = arith.constant 0 : index
    %c0_4 = arith.constant 0 : index
    %3 = vector.load %arg3[%c0_3, %c0_4] : memref<1x32xf32, #tpu.memory_space<vmem>>, vector<1x32xf32>
    %4 = vector.broadcast %3 : vector<1x32xf32> to vector<800x32xf32>
    %5 = arith.addf %2, %4 : vector<800x32xf32>
    %cst_5 = arith.constant 0.000000e+00 : f32
    %6 = vector.broadcast %cst_5 : f32 to vector<800x32xf32>
    %7 = arith.maximumf %5, %6 : vector<800x32xf32>
    %8 = vector.extract_strided_slice %7 {offsets = [0, 0], sizes = [196, 32], strides = [1, 1]} : vector<800x32xf32> to vector<196x32xf32>
    %9 = vector.extract_strided_slice %7 {offsets = [200, 0], sizes = [196, 32], strides = [1, 1]} : vector<800x32xf32> to vector<196x32xf32>
    %10 = vector.extract_strided_slice %7 {offsets = [400, 0], sizes = [196, 32], strides = [1, 1]} : vector<800x32xf32> to vector<196x32xf32>
    %11 = vector.extract_strided_slice %7 {offsets = [600, 0], sizes = [196, 32], strides = [1, 1]} : vector<800x32xf32> to vector<196x32xf32>
    %12 = arith.maximumf %8, %9 : vector<196x32xf32>
    %13 = arith.maximumf %10, %11 : vector<196x32xf32>
    %14 = arith.maximumf %12, %13 : vector<196x32xf32>
    %15 = arith.truncf %14 : vector<196x32xf32> to vector<196x32xbf16>
    %c0_6 = arith.constant 0 : index
    %c0_7 = arith.constant 0 : index
    %c0_8 = arith.constant 0 : index
    %16 = vector.load %arg4[%c0_6, %c0_7, %c0_8] : memref<1x196x32xbf16, #tpu.memory_space<vmem>>, vector<1x196x32xbf16>
    %17 = vector.shape_cast %16 : vector<1x196x32xbf16> to vector<196x32xbf16>
    %18 = vector.shape_cast %15 : vector<196x32xbf16> to vector<1x196x32xbf16>
    tpu.vector_store %arg4[%c0_6, %c0_7, %c0_8], %18 {strides = array<i32>} : memref<1x196x32xbf16, #tpu.memory_space<vmem>>, vector<1x196x32xbf16>,
    return
  }
  func.func @transform_0(%arg0: i32) -> (i32, i32) {
    %c0_i32 = arith.constant 0 : i32
    %c0_i32_0 = arith.constant 0 : i32
    return %arg0, %c0_i32 : i32, i32
  }
  func.func @transform_1(%arg0: i32) -> (i32, i32) {
    %c0_i32 = arith.constant 0 : i32
    %c0_i32_0 = arith.constant 0 : i32
    %c0_i32_1 = arith.constant 0 : i32
    return %c0_i32, %c0_i32_0 : i32, i32
  }
  func.func @transform_2(%arg0: i32) -> (i32, i32) {
    %c0_i32 = arith.constant 0 : i32
    %c0_i32_0 = arith.constant 0 : i32
    %c0_i32_1 = arith.constant 0 : i32
    return %c0_i32, %c0_i32_0 : i32, i32
  }
  func.func @transform_3(%arg0: i32) -> (i32, i32, i32) {
    %c0_i32 = arith.constant 0 : i32
    %c0_i32_0 = arith.constant 0 : i32
    %c0_i32_1 = arith.constant 0 : i32
    return %arg0, %c0_i32, %c0_i32_0 : i32, i32, i32
  }
}

module attributes {stable_mosaic.version = 11 : i64} {
  func.func @conv_relu_pool_kernel(%arg0: i32, %arg1: memref<224x288xbf16, #tpu.memory_space<vmem>>, %arg2: memref<288x64xbf16, #tpu.memory_space<vmem>>, %arg3: memref<1x64xf32, #tpu.memory_space<vmem>>, %arg4: memref<1x49x64xbf16, #tpu.memory_space<vmem>>) attributes {dimension_semantics = [#tpu.dimension_semantics<parallel>], iteration_bounds = array<i64: 2>, scalar_prefetch = 0 : i64, scratch_operands = 0 : i64, tpu.core_type = #tpu.core_type<tc>, window_params = [{transform_indices = @transform_0, window_bounds = array<i64: 224, 288>}, {pipeline_mode = #tpu.pipeline_mode<synchronous>, transform_indices = @transform_1, window_bounds = array<i64: 288, 64>}, {pipeline_mode = #tpu.pipeline_mode<synchronous>, transform_indices = @transform_2, window_bounds = array<i64: 1, 64>}, {transform_indices = @transform_3, window_bounds = array<i64: 1, 49, 64>}]} {
    %c0 = arith.constant 0 : index
    %c0_0 = arith.constant 0 : index
    %0 = vector.load %arg1[%c0, %c0_0] : memref<224x288xbf16, #tpu.memory_space<vmem>>, vector<224x288xbf16>
    %c0_1 = arith.constant 0 : index
    %c0_2 = arith.constant 0 : index
    %1 = vector.load %arg2[%c0_1, %c0_2] : memref<288x64xbf16, #tpu.memory_space<vmem>>, vector<288x64xbf16>
    %cst = arith.constant dense<0.000000e+00> : vector<224x64xf32>
    %2 = tpu.matmul %0, %1, %cst {dimension_numbers = #tpu.dot_dimension_numbers<[1], [0], [0], [1], [0, 0, 1, 1], [], []>} : vector<224x288xbf16>, vector<288x64xbf16>, vector<224x64xf32> -> vector<224x64xf32>
    %c0_3 = arith.constant 0 : index
    %c0_4 = arith.constant 0 : index
    %3 = vector.load %arg3[%c0_3, %c0_4] : memref<1x64xf32, #tpu.memory_space<vmem>>, vector<1x64xf32>
    %4 = vector.broadcast %3 : vector<1x64xf32> to vector<224x64xf32>
    %5 = arith.addf %2, %4 : vector<224x64xf32>
    %cst_5 = arith.constant 0.000000e+00 : f32
    %6 = vector.broadcast %cst_5 : f32 to vector<224x64xf32>
    %7 = arith.maximumf %5, %6 : vector<224x64xf32>
    %8 = vector.extract_strided_slice %7 {offsets = [0, 0], sizes = [49, 64], strides = [1, 1]} : vector<224x64xf32> to vector<49x64xf32>
    %9 = vector.extract_strided_slice %7 {offsets = [56, 0], sizes = [49, 64], strides = [1, 1]} : vector<224x64xf32> to vector<49x64xf32>
    %10 = vector.extract_strided_slice %7 {offsets = [112, 0], sizes = [49, 64], strides = [1, 1]} : vector<224x64xf32> to vector<49x64xf32>
    %11 = vector.extract_strided_slice %7 {offsets = [168, 0], sizes = [49, 64], strides = [1, 1]} : vector<224x64xf32> to vector<49x64xf32>
    %12 = arith.maximumf %8, %9 : vector<49x64xf32>
    %13 = arith.maximumf %10, %11 : vector<49x64xf32>
    %14 = arith.maximumf %12, %13 : vector<49x64xf32>
    %15 = arith.truncf %14 : vector<49x64xf32> to vector<49x64xbf16>
    %c0_6 = arith.constant 0 : index
    %c0_7 = arith.constant 0 : index
    %c0_8 = arith.constant 0 : index
    %16 = vector.load %arg4[%c0_6, %c0_7, %c0_8] : memref<1x49x64xbf16, #tpu.memory_space<vmem>>, vector<1x49x64xbf16>
    %17 = vector.shape_cast %16 : vector<1x49x64xbf16> to vector<49x64xbf16>
    %18 = vector.shape_cast %15 : vector<49x64xbf16> to vector<1x49x64xbf16>
    tpu.vector_store %arg4[%c0_6, %c0_7, %c0_8], %18 {strides = array<i32>} : memref<1x49x64xbf16, #tpu.memory_space<vmem>>, vector<1x49x64xbf16>,
    return
  }
  func.func @transform_0(%arg0: i32) -> (i32, i32) {
    %c0_i32 = arith.constant 0 : i32
    %c0_i32_0 = arith.constant 0 : i32
    return %arg0, %c0_i32 : i32, i32
  }
  func.func @transform_1(%arg0: i32) -> (i32, i32) {
    %c0_i32 = arith.constant 0 : i32
    %c0_i32_0 = arith.constant 0 : i32
    %c0_i32_1 = arith.constant 0 : i32
    return %c0_i32, %c0_i32_0 : i32, i32
  }
  func.func @transform_2(%arg0: i32) -> (i32, i32) {
    %c0_i32 = arith.constant 0 : i32
    %c0_i32_0 = arith.constant 0 : i32
    %c0_i32_1 = arith.constant 0 : i32
    return %c0_i32, %c0_i32_0 : i32, i32
  }
  func.func @transform_3(%arg0: i32) -> (i32, i32, i32) {
    %c0_i32 = arith.constant 0 : i32
    %c0_i32_0 = arith.constant 0 : i32
    %c0_i32_1 = arith.constant 0 : i32
    return %arg0, %c0_i32, %c0_i32_0 : i32, i32, i32
  }
}

module attributes {stable_mosaic.version = 11 : i64} {
  func.func @mlp_kernel(%arg0: i32, %arg1: memref<1x1x3136xbf16, #tpu.memory_space<vmem>>, %arg2: memref<3136x128xbf16, #tpu.memory_space<vmem>>, %arg3: memref<1x128xf32, #tpu.memory_space<vmem>>, %arg4: memref<128x128xbf16, #tpu.memory_space<vmem>>, %arg5: memref<1x128xf32, #tpu.memory_space<vmem>>, %arg6: memref<1x1x128xf32, #tpu.memory_space<vmem>>) attributes {dimension_semantics = [#tpu.dimension_semantics<parallel>], iteration_bounds = array<i64: 2>, scalar_prefetch = 0 : i64, scratch_operands = 0 : i64, tpu.core_type = #tpu.core_type<tc>, window_params = [{transform_indices = @transform_0, window_bounds = array<i64: 1, 1, 3136>}, {pipeline_mode = #tpu.pipeline_mode<synchronous>, transform_indices = @transform_1, window_bounds = array<i64: 3136, 128>}, {pipeline_mode = #tpu.pipeline_mode<synchronous>, transform_indices = @transform_2, window_bounds = array<i64: 1, 128>}, {pipeline_mode = #tpu.pipeline_mode<synchronous>, transform_indices = @transform_3, window_bounds = array<i64: 128, 128>}, {pipeline_mode = #tpu.pipeline_mode<synchronous>, transform_indices = @transform_4, window_bounds = array<i64: 1, 128>}, {transform_indices = @transform_5, window_bounds = array<i64: 1, 1, 128>}]} {
    %c0 = arith.constant 0 : index
    %c0_0 = arith.constant 0 : index
    %c0_1 = arith.constant 0 : index
    %0 = vector.load %arg1[%c0, %c0_0, %c0_1] : memref<1x1x3136xbf16, #tpu.memory_space<vmem>>, vector<1x1x3136xbf16>
    %1 = vector.shape_cast %0 : vector<1x1x3136xbf16> to vector<1x3136xbf16>
    %c0_2 = arith.constant 0 : index
    %c0_3 = arith.constant 0 : index
    %2 = vector.load %arg2[%c0_2, %c0_3] : memref<3136x128xbf16, #tpu.memory_space<vmem>>, vector<3136x128xbf16>
    %cst = arith.constant dense<0.000000e+00> : vector<1x128xf32>
    %3 = tpu.matmul %1, %2, %cst {dimension_numbers = #tpu.dot_dimension_numbers<[1], [0], [0], [1], [0, 0, 1, 1], [], []>} : vector<1x3136xbf16>, vector<3136x128xbf16>, vector<1x128xf32> -> vector<1x128xf32>
    %c0_4 = arith.constant 0 : index
    %c0_5 = arith.constant 0 : index
    %4 = vector.load %arg3[%c0_4, %c0_5] : memref<1x128xf32, #tpu.memory_space<vmem>>, vector<1x128xf32>
    %5 = arith.addf %3, %4 : vector<1x128xf32>
    %cst_6 = arith.constant 0.000000e+00 : f32
    %6 = vector.broadcast %cst_6 : f32 to vector<1x128xf32>
    %7 = arith.maximumf %5, %6 : vector<1x128xf32>
    %8 = arith.truncf %7 : vector<1x128xf32> to vector<1x128xbf16>
    %c0_7 = arith.constant 0 : index
    %c0_8 = arith.constant 0 : index
    %9 = vector.load %arg4[%c0_7, %c0_8] : memref<128x128xbf16, #tpu.memory_space<vmem>>, vector<128x128xbf16>
    %cst_9 = arith.constant dense<0.000000e+00> : vector<1x128xf32>
    %10 = tpu.matmul %8, %9, %cst_9 {dimension_numbers = #tpu.dot_dimension_numbers<[1], [0], [0], [1], [0, 0, 1, 1], [], []>} : vector<1x128xbf16>, vector<128x128xbf16>, vector<1x128xf32> -> vector<1x128xf32>
    %c0_10 = arith.constant 0 : index
    %c0_11 = arith.constant 0 : index
    %11 = vector.load %arg5[%c0_10, %c0_11] : memref<1x128xf32, #tpu.memory_space<vmem>>, vector<1x128xf32>
    %12 = arith.addf %10, %11 : vector<1x128xf32>
    %c0_12 = arith.constant 0 : index
    %c0_13 = arith.constant 0 : index
    %c0_14 = arith.constant 0 : index
    %13 = vector.load %arg6[%c0_12, %c0_13, %c0_14] : memref<1x1x128xf32, #tpu.memory_space<vmem>>, vector<1x1x128xf32>
    %14 = vector.shape_cast %13 : vector<1x1x128xf32> to vector<1x128xf32>
    %15 = vector.shape_cast %12 : vector<1x128xf32> to vector<1x1x128xf32>
    tpu.vector_store %arg6[%c0_12, %c0_13, %c0_14], %15 {strides = array<i32>} : memref<1x1x128xf32, #tpu.memory_space<vmem>>, vector<1x1x128xf32>,
    return
  }
  func.func @transform_0(%arg0: i32) -> (i32, i32, i32) {
    %c0_i32 = arith.constant 0 : i32
    %c0_i32_0 = arith.constant 0 : i32
    %c0_i32_1 = arith.constant 0 : i32
    return %arg0, %c0_i32, %c0_i32_0 : i32, i32, i32
  }
  func.func @transform_1(%arg0: i32) -> (i32, i32) {
    %c0_i32 = arith.constant 0 : i32
    %c0_i32_0 = arith.constant 0 : i32
    %c0_i32_1 = arith.constant 0 : i32
    return %c0_i32, %c0_i32_0 : i32, i32
  }
  func.func @transform_2(%arg0: i32) -> (i32, i32) {
    %c0_i32 = arith.constant 0 : i32
    %c0_i32_0 = arith.constant 0 : i32
    %c0_i32_1 = arith.constant 0 : i32
    return %c0_i32, %c0_i32_0 : i32, i32
  }
  func.func @transform_3(%arg0: i32) -> (i32, i32) {
    %c0_i32 = arith.constant 0 : i32
    %c0_i32_0 = arith.constant 0 : i32
    %c0_i32_1 = arith.constant 0 : i32
    return %c0_i32, %c0_i32_0 : i32, i32
  }
  func.func @transform_4(%arg0: i32) -> (i32, i32) {
    %c0_i32 = arith.constant 0 : i32
    %c0_i32_0 = arith.constant 0 : i32
    %c0_i32_1 = arith.constant 0 : i32
    return %c0_i32, %c0_i32_0 : i32, i32
  }
  func.func @transform_5(%arg0: i32) -> (i32, i32, i32) {
    %c0_i32 = arith.constant 0 : i32
    %c0_i32_0 = arith.constant 0 : i32
    %c0_i32_1 = arith.constant 0 : i32
    return %arg0, %c0_i32, %c0_i32_0 : i32, i32, i32
  }
}

</mosaic_0001>

<llo_original>
// kernel: cnn_forward.3
$region0: #{cnn_forward.3}
  #allocation0 [shape = 'u32[]', space=smem, size = 0x4, offset = 0x4, fixed_abs, tag = 'smem constant byte address 0x4 - core index']
  #allocation1 [shape = 'u32[72,128]{1,0:T(1,128)}', space=vmem, size = 0x9000, scoped, tag = 'internal scratch']
  %s0 = inlined_call_operand.vmem [shape: bf16[1600,16], index: 0, kind: input, shape index: {}]
  %s1 = inlined_call_operand.vmem [shape: bf16[16,32], index: 1, kind: input, shape index: {}]
  %s2 = inlined_call_operand.vmem [shape: f32[1,32], index: 2, kind: input, shape index: {}]
  %s3 = inlined_call_operand.vmem [shape: bf16[2,196,32], index: 3, kind: output, shape index: {}]
  %s4 = sld [smem:[#allocation0]]
  $region45: #{cnn_forward.3} parent=0
    _
  %s6 = ssub.s32 1, %s4
  %s7 = scalar_select 0, %s6, %s4
  loop: start=0, step=1, limit=4
  $region2: #{cnn_forward.3} parent=0 // loop_pre_header
    _
  $region3: #{cnn_forward.3} parent=0 // loop_header
    %s9 = sphi 0, %s13
    %p10 = scmp.ge.s32.totalorder %s9, 4
    %s19 = sphi 0, %s21
    %s22 = sphi 0, %s19
    %s23 = sphi 0, %s22
    %s39 = sphi 0, %s23
    %s43 = sphi 0, %s43
    %s45 = sphi 0, %s43
    %s46 = sphi 0, %s45
    %s60 = sphi 0, %s46
    %s64 = sphi 0, %s64
    %s66 = sphi 0, %s64
    %s67 = sphi 0, %s66
    %s81 = sphi 0, %s67
    %s87 = sphi 0, %s89
    %s90 = sphi 0, %s87
    %s91 = sphi 0, %s90
    %s107 = sphi 0, %s91
  $region4: #{cnn_forward.3} parent=0 // loop_header_branch
    %12 = sbr.rel (%p10) target = $region8
  $region5: #{cnn_forward.3} parent=0 // loop_body
    %s14 = ssub.s32 %s9, 1
    %s15 = ssub.s32 %s9, 2
    %s16 = sadd.s32 %s9, 1
    %s17 = ssub.s32 %s9, %s16
    %p18 = scmp.eq.s32.totalorder %s17, 0
    %s20 = sadd.s32 %s19, 1
    %s21 = scalar_select %p18, %s19, %s20
    %p24 = pneg %p18
    %p25 = scmp.eq.s32.totalorder %s9, 1
    %p26 = por %p24, %p25
    %p27 = scmp.ne.s32.totalorder %s19, %s22
    %p28 = scmp.eq.s32.totalorder %s9, 0
    %p29 = por %p27, %p28
    %p30 = scmp.ne.s32.totalorder %s19, %s22
    %p31 = scmp.eq.s32.totalorder %s14, 1
    %p32 = por %p30, %p31
    %p33 = scmp.ne.s32.totalorder %s22, %s23
    %p34 = scmp.eq.s32.totalorder %s14, 0
    %p35 = por %p33, %p34
    %p36 = scmp.ne.s32.totalorder %s22, %s23
    %p37 = scmp.eq.s32.totalorder %s15, 1
    %p38 = por %p36, %p37
    %p40 = scmp.ne.s32.totalorder %s23, %s39
    %p41 = scmp.eq.s32.totalorder %s15, 0
    %p42 = por %p40, %p41
    %s44 = sadd.s32 %s43, 1
    %p47 = scmp.eq.s32.totalorder %s9, 1
    %p48 = scmp.ne.s32.totalorder %s43, %s45
    %p49 = scmp.eq.s32.totalorder %s9, 0
    %p50 = por %p48, %p49
    %p51 = scmp.ne.s32.totalorder %s43, %s45
    %p52 = scmp.eq.s32.totalorder %s14, 1
    %p53 = por %p51, %p52
    %p54 = scmp.ne.s32.totalorder %s45, %s46
    %p55 = scmp.eq.s32.totalorder %s14, 0
    %p56 = por %p54, %p55
    %p57 = scmp.ne.s32.totalorder %s45, %s46
    %p58 = scmp.eq.s32.totalorder %s15, 1
    %p59 = por %p57, %p58
    %p61 = scmp.ne.s32.totalorder %s46, %s60
    %p62 = scmp.eq.s32.totalorder %s15, 0
    %p63 = por %p61, %p62
    %s65 = sadd.s32 %s64, 1
    %p68 = scmp.eq.s32.totalorder %s9, 1
    %p69 = scmp.ne.s32.totalorder %s64, %s66
    %p70 = scmp.eq.s32.totalorder %s9, 0
    %p71 = por %p69, %p70
    %p72 = scmp.ne.s32.totalorder %s64, %s66
    %p73 = scmp.eq.s32.totalorder %s14, 1
    %p74 = por %p72, %p73
    %p75 = scmp.ne.s32.totalorder %s66, %s67
    %p76 = scmp.eq.s32.totalorder %s14, 0
    %p77 = por %p75, %p76
    %p78 = scmp.ne.s32.totalorder %s66, %s67
    %p79 = scmp.eq.s32.totalorder %s15, 1
    %p80 = por %p78, %p79
    %p82 = scmp.ne.s32.totalorder %s67, %s81
    %p83 = scmp.eq.s32.totalorder %s15, 0
    %p84 = por %p82, %p83
    %s85 = ssub.s32 %s9, %s16
    %p86 = scmp.eq.s32.totalorder %s85, 0
    %s88 = sadd.s32 %s87, 1
    %s89 = scalar_select %p86, %s87, %s88
    %p92 = pneg %p86
    %p93 = scmp.eq.s32.totalorder %s9, 1
    %p94 = por %p92, %p93
    %p95 = scmp.ne.s32.totalorder %s87, %s90
    %p96 = scmp.eq.s32.totalorder %s9, 0
    %p97 = por %p95, %p96
    %p98 = scmp.ne.s32.totalorder %s87, %s90
    %p99 = scmp.eq.s32.totalorder %s14, 1
    %p100 = por %p98, %p99
    %p101 = scmp.ne.s32.totalorder %s90, %s91
    %p102 = scmp.eq.s32.totalorder %s14, 0
    %p103 = por %p101, %p102
    %p104 = scmp.ne.s32.totalorder %s90, %s91
    %p105 = scmp.eq.s32.totalorder %s15, 1
    %p106 = por %p104, %p105
    %p108 = scmp.ne.s32.totalorder %s91, %s107
    %p109 = scmp.eq.s32.totalorder %s15, 0
    %p110 = por %p108, %p109
    %p111 = scmp.le.s32.totalorder 1, %s9
    %p112 = scmp.lt.s32.totalorder %s9, 3
    %p113 = pnand %p111, %p112
    %p114 = pneg %p113
    // Predicated region
    $region9: #{cnn_forward.3} parent=5 // pred_check
      _
    $region10: #{cnn_forward.3} parent=5 // pred_check_branch
      %116 = sbr.rel (%p113) target = $region12
    $region11: #{cnn_forward.3} parent=5 // pred_region
      %s117 = ssub.s32 %s9, 1
      // Predicated region
      $region13: #{cnn_forward.3} parent=11 // pred_check
        %p118 = pneg %p56
      $region14: #{cnn_forward.3} parent=11 // pred_check_branch
        %120 = sbr.rel (%p118) target = $region16
      $region15: #{cnn_forward.3} parent=11 // pred_region
        _
      $region16: #{cnn_forward.3} parent=11 // pred_fallthru
        _
      // Predicated region
      $region17: #{cnn_forward.3} parent=11 // pred_check
        %p121 = pneg %p77
      $region18: #{cnn_forward.3} parent=11 // pred_check_branch
        %123 = sbr.rel (%p121) target = $region20
      $region19: #{cnn_forward.3} parent=11 // pred_region
        _
      $region20: #{cnn_forward.3} parent=11 // pred_fallthru
        _
    $region12: #{cnn_forward.3} parent=5 // pred_fallthru
      _
    %p124 = scmp.lt.s32.totalorder %s9, 2
    // Predicated region
    $region21: #{cnn_forward.3} parent=5 // pred_check
      %p125 = pneg %p124
    $region22: #{cnn_forward.3} parent=5 // pred_check_branch
      %127 = sbr.rel (%p125) target = $region24
    $region23: #{cnn_forward.3} parent=5 // pred_region
      // Predicated region
      $region25: #{cnn_forward.3} parent=23 // pred_check
        %p128 = pneg %p29
      $region26: #{cnn_forward.3} parent=23 // pred_check_branch
        %130 = sbr.rel (%p128) target = $region28
      $region27: #{cnn_forward.3} parent=23 // pred_region
        %s131 = smul.u32 100, %s9
        %p132 = scmp.lt.s32.totalorder %s131, 199
        %s133 = scalar_select %p132, %s131, 199
        %s134 = smul.addr %s133, 4
        %s135 = scalar_lea.vmem %s0, %s134
        %s136 = smul.u32 100, %s9
      $region28: #{cnn_forward.3} parent=23 // pred_fallthru
        _
    $region24: #{cnn_forward.3} parent=5 // pred_fallthru
      _
    %p137 = scmp.le.s32.totalorder 1, %s9
    %p138 = scmp.lt.s32.totalorder %s9, 3
    %p139 = pnand %p137, %p138
    %p140 = pneg %p139
    // Predicated region
    $region29: #{cnn_forward.3} parent=5 // pred_check
      _
    $region30: #{cnn_forward.3} parent=5 // pred_check_branch
      %142 = sbr.rel (%p139) target = $region32
    $region31: #{cnn_forward.3} parent=5 // pred_region
      %s143 = ssub.s32 %s9, 1
      %s144 = smul.u32 100, %s14
      %p145 = scmp.lt.s32.totalorder %s144, 199
      %s146 = scalar_select %p145, %s144, 199
      %s147 = smul.addr %s146, 4
      %s148 = scalar_lea.vmem %s0, %s147
      %p149 = pneg %p35
      %p150 = pneg %p32
      %p151 = pneg %p56
      %p152 = pneg %p53
      %p153 = pneg %p77
      %p154 = pneg %p74
      %p155 = pneg %p103
      %p156 = pneg %p100
      %p157 = scmp.lt.s32.totalorder %s14, 1
      %s158 = scalar_select %p157, %s14, 1
      %s159 = smul.addr %s158, 25
      %s160 = smul.addr %s159, 4
      %s161 = scalar_lea.vmem %s3, %s160
      %s162 = smul.u32 100, %s14
      %p163 = scmp.lt.s32.totalorder %s162, 199
      %s164 = scalar_select %p163, %s162, 199
      %s165 = smul.addr %s164, 4
      %s166 = scalar_lea.vmem %s0, %s165
      %s167 = smul.u32 100, %s14
      %p168 = scmp.lt.s32.totalorder %s14, 1
      %s169 = scalar_select %p168, %s14, 1
      %s170 = smul.addr %s169, 25
      %s171 = smul.addr %s170, 4
      %s172 = scalar_lea.vmem %s3, %s171
      %v174 = vld [vmem:[%s166] sm:$0xf]
      %v175 = vld [vmem:[%s166 + $0x4] sm:$0xf]
      %v176 = vld [vmem:[%s166 + $0x8] sm:$0xf]
      %v177 = vld [vmem:[%s166 + $0xc] sm:$0xf]
      %v178 = vld [vmem:[%s166 + $0x10] sm:$0xf]
      %v179 = vld [vmem:[%s166 + $0x14] sm:$0xf]
      %v180 = vld [vmem:[%s166 + $0x18] sm:$0xf]
      %v181 = vld [vmem:[%s166 + $0x1c] sm:$0xf]
      %v182 = vld [vmem:[%s166 + $0x20] sm:$0xf]
      %v183 = vld [vmem:[%s166 + $0x24] sm:$0xf]
      %v184 = vld [vmem:[%s166 + $0x28] sm:$0xf]
      %v185 = vld [vmem:[%s166 + $0x2c] sm:$0xf]
      %v186 = vld [vmem:[%s166 + $0x30] sm:$0xf]
      %v187 = vld [vmem:[%s166 + $0x34] sm:$0xf]
      %v188 = vld [vmem:[%s166 + $0x38] sm:$0xf]
      %v189 = vld [vmem:[%s166 + $0x3c] sm:$0xf]
      %v190 = vld [vmem:[%s166 + $0x40] sm:$0xf]
      %v191 = vld [vmem:[%s166 + $0x44] sm:$0xf]
      %v192 = vld [vmem:[%s166 + $0x48] sm:$0xf]
      %v193 = vld [vmem:[%s166 + $0x4c] sm:$0xf]
      %v194 = vld [vmem:[%s166 + $0x50] sm:$0xf]
      %v195 = vld [vmem:[%s166 + $0x54] sm:$0xf]
      %v196 = vld [vmem:[%s166 + $0x58] sm:$0xf]
      %v197 = vld [vmem:[%s166 + $0x5c] sm:$0xf]
      %v198 = vld [vmem:[%s166 + $0x60] sm:$0xf]
      %v199 = vld [vmem:[%s166 + $0x64] sm:$0xf]
      %v200 = vld [vmem:[%s166 + $0x68] sm:$0xf]
      %v201 = vld [vmem:[%s166 + $0x6c] sm:$0xf]
      %v202 = vld [vmem:[%s166 + $0x70] sm:$0xf]
      %v203 = vld [vmem:[%s166 + $0x74] sm:$0xf]
      %v204 = vld [vmem:[%s166 + $0x78] sm:$0xf]
      %v205 = vld [vmem:[%s166 + $0x7c] sm:$0xf]
      %v206 = vld [vmem:[%s166 + $0x80] sm:$0xf]
      %v207 = vld [vmem:[%s166 + $0x84] sm:$0xf]
      %v208 = vld [vmem:[%s166 + $0x88] sm:$0xf]
      %v209 = vld [vmem:[%s166 + $0x8c] sm:$0xf]
      %v210 = vld [vmem:[%s166 + $0x90] sm:$0xf]
      %v211 = vld [vmem:[%s166 + $0x94] sm:$0xf]
      %v212 = vld [vmem:[%s166 + $0x98] sm:$0xf]
      %v213 = vld [vmem:[%s166 + $0x9c] sm:$0xf]
      %v214 = vld [vmem:[%s166 + $0xa0] sm:$0xf]
      %v215 = vld [vmem:[%s166 + $0xa4] sm:$0xf]
      %v216 = vld [vmem:[%s166 + $0xa8] sm:$0xf]
      %v217 = vld [vmem:[%s166 + $0xac] sm:$0xf]
      %v218 = vld [vmem:[%s166 + $0xb0] sm:$0xf]
      %v219 = vld [vmem:[%s166 + $0xb4] sm:$0xf]
      %v220 = vld [vmem:[%s166 + $0xb8] sm:$0xf]
      %v221 = vld [vmem:[%s166 + $0xbc] sm:$0xf]
      %v222 = vld [vmem:[%s166 + $0xc0] sm:$0xf]
      %v223 = vld [vmem:[%s166 + $0xc4] sm:$0xf]
      %v224 = vld [vmem:[%s166 + $0xc8] sm:$0xf]
      %v225 = vld [vmem:[%s166 + $0xcc] sm:$0xf]
      %v226 = vld [vmem:[%s166 + $0xd0] sm:$0xf]
      %v227 = vld [vmem:[%s166 + $0xd4] sm:$0xf]
      %v228 = vld [vmem:[%s166 + $0xd8] sm:$0xf]
      %v229 = vld [vmem:[%s166 + $0xdc] sm:$0xf]
      %v230 = vld [vmem:[%s166 + $0xe0] sm:$0xf]
      %v231 = vld [vmem:[%s166 + $0xe4] sm:$0xf]
      %v232 = vld [vmem:[%s166 + $0xe8] sm:$0xf]
      %v233 = vld [vmem:[%s166 + $0xec] sm:$0xf]
      %v234 = vld [vmem:[%s166 + $0xf0] sm:$0xf]
      %v235 = vld [vmem:[%s166 + $0xf4] sm:$0xf]
      %v236 = vld [vmem:[%s166 + $0xf8] sm:$0xf]
      %v237 = vld [vmem:[%s166 + $0xfc] sm:$0xf]
      %v238 = vld [vmem:[%s166 + $0x100] sm:$0xf]
      %v239 = vld [vmem:[%s166 + $0x104] sm:$0xf]
      %v240 = vld [vmem:[%s166 + $0x108] sm:$0xf]
      %v241 = vld [vmem:[%s166 + $0x10c] sm:$0xf]
      %v242 = vld [vmem:[%s166 + $0x110] sm:$0xf]
      %v243 = vld [vmem:[%s166 + $0x114] sm:$0xf]
      %v244 = vld [vmem:[%s166 + $0x118] sm:$0xf]
      %v245 = vld [vmem:[%s166 + $0x11c] sm:$0xf]
      %v246 = vld [vmem:[%s166 + $0x120] sm:$0xf]
      %v247 = vld [vmem:[%s166 + $0x124] sm:$0xf]
      %v248 = vld [vmem:[%s166 + $0x128] sm:$0xf]
      %v249 = vld [vmem:[%s166 + $0x12c] sm:$0xf]
      %v250 = vld [vmem:[%s166 + $0x130] sm:$0xf]
      %v251 = vld [vmem:[%s166 + $0x134] sm:$0xf]
      %v252 = vld [vmem:[%s166 + $0x138] sm:$0xf]
      %v253 = vld [vmem:[%s166 + $0x13c] sm:$0xf]
      %v254 = vld [vmem:[%s166 + $0x140] sm:$0xf]
      %v255 = vld [vmem:[%s166 + $0x144] sm:$0xf]
      %v256 = vld [vmem:[%s166 + $0x148] sm:$0xf]
      %v257 = vld [vmem:[%s166 + $0x14c] sm:$0xf]
      %v258 = vld [vmem:[%s166 + $0x150] sm:$0xf]
      %v259 = vld [vmem:[%s166 + $0x154] sm:$0xf]
      %v260 = vld [vmem:[%s166 + $0x158] sm:$0xf]
      %v261 = vld [vmem:[%s166 + $0x15c] sm:$0xf]
      %v262 = vld [vmem:[%s166 + $0x160] sm:$0xf]
      %v263 = vld [vmem:[%s166 + $0x164] sm:$0xf]
      %v264 = vld [vmem:[%s166 + $0x168] sm:$0xf]
      %v265 = vld [vmem:[%s166 + $0x16c] sm:$0xf]
      %v266 = vld [vmem:[%s166 + $0x170] sm:$0xf]
      %v267 = vld [vmem:[%s166 + $0x174] sm:$0xf]
      %v268 = vld [vmem:[%s166 + $0x178] sm:$0xf]
      %v269 = vld [vmem:[%s166 + $0x17c] sm:$0xf]
      %v270 = vld [vmem:[%s166 + $0x180] sm:$0xf]
      %v271 = vld [vmem:[%s166 + $0x184] sm:$0xf]
      %v272 = vld [vmem:[%s166 + $0x188] sm:$0xf]
      %v273 = vld [vmem:[%s166 + $0x18c] sm:$0xf]
      %v274 = vld [vmem:[%s1] sm:$0xf]
      %v275 = vld [vmem:[%s1 + $0x4] sm:$0xf]
      %v276 = vld [vmem:[%s2] sm:$0x1]
      %v278 = vperm.slane %v276, 0
      %v380 = vunpack.c.l.b16 %v174
      %v381 = vunpack.c.l.b16 %v175
      %v382 = vunpack.c.l.b16 %v176
      %v383 = vunpack.c.l.b16 %v177
      %v384 = vunpack.c.l.b16 %v178
      %v385 = vunpack.c.l.b16 %v179
      %v386 = vunpack.c.l.b16 %v180
      %v387 = vunpack.c.l.b16 %v181
      %v388 = vunpack.c.l.b16 %v182
      %v389 = vunpack.c.l.b16 %v183
      %v390 = vunpack.c.l.b16 %v184
      %v391 = vunpack.c.l.b16 %v185
      %v392 = vunpack.c.l.b16 %v186
      %v393 = vunpack.c.l.b16 %v187
      %v394 = vunpack.c.l.b16 %v188
      %v395 = vunpack.c.l.b16 %v189
      %v396 = vunpack.c.l.b16 %v190
      %v397 = vunpack.c.l.b16 %v191
      %v398 = vunpack.c.l.b16 %v192
      %v399 = vunpack.c.l.b16 %v193
      %v400 = vunpack.c.l.b16 %v194
      %v401 = vunpack.c.l.b16 %v195
      %v402 = vunpack.c.l.b16 %v196
      %v403 = vunpack.c.l.b16 %v197
      %v404 = vunpack.c.l.b16 %v198
      %v405 = vunpack.c.l.b16 %v199
      %v406 = vunpack.c.l.b16 %v200
      %v407 = vunpack.c.l.b16 %v201
      %v408 = vunpack.c.l.b16 %v202
      %v409 = vunpack.c.l.b16 %v203
      %v410 = vunpack.c.l.b16 %v204
      %v411 = vunpack.c.l.b16 %v205
      %v412 = vunpack.c.l.b16 %v206
      %v413 = vunpack.c.l.b16 %v207
      %v414 = vunpack.c.l.b16 %v208
      %v415 = vunpack.c.l.b16 %v209
      %v416 = vunpack.c.l.b16 %v210
      %v417 = vunpack.c.l.b16 %v211
      %v418 = vunpack.c.l.b16 %v212
      %v419 = vunpack.c.l.b16 %v213
      %v420 = vunpack.c.l.b16 %v214
      %v421 = vunpack.c.l.b16 %v215
      %v422 = vunpack.c.l.b16 %v216
      %v423 = vunpack.c.l.b16 %v217
      %v424 = vunpack.c.l.b16 %v218
      %v425 = vunpack.c.l.b16 %v219
      %v426 = vunpack.c.l.b16 %v220
      %v427 = vunpack.c.l.b16 %v221
      %v428 = vunpack.c.l.b16 %v222
      %v429 = vunpack.c.l.b16 %v223
      %v430 = vunpack.c.l.b16 %v224
      %v431 = vunpack.c.l.b16 %v225
      %v432 = vunpack.c.l.b16 %v226
      %v433 = vunpack.c.l.b16 %v227
      %v434 = vunpack.c.l.b16 %v228
      %v435 = vunpack.c.l.b16 %v229
      %v436 = vunpack.c.l.b16 %v230
      %v437 = vunpack.c.l.b16 %v231
      %v438 = vunpack.c.l.b16 %v232
      %v439 = vunpack.c.l.b16 %v233
      %v440 = vunpack.c.l.b16 %v234
      %v441 = vunpack.c.l.b16 %v235
      %v442 = vunpack.c.l.b16 %v236
      %v443 = vunpack.c.l.b16 %v237
      %v444 = vunpack.c.l.b16 %v238
      %v445 = vunpack.c.l.b16 %v239
      %v446 = vunpack.c.l.b16 %v240
      %v447 = vunpack.c.l.b16 %v241
      %v448 = vunpack.c.l.b16 %v242
      %v449 = vunpack.c.l.b16 %v243
      %v450 = vunpack.c.l.b16 %v244
      %v451 = vunpack.c.l.b16 %v245
      %v452 = vunpack.c.l.b16 %v246
      %v453 = vunpack.c.l.b16 %v247
      %v454 = vunpack.c.l.b16 %v248
      %v455 = vunpack.c.l.b16 %v249
      %v456 = vunpack.c.l.b16 %v250
      %v457 = vunpack.c.l.b16 %v251
      %v458 = vunpack.c.l.b16 %v252
      %v459 = vunpack.c.l.b16 %v253
      %v460 = vunpack.c.l.b16 %v254
      %v461 = vunpack.c.l.b16 %v255
      %v462 = vunpack.c.l.b16 %v256
      %v463 = vunpack.c.l.b16 %v257
      %v464 = vunpack.c.l.b16 %v258
      %v465 = vunpack.c.l.b16 %v259
      %v466 = vunpack.c.l.b16 %v260
      %v467 = vunpack.c.l.b16 %v261
      %v468 = vunpack.c.l.b16 %v262
      %v469 = vunpack.c.l.b16 %v263
      %v470 = vunpack.c.l.b16 %v264
      %v471 = vunpack.c.l.b16 %v265
      %v472 = vunpack.c.l.b16 %v266
      %v473 = vunpack.c.l.b16 %v267
      %v474 = vunpack.c.l.b16 %v268
      %v475 = vunpack.c.l.b16 %v269
      %v476 = vunpack.c.l.b16 %v270
      %v477 = vunpack.c.l.b16 %v271
      %v478 = vunpack.c.l.b16 %v272
      %v479 = vunpack.c.l.b16 %v273
      %v480 = vpack.c.b16 %v381, %v380
      %v481 = vpack.c.b16 %v383, %v382
      %v482 = vpack.c.b16 %v385, %v384
      %v483 = vpack.c.b16 %v387, %v386
      %v484 = vpack.c.b16 %v389, %v388
      %v485 = vpack.c.b16 %v391, %v390
      %v486 = vpack.c.b16 %v393, %v392
      %v487 = vpack.c.b16 %v395, %v394
      %v488 = vpack.c.b16 %v397, %v396
      %v489 = vpack.c.b16 %v399, %v398
      %v490 = vpack.c.b16 %v401, %v400
      %v491 = vpack.c.b16 %v403, %v402
      %v492 = vpack.c.b16 %v405, %v404
      %v493 = vpack.c.b16 %v407, %v406
      %v494 = vpack.c.b16 %v409, %v408
      %v495 = vpack.c.b16 %v411, %v410
      %v496 = vpack.c.b16 %v413, %v412
      %v497 = vpack.c.b16 %v415, %v414
      %v498 = vpack.c.b16 %v417, %v416
      %v499 = vpack.c.b16 %v419, %v418
      %v500 = vpack.c.b16 %v421, %v420
      %v501 = vpack.c.b16 %v423, %v422
      %v502 = vpack.c.b16 %v425, %v424
      %v503 = vpack.c.b16 %v427, %v426
      %v504 = vpack.c.b16 %v429, %v428
      %v505 = vpack.c.b16 %v431, %v430
      %v506 = vpack.c.b16 %v433, %v432
      %v507 = vpack.c.b16 %v435, %v434
      %v508 = vpack.c.b16 %v437, %v436
      %v509 = vpack.c.b16 %v439, %v438
      %v510 = vpack.c.b16 %v441, %v440
      %v511 = vpack.c.b16 %v443, %v442
      %v512 = vpack.c.b16 %v445, %v444
      %v513 = vpack.c.b16 %v447, %v446
      %v514 = vpack.c.b16 %v449, %v448
      %v515 = vpack.c.b16 %v451, %v450
      %v516 = vpack.c.b16 %v453, %v452
      %v517 = vpack.c.b16 %v455, %v454
      %v518 = vpack.c.b16 %v457, %v456
      %v519 = vpack.c.b16 %v459, %v458
      %v520 = vpack.c.b16 %v461, %v460
      %v521 = vpack.c.b16 %v463, %v462
      %v522 = vpack.c.b16 %v465, %v464
      %v523 = vpack.c.b16 %v467, %v466
      %v524 = vpack.c.b16 %v469, %v468
      %v525 = vpack.c.b16 %v471, %v470
      %v526 = vpack.c.b16 %v473, %v472
      %v527 = vpack.c.b16 %v475, %v474
      %v528 = vpack.c.b16 %v477, %v476
      %v529 = vpack.c.b16 %v479, %v478
      %v532 = vunpack.c.l.b16 %v274
      %v533 = vunpack.c.l.b16 %v275
      %v534 = vpack.c.b16 %v533, %v532
      %vm536 = vcmask 130048
      %v538 = vsel %vm536, %v480, 0
      %v541 = vsel %vm536, %v481, 0
      %v544 = vsel %vm536, %v482, 0
      %v547 = vsel %vm536, %v483, 0
      %v550 = vsel %vm536, %v484, 0
      %v553 = vsel %vm536, %v485, 0
      %v556 = vsel %vm536, %v486, 0
      %v559 = vsel %vm536, %v487, 0
      %v562 = vsel %vm536, %v488, 0
      %v565 = vsel %vm536, %v489, 0
      %v568 = vsel %vm536, %v490, 0
      %v571 = vsel %vm536, %v491, 0
      %v574 = vsel %vm536, %v492, 0
      %v577 = vsel %vm536, %v493, 0
      %v580 = vsel %vm536, %v494, 0
      %v583 = vsel %vm536, %v495, 0
      %v586 = vsel %vm536, %v496, 0
      %v589 = vsel %vm536, %v497, 0
      %v592 = vsel %vm536, %v498, 0
      %v595 = vsel %vm536, %v499, 0
      %v598 = vsel %vm536, %v500, 0
      %v601 = vsel %vm536, %v501, 0
      %v604 = vsel %vm536, %v502, 0
      %v607 = vsel %vm536, %v503, 0
      %v610 = vsel %vm536, %v504, 0
      %v613 = vsel %vm536, %v505, 0
      %v616 = vsel %vm536, %v506, 0
      %v619 = vsel %vm536, %v507, 0
      %v622 = vsel %vm536, %v508, 0
      %v625 = vsel %vm536, %v509, 0
      %v628 = vsel %vm536, %v510, 0
      %v631 = vsel %vm536, %v511, 0
      %v634 = vsel %vm536, %v512, 0
      %v637 = vsel %vm536, %v513, 0
      %v640 = vsel %vm536, %v514, 0
      %v643 = vsel %vm536, %v515, 0
      %v646 = vsel %vm536, %v516, 0
      %v649 = vsel %vm536, %v517, 0
      %v652 = vsel %vm536, %v518, 0
      %v655 = vsel %vm536, %v519, 0
      %v658 = vsel %vm536, %v520, 0
      %v661 = vsel %vm536, %v521, 0
      %v664 = vsel %vm536, %v522, 0
      %v667 = vsel %vm536, %v523, 0
      %v670 = vsel %vm536, %v524, 0
      %v673 = vsel %vm536, %v525, 0
      %v676 = vsel %vm536, %v526, 0
      %v679 = vsel %vm536, %v527, 0
      %v682 = vsel %vm536, %v528, 0
      %v685 = vsel %vm536, %v529, 0
      %687 = vmatpush.bf16.msra.mxu0 0
      %688 = vmatpush.bf16.msra.mxu0 0
      %689 = vmatpush.bf16.msra.mxu0 0
      %690 = vmatpush.bf16.msra.mxu0 0
      %691 = vmatpush.bf16.msra.mxu0 0
      %692 = vmatpush.bf16.msra.mxu0 0
      %693 = vmatpush.bf16.msra.mxu0 0
      %694 = vmatpush.bf16.msra.mxu0 %v534
      %695 = vmatmul.bf16.gmra.mxu0 %v538
      %v696 = vpop.f32.mrf.mxu0
      %v697 = vadd.f32 %v278, %v696
      %v698 = vpop.f32.mrf.mxu0
      %v699 = vadd.f32 %v278, %v698
      %700 = vmatmul.bf16.gmra.mxu0 %v541
      %v701 = vpop.f32.mrf.mxu0
      %v702 = vadd.f32 %v278, %v701
      %v703 = vpop.f32.mrf.mxu0
      %v704 = vadd.f32 %v278, %v703
      %705 = vmatmul.bf16.gmra.mxu0 %v544
      %v706 = vpop.f32.mrf.mxu0
      %v707 = vadd.f32 %v278, %v706
      %v708 = vpop.f32.mrf.mxu0
      %v709 = vadd.f32 %v278, %v708
      %710 = vmatmul.bf16.gmra.mxu0 %v547
      %v711 = vpop.f32.mrf.mxu0
      %v712 = vadd.f32 %v278, %v711
      %v713 = vpop.f32.mrf.mxu0
      %v714 = vadd.f32 %v278, %v713
      %715 = vmatmul.bf16.gmra.mxu0 %v550
      %v716 = vpop.f32.mrf.mxu0
      %v717 = vadd.f32 %v278, %v716
      %v718 = vpop.f32.mrf.mxu0
      %v719 = vadd.f32 %v278, %v718
      %720 = vmatmul.bf16.gmra.mxu0 %v553
      %v721 = vpop.f32.mrf.mxu0
      %v722 = vadd.f32 %v278, %v721
      %v723 = vpop.f32.mrf.mxu0
      %v724 = vadd.f32 %v278, %v723
      %725 = vmatmul.bf16.gmra.mxu0 %v556
      %v726 = vpop.f32.mrf.mxu0
      %v727 = vadd.f32 %v278, %v726
      %v728 = vpop.f32.mrf.mxu0
      %v729 = vadd.f32 %v278, %v728
      %730 = vmatmul.bf16.gmra.mxu0 %v559
      %v731 = vpop.f32.mrf.mxu0
      %v732 = vadd.f32 %v278, %v731
      %v733 = vpop.f32.mrf.mxu0
      %v734 = vadd.f32 %v278, %v733
      %735 = vmatmul.bf16.gmra.mxu0 %v562
      %v736 = vpop.f32.mrf.mxu0
      %v737 = vadd.f32 %v278, %v736
      %v738 = vpop.f32.mrf.mxu0
      %v739 = vadd.f32 %v278, %v738
      %740 = vmatmul.bf16.gmra.mxu0 %v565
      %v741 = vpop.f32.mrf.mxu0
      %v742 = vadd.f32 %v278, %v741
      %v743 = vpop.f32.mrf.mxu0
      %v744 = vadd.f32 %v278, %v743
      %745 = vmatmul.bf16.gmra.mxu0 %v568
      %v746 = vpop.f32.mrf.mxu0
      %v747 = vadd.f32 %v278, %v746
      %v748 = vpop.f32.mrf.mxu0
      %v749 = vadd.f32 %v278, %v748
      %750 = vmatmul.bf16.gmra.mxu0 %v571
      %v751 = vpop.f32.mrf.mxu0
      %v752 = vadd.f32 %v278, %v751
      %v753 = vpop.f32.mrf.mxu0
      %v754 = vadd.f32 %v278, %v753
      %755 = vmatmul.bf16.gmra.mxu0 %v574
      %v756 = vpop.f32.mrf.mxu0
      %v757 = vadd.f32 %v278, %v756
      %v758 = vpop.f32.mrf.mxu0
      %v759 = vadd.f32 %v278, %v758
      %760 = vmatmul.bf16.gmra.mxu0 %v577
      %v761 = vpop.f32.mrf.mxu0
      %v762 = vadd.f32 %v278, %v761
      %v763 = vpop.f32.mrf.mxu0
      %v764 = vadd.f32 %v278, %v763
      %765 = vmatmul.bf16.gmra.mxu0 %v580
      %v766 = vpop.f32.mrf.mxu0
      %v767 = vadd.f32 %v278, %v766
      %v768 = vpop.f32.mrf.mxu0
      %v769 = vadd.f32 %v278, %v768
      %770 = vmatmul.bf16.gmra.mxu0 %v583
      %v771 = vpop.f32.mrf.mxu0
      %v772 = vadd.f32 %v278, %v771
      %v773 = vpop.f32.mrf.mxu0
      %v774 = vadd.f32 %v278, %v773
      %775 = vmatmul.bf16.gmra.mxu0 %v586
      %v776 = vpop.f32.mrf.mxu0
      %v777 = vadd.f32 %v278, %v776
      %v778 = vpop.f32.mrf.mxu0
      %v779 = vadd.f32 %v278, %v778
      %780 = vmatmul.bf16.gmra.mxu0 %v589
      %v781 = vpop.f32.mrf.mxu0
      %v782 = vadd.f32 %v278, %v781
      %v783 = vpop.f32.mrf.mxu0
      %v784 = vadd.f32 %v278, %v783
      %785 = vmatmul.bf16.gmra.mxu0 %v592
      %v786 = vpop.f32.mrf.mxu0
      %v787 = vadd.f32 %v278, %v786
      %v788 = vpop.f32.mrf.mxu0
      %v789 = vadd.f32 %v278, %v788
      %790 = vmatmul.bf16.gmra.mxu0 %v595
      %v791 = vpop.f32.mrf.mxu0
      %v792 = vadd.f32 %v278, %v791
      %v793 = vpop.f32.mrf.mxu0
      %v794 = vadd.f32 %v278, %v793
      %795 = vmatmul.bf16.gmra.mxu0 %v598
      %v796 = vpop.f32.mrf.mxu0
      %v797 = vadd.f32 %v278, %v796
      %v798 = vpop.f32.mrf.mxu0
      %v799 = vadd.f32 %v278, %v798
      %800 = vmatmul.bf16.gmra.mxu0 %v601
      %v801 = vpop.f32.mrf.mxu0
      %v802 = vadd.f32 %v278, %v801
      %v803 = vpop.f32.mrf.mxu0
      %v804 = vadd.f32 %v278, %v803
      %805 = vmatmul.bf16.gmra.mxu0 %v604
      %v806 = vpop.f32.mrf.mxu0
      %v807 = vadd.f32 %v278, %v806
      %v808 = vpop.f32.mrf.mxu0
      %v809 = vadd.f32 %v278, %v808
      %810 = vmatmul.bf16.gmra.mxu0 %v607
      %v811 = vpop.f32.mrf.mxu0
      %v812 = vadd.f32 %v278, %v811
      %v813 = vpop.f32.mrf.mxu0
      %v814 = vadd.f32 %v278, %v813
      %815 = vmatmul.bf16.gmra.mxu0 %v610
      %v816 = vpop.f32.mrf.mxu0
      %v817 = vadd.f32 %v278, %v816
      %v818 = vpop.f32.mrf.mxu0
      %v819 = vadd.f32 %v278, %v818
      %820 = vmatmul.bf16.gmra.mxu0 %v613
      %v821 = vpop.f32.mrf.mxu0
      %v822 = vadd.f32 %v278, %v821
      %v823 = vpop.f32.mrf.mxu0
      %v824 = vadd.f32 %v278, %v823
      %825 = vmatmul.bf16.gmra.mxu0 %v616
      %v826 = vpop.f32.mrf.mxu0
      %v827 = vadd.f32 %v278, %v826
      %v828 = vpop.f32.mrf.mxu0
      %v829 = vadd.f32 %v278, %v828
      %830 = vmatmul.bf16.gmra.mxu0 %v619
      %v831 = vpop.f32.mrf.mxu0
      %v832 = vadd.f32 %v278, %v831
      %v833 = vpop.f32.mrf.mxu0
      %v834 = vadd.f32 %v278, %v833
      %835 = vmatmul.bf16.gmra.mxu0 %v622
      %v836 = vpop.f32.mrf.mxu0
      %v837 = vadd.f32 %v278, %v836
      %v838 = vpop.f32.mrf.mxu0
      %v839 = vadd.f32 %v278, %v838
      %840 = vmatmul.bf16.gmra.mxu0 %v625
      %v841 = vpop.f32.mrf.mxu0
      %v842 = vadd.f32 %v278, %v841
      %v843 = vpop.f32.mrf.mxu0
      %v844 = vadd.f32 %v278, %v843
      %845 = vmatmul.bf16.gmra.mxu0 %v628
      %v846 = vpop.f32.mrf.mxu0
      %v847 = vadd.f32 %v278, %v846
      %v848 = vpop.f32.mrf.mxu0
      %v849 = vadd.f32 %v278, %v848
      %850 = vmatmul.bf16.gmra.mxu0 %v631
      %v851 = vpop.f32.mrf.mxu0
      %v852 = vadd.f32 %v278, %v851
      %v853 = vpop.f32.mrf.mxu0
      %v854 = vadd.f32 %v278, %v853
      %855 = vmatmul.bf16.gmra.mxu0 %v634
      %v856 = vpop.f32.mrf.mxu0
      %v857 = vadd.f32 %v278, %v856
      %v858 = vpop.f32.mrf.mxu0
      %v859 = vadd.f32 %v278, %v858
      %860 = vmatmul.bf16.gmra.mxu0 %v637
      %v861 = vpop.f32.mrf.mxu0
      %v862 = vadd.f32 %v278, %v861
      %v863 = vpop.f32.mrf.mxu0
      %v864 = vadd.f32 %v278, %v863
      %865 = vmatmul.bf16.gmra.mxu0 %v640
      %v866 = vpop.f32.mrf.mxu0
      %v867 = vadd.f32 %v278, %v866
      %v868 = vpop.f32.mrf.mxu0
      %v869 = vadd.f32 %v278, %v868
      %870 = vmatmul.bf16.gmra.mxu0 %v643
      %v871 = vpop.f32.mrf.mxu0
      %v872 = vadd.f32 %v278, %v871
      %v873 = vpop.f32.mrf.mxu0
      %v874 = vadd.f32 %v278, %v873
      %875 = vmatmul.bf16.gmra.mxu0 %v646
      %v876 = vpop.f32.mrf.mxu0
      %v877 = vadd.f32 %v278, %v876
      %v878 = vpop.f32.mrf.mxu0
      %v879 = vadd.f32 %v278, %v878
      %880 = vmatmul.bf16.gmra.mxu0 %v649
      %v881 = vpop.f32.mrf.mxu0
      %v882 = vadd.f32 %v278, %v881
      %v883 = vpop.f32.mrf.mxu0
      %v884 = vadd.f32 %v278, %v883
      %885 = vmatmul.bf16.gmra.mxu0 %v652
      %v886 = vpop.f32.mrf.mxu0
      %v887 = vadd.f32 %v278, %v886
      %v888 = vpop.f32.mrf.mxu0
      %v889 = vadd.f32 %v278, %v888
      %890 = vmatmul.bf16.gmra.mxu0 %v655
      %v891 = vpop.f32.mrf.mxu0
      %v892 = vadd.f32 %v278, %v891
      %v893 = vpop.f32.mrf.mxu0
      %v894 = vadd.f32 %v278, %v893
      %895 = vmatmul.bf16.gmra.mxu0 %v658
      %v896 = vpop.f32.mrf.mxu0
      %v897 = vadd.f32 %v278, %v896
      %v898 = vpop.f32.mrf.mxu0
      %v899 = vadd.f32 %v278, %v898
      %900 = vmatmul.bf16.gmra.mxu0 %v661
      %v901 = vpop.f32.mrf.mxu0
      %v902 = vadd.f32 %v278, %v901
      %v903 = vpop.f32.mrf.mxu0
      %v904 = vadd.f32 %v278, %v903
      %905 = vmatmul.bf16.gmra.mxu0 %v664
      %v906 = vpop.f32.mrf.mxu0
      %v907 = vadd.f32 %v278, %v906
      %v908 = vpop.f32.mrf.mxu0
      %v909 = vadd.f32 %v278, %v908
      %910 = vmatmul.bf16.gmra.mxu0 %v667
      %v911 = vpop.f32.mrf.mxu0
      %v912 = vadd.f32 %v278, %v911
      %v913 = vpop.f32.mrf.mxu0
      %v914 = vadd.f32 %v278, %v913
      %915 = vmatmul.bf16.gmra.mxu0 %v670
      %v916 = vpop.f32.mrf.mxu0
      %v917 = vadd.f32 %v278, %v916
      %v918 = vpop.f32.mrf.mxu0
      %v919 = vadd.f32 %v278, %v918
      %920 = vmatmul.bf16.gmra.mxu0 %v673
      %v921 = vpop.f32.mrf.mxu0
      %v922 = vadd.f32 %v278, %v921
      %v923 = vpop.f32.mrf.mxu0
      %v924 = vadd.f32 %v278, %v923
      %925 = vmatmul.bf16.gmra.mxu0 %v676
      %v926 = vpop.f32.mrf.mxu0
      %v927 = vadd.f32 %v278, %v926
      %v928 = vpop.f32.mrf.mxu0
      %v929 = vadd.f32 %v278, %v928
      %930 = vmatmul.bf16.gmra.mxu0 %v679
      %v931 = vpop.f32.mrf.mxu0
      %v932 = vadd.f32 %v278, %v931
      %v933 = vpop.f32.mrf.mxu0
      %v934 = vadd.f32 %v278, %v933
      %935 = vmatmul.bf16.gmra.mxu0 %v682
      %v936 = vpop.f32.mrf.mxu0
      %v937 = vadd.f32 %v278, %v936
      %v938 = vpop.f32.mrf.mxu0
      %v939 = vadd.f32 %v278, %v938
      %940 = vmatmul.bf16.gmra.mxu0 %v685
      %v941 = vpop.f32.mrf.mxu0
      %v942 = vadd.f32 %v278, %v941
      %v943 = vpop.f32.mrf.mxu0
      %v944 = vadd.f32 %v278, %v943
      %945 = vdwg.mxu0
      %v946 = vmax.f32 %v697, 0.0
      %v947 = vmax.f32 %v699, 0.0
      %v948 = vmax.f32 %v702, 0.0
      %v949 = vmax.f32 %v704, 0.0
      %v950 = vmax.f32 %v707, 0.0
      %v951 = vmax.f32 %v709, 0.0
      %v952 = vmax.f32 %v712, 0.0
      %v953 = vmax.f32 %v714, 0.0
      %v954 = vmax.f32 %v717, 0.0
      %v955 = vmax.f32 %v719, 0.0
      %v956 = vmax.f32 %v722, 0.0
      %v957 = vmax.f32 %v724, 0.0
      %v958 = vmax.f32 %v727, 0.0
      %v959 = vmax.f32 %v729, 0.0
      %v960 = vmax.f32 %v732, 0.0
      %v961 = vmax.f32 %v734, 0.0
      %v962 = vmax.f32 %v737, 0.0
      %v963 = vmax.f32 %v739, 0.0
      %v964 = vmax.f32 %v742, 0.0
      %v965 = vmax.f32 %v744, 0.0
      %v966 = vmax.f32 %v747, 0.0
      %v967 = vmax.f32 %v749, 0.0
      %v968 = vmax.f32 %v752, 0.0
      %v969 = vmax.f32 %v754, 0.0
      %v970 = vmax.f32 %v757, 0.0
      %v971 = vmax.f32 %v759, 0.0
      %v972 = vmax.f32 %v762, 0.0
      %v973 = vmax.f32 %v764, 0.0
      %v974 = vmax.f32 %v767, 0.0
      %v975 = vmax.f32 %v769, 0.0
      %v976 = vmax.f32 %v772, 0.0
      %v977 = vmax.f32 %v774, 0.0
      %v978 = vmax.f32 %v777, 0.0
      %v979 = vmax.f32 %v779, 0.0
      %v980 = vmax.f32 %v782, 0.0
      %v981 = vmax.f32 %v784, 0.0
      %v982 = vmax.f32 %v787, 0.0
      %v983 = vmax.f32 %v789, 0.0
      %v984 = vmax.f32 %v792, 0.0
      %v985 = vmax.f32 %v794, 0.0
      %v986 = vmax.f32 %v797, 0.0
      %v987 = vmax.f32 %v799, 0.0
      %v988 = vmax.f32 %v802, 0.0
      %v989 = vmax.f32 %v804, 0.0
      %v990 = vmax.f32 %v807, 0.0
      %v991 = vmax.f32 %v809, 0.0
      %v992 = vmax.f32 %v812, 0.0
      %v993 = vmax.f32 %v814, 0.0
      %v994 = vmax.f32 %v817, 0.0
      %v995 = vmax.f32 %v819, 0.0
      %v996 = vmax.f32 %v822, 0.0
      %v997 = vmax.f32 %v824, 0.0
      %v998 = vmax.f32 %v827, 0.0
      %v999 = vmax.f32 %v829, 0.0
      %v1000 = vmax.f32 %v832, 0.0
      %v1001 = vmax.f32 %v834, 0.0
      %v1002 = vmax.f32 %v837, 0.0
      %v1003 = vmax.f32 %v839, 0.0
      %v1004 = vmax.f32 %v842, 0.0
      %v1005 = vmax.f32 %v844, 0.0
      %v1006 = vmax.f32 %v847, 0.0
      %v1007 = vmax.f32 %v849, 0.0
      %v1008 = vmax.f32 %v852, 0.0
      %v1009 = vmax.f32 %v854, 0.0
      %v1010 = vmax.f32 %v857, 0.0
      %v1011 = vmax.f32 %v859, 0.0
      %v1012 = vmax.f32 %v862, 0.0
      %v1013 = vmax.f32 %v864, 0.0
      %v1014 = vmax.f32 %v867, 0.0
      %v1015 = vmax.f32 %v869, 0.0
      %v1016 = vmax.f32 %v872, 0.0
      %v1017 = vmax.f32 %v874, 0.0
      %v1018 = vmax.f32 %v877, 0.0
      %v1019 = vmax.f32 %v879, 0.0
      %v1020 = vmax.f32 %v882, 0.0
      %v1021 = vmax.f32 %v884, 0.0
      %v1022 = vmax.f32 %v887, 0.0
      %v1023 = vmax.f32 %v889, 0.0
      %v1024 = vmax.f32 %v892, 0.0
      %v1025 = vmax.f32 %v894, 0.0
      %v1026 = vmax.f32 %v897, 0.0
      %v1027 = vmax.f32 %v899, 0.0
      %v1028 = vmax.f32 %v902, 0.0
      %v1029 = vmax.f32 %v904, 0.0
      %v1030 = vmax.f32 %v907, 0.0
      %v1031 = vmax.f32 %v909, 0.0
      %v1032 = vmax.f32 %v912, 0.0
      %v1033 = vmax.f32 %v914, 0.0
      %v1034 = vmax.f32 %v917, 0.0
      %v1035 = vmax.f32 %v919, 0.0
      %v1036 = vmax.f32 %v922, 0.0
      %v1037 = vmax.f32 %v924, 0.0
      %v1038 = vmax.f32 %v927, 0.0
      %v1039 = vmax.f32 %v929, 0.0
      %v1040 = vmax.f32 %v932, 0.0
      %v1041 = vmax.f32 %v934, 0.0
      %v1042 = vmax.f32 %v937, 0.0
      %v1043 = vmax.f32 %v939, 0.0
      %v1044 = vmax.f32 %v942, 0.0
      %v1045 = vmax.f32 %v944, 0.0
      %v1046 = vmax.f32 %v946, %v971
      %v1047 = vmax.f32 %v947, %v972
      %v1048 = vmax.f32 %v948, %v973
      %v1049 = vmax.f32 %v949, %v974
      %v1050 = vmax.f32 %v950, %v975
      %v1051 = vmax.f32 %v951, %v976
      %v1052 = vmax.f32 %v952, %v977
      %v1053 = vmax.f32 %v953, %v978
      %v1054 = vmax.f32 %v954, %v979
      %v1055 = vmax.f32 %v955, %v980
      %v1056 = vmax.f32 %v956, %v981
      %v1057 = vmax.f32 %v957, %v982
      %v1058 = vmax.f32 %v958, %v983
      %v1059 = vmax.f32 %v959, %v984
      %v1060 = vmax.f32 %v960, %v985
      %v1061 = vmax.f32 %v961, %v986
      %v1062 = vmax.f32 %v962, %v987
      %v1063 = vmax.f32 %v963, %v988
      %v1064 = vmax.f32 %v964, %v989
      %v1065 = vmax.f32 %v965, %v990
      %v1066 = vmax.f32 %v966, %v991
      %v1067 = vmax.f32 %v967, %v992
      %v1068 = vmax.f32 %v968, %v993
      %v1069 = vmax.f32 %v969, %v994
      %v1070 = vmax.f32 %v970, %v995
      %v1071 = vmax.f32 %v996, %v1021
      %v1072 = vmax.f32 %v997, %v1022
      %v1073 = vmax.f32 %v998, %v1023
      %v1074 = vmax.f32 %v999, %v1024
      %v1075 = vmax.f32 %v1000, %v1025
      %v1076 = vmax.f32 %v1001, %v1026
      %v1077 = vmax.f32 %v1002, %v1027
      %v1078 = vmax.f32 %v1003, %v1028
      %v1079 = vmax.f32 %v1004, %v1029
      %v1080 = vmax.f32 %v1005, %v1030
      %v1081 = vmax.f32 %v1006, %v1031
      %v1082 = vmax.f32 %v1007, %v1032
      %v1083 = vmax.f32 %v1008, %v1033
      %v1084 = vmax.f32 %v1009, %v1034
      %v1085 = vmax.f32 %v1010, %v1035
      %v1086 = vmax.f32 %v1011, %v1036
      %v1087 = vmax.f32 %v1012, %v1037
      %v1088 = vmax.f32 %v1013, %v1038
      %v1089 = vmax.f32 %v1014, %v1039
      %v1090 = vmax.f32 %v1015, %v1040
      %v1091 = vmax.f32 %v1016, %v1041
      %v1092 = vmax.f32 %v1017, %v1042
      %v1093 = vmax.f32 %v1018, %v1043
      %v1094 = vmax.f32 %v1019, %v1044
      %v1095 = vmax.f32 %v1020, %v1045
      %v1096 = vmax.f32 %v1046, %v1071
      %v1097 = vmax.f32 %v1047, %v1072
      %v1098 = vmax.f32 %v1048, %v1073
      %v1099 = vmax.f32 %v1049, %v1074
      %v1100 = vmax.f32 %v1050, %v1075
      %v1101 = vmax.f32 %v1051, %v1076
      %v1102 = vmax.f32 %v1052, %v1077
      %v1103 = vmax.f32 %v1053, %v1078
      %v1104 = vmax.f32 %v1054, %v1079
      %v1105 = vmax.f32 %v1055, %v1080
      %v1106 = vmax.f32 %v1056, %v1081
      %v1107 = vmax.f32 %v1057, %v1082
      %v1108 = vmax.f32 %v1058, %v1083
      %v1109 = vmax.f32 %v1059, %v1084
      %v1110 = vmax.f32 %v1060, %v1085
      %v1111 = vmax.f32 %v1061, %v1086
      %v1112 = vmax.f32 %v1062, %v1087
      %v1113 = vmax.f32 %v1063, %v1088
      %v1114 = vmax.f32 %v1064, %v1089
      %v1115 = vmax.f32 %v1065, %v1090
      %v1116 = vmax.f32 %v1066, %v1091
      %v1117 = vmax.f32 %v1067, %v1092
      %v1118 = vmax.f32 %v1068, %v1093
      %v1119 = vmax.f32 %v1069, %v1094
      %v1120 = vmax.f32 %v1070, %v1095
      %v1121 = vpack.c.bf16 %v1096, %v1096
      %v1122 = vpack.c.bf16 %v1097, %v1097
      %v1123 = vpack.c.bf16 %v1098, %v1098
      %v1124 = vpack.c.bf16 %v1099, %v1099
      %v1125 = vpack.c.bf16 %v1100, %v1100
      %v1126 = vpack.c.bf16 %v1101, %v1101
      %v1127 = vpack.c.bf16 %v1102, %v1102
      %v1128 = vpack.c.bf16 %v1103, %v1103
      %v1129 = vpack.c.bf16 %v1104, %v1104
      %v1130 = vpack.c.bf16 %v1105, %v1105
      %v1131 = vpack.c.bf16 %v1106, %v1106
      %v1132 = vpack.c.bf16 %v1107, %v1107
      %v1133 = vpack.c.bf16 %v1108, %v1108
      %v1134 = vpack.c.bf16 %v1109, %v1109
      %v1135 = vpack.c.bf16 %v1110, %v1110
      %v1136 = vpack.c.bf16 %v1111, %v1111
      %v1137 = vpack.c.bf16 %v1112, %v1112
      %v1138 = vpack.c.bf16 %v1113, %v1113
      %v1139 = vpack.c.bf16 %v1114, %v1114
      %v1140 = vpack.c.bf16 %v1115, %v1115
      %v1141 = vpack.c.bf16 %v1116, %v1116
      %v1142 = vpack.c.bf16 %v1117, %v1117
      %v1143 = vpack.c.bf16 %v1118, %v1118
      %v1144 = vpack.c.bf16 %v1119, %v1119
      %v1145 = vpack.c.bf16 %v1120, %v1120
      %vm1146 = vcmask 257024
      %1147 = vst.msk [vmem:[%s172] sm:$0xf] %vm1146, %v1121
      %1148 = vst.msk [vmem:[%s172 + $0x4] sm:$0xf] %vm1146, %v1122
      %1149 = vst.msk [vmem:[%s172 + $0x8] sm:$0xf] %vm1146, %v1123
      %1150 = vst.msk [vmem:[%s172 + $0xc] sm:$0xf] %vm1146, %v1124
      %1151 = vst.msk [vmem:[%s172 + $0x10] sm:$0xf] %vm1146, %v1125
      %1152 = vst.msk [vmem:[%s172 + $0x14] sm:$0xf] %vm1146, %v1126
      %1153 = vst.msk [vmem:[%s172 + $0x18] sm:$0xf] %vm1146, %v1127
      %1154 = vst.msk [vmem:[%s172 + $0x1c] sm:$0xf] %vm1146, %v1128
      %1155 = vst.msk [vmem:[%s172 + $0x20] sm:$0xf] %vm1146, %v1129
      %1156 = vst.msk [vmem:[%s172 + $0x24] sm:$0xf] %vm1146, %v1130
      %1157 = vst.msk [vmem:[%s172 + $0x28] sm:$0xf] %vm1146, %v1131
      %1158 = vst.msk [vmem:[%s172 + $0x2c] sm:$0xf] %vm1146, %v1132
      %1159 = vst.msk [vmem:[%s172 + $0x30] sm:$0xf] %vm1146, %v1133
      %1160 = vst.msk [vmem:[%s172 + $0x34] sm:$0xf] %vm1146, %v1134
      %1161 = vst.msk [vmem:[%s172 + $0x38] sm:$0xf] %vm1146, %v1135
      %1162 = vst.msk [vmem:[%s172 + $0x3c] sm:$0xf] %vm1146, %v1136
      %1163 = vst.msk [vmem:[%s172 + $0x40] sm:$0xf] %vm1146, %v1137
      %1164 = vst.msk [vmem:[%s172 + $0x44] sm:$0xf] %vm1146, %v1138
      %1165 = vst.msk [vmem:[%s172 + $0x48] sm:$0xf] %vm1146, %v1139
      %1166 = vst.msk [vmem:[%s172 + $0x4c] sm:$0xf] %vm1146, %v1140
      %1167 = vst.msk [vmem:[%s172 + $0x50] sm:$0xf] %vm1146, %v1141
      %1168 = vst.msk [vmem:[%s172 + $0x54] sm:$0xf] %vm1146, %v1142
      %1169 = vst.msk [vmem:[%s172 + $0x58] sm:$0xf] %vm1146, %v1143
      %1170 = vst.msk [vmem:[%s172 + $0x5c] sm:$0xf] %vm1146, %v1144
      %vm1171 = vcmask 254976
      %1172 = vst.msk [vmem:[%s172 + $0x60] sm:$0x3] %vm1171, %v1145
      %p1173 = scmp.lt.s32.totalorder %s14, 1
      %s1174 = scalar_select %p1173, %s14, 1
      %s1175 = smul.addr %s1174, 25
      %s1176 = smul.addr %s1175, 4
      %s1177 = scalar_lea.vmem %s3, %s1176
      // Predicated region
      $region33: #{cnn_forward.3} parent=31 // pred_check
        %p1178 = pneg %p100
      $region34: #{cnn_forward.3} parent=31 // pred_check_branch
        %1180 = sbr.rel (%p1178) target = $region36
      $region35: #{cnn_forward.3} parent=31 // pred_region
        _
      $region36: #{cnn_forward.3} parent=31 // pred_fallthru
        _
    $region32: #{cnn_forward.3} parent=5 // pred_fallthru
      _
    %p1181 = scmp.le.s32.totalorder 2, %s9
    // Predicated region
    $region37: #{cnn_forward.3} parent=5 // pred_check
      %p1182 = pneg %p1181
    $region38: #{cnn_forward.3} parent=5 // pred_check_branch
      %1184 = sbr.rel (%p1182) target = $region40
    $region39: #{cnn_forward.3} parent=5 // pred_region
      %s1185 = ssub.s32 %s9, 2
      // Predicated region
      $region41: #{cnn_forward.3} parent=39 // pred_check
        %p1186 = pneg %p106
      $region42: #{cnn_forward.3} parent=39 // pred_check_branch
        %1188 = sbr.rel (%p1186) target = $region44
      $region43: #{cnn_forward.3} parent=39 // pred_region
        %p1189 = scmp.lt.s32.totalorder %s15, 1
        %s1190 = scalar_select %p1189, %s15, 1
        %s1191 = smul.addr %s1190, 25
        %s1192 = smul.addr %s1191, 4
        %s1193 = scalar_lea.vmem %s3, %s1192
      $region44: #{cnn_forward.3} parent=39 // pred_fallthru
        _
    $region40: #{cnn_forward.3} parent=5 // pred_fallthru
      _
  $region6: #{cnn_forward.3} parent=0 // loop_footer
    %s13 = sadd.s32 1, %s9
  $region7: #{cnn_forward.3} parent=0 // loop_footer_branch
    %8 = sbr.rel target = $region3
  $region8: #{cnn_forward.3} parent=0 // loop_exit
    _

// kernel: cnn_forward.4
$region0: #{cnn_forward.4}
  #allocation0 [shape = 'u32[]', space=smem, size = 0x4, offset = 0x4, fixed_abs, tag = 'smem constant byte address 0x4 - core index']
  #allocation1 [shape = 'u32[72,128]{1,0:T(1,128)}', space=vmem, size = 0x9000, scoped, tag = 'internal scratch']
  %s0 = inlined_call_operand.vmem [shape: bf16[448,288], index: 0, kind: input, shape index: {}]
  %s1 = inlined_call_operand.vmem [shape: bf16[288,64], index: 1, kind: input, shape index: {}]
  %s2 = inlined_call_operand.vmem [shape: f32[1,64], index: 2, kind: input, shape index: {}]
  %s3 = inlined_call_operand.vmem [shape: bf16[2,49,64], index: 3, kind: output, shape index: {}]
  %s4 = sld [smem:[#allocation0]]
  $region45: #{cnn_forward.4} parent=0
    _
  %s6 = ssub.s32 1, %s4
  %s7 = scalar_select 0, %s6, %s4
  loop: start=0, step=1, limit=4
  $region2: #{cnn_forward.4} parent=0 // loop_pre_header
    _
  $region3: #{cnn_forward.4} parent=0 // loop_header
    %s9 = sphi 0, %s13
    %p10 = scmp.ge.s32.totalorder %s9, 4
    %s19 = sphi 0, %s21
    %s22 = sphi 0, %s19
    %s23 = sphi 0, %s22
    %s39 = sphi 0, %s23
    %s43 = sphi 0, %s43
    %s45 = sphi 0, %s43
    %s46 = sphi 0, %s45
    %s60 = sphi 0, %s46
    %s64 = sphi 0, %s64
    %s66 = sphi 0, %s64
    %s67 = sphi 0, %s66
    %s81 = sphi 0, %s67
    %s87 = sphi 0, %s89
    %s90 = sphi 0, %s87
    %s91 = sphi 0, %s90
    %s107 = sphi 0, %s91
  $region4: #{cnn_forward.4} parent=0 // loop_header_branch
    %12 = sbr.rel (%p10) target = $region8
  $region5: #{cnn_forward.4} parent=0 // loop_body
    %s14 = ssub.s32 %s9, 1
    %s15 = ssub.s32 %s9, 2
    %s16 = sadd.s32 %s9, 1
    %s17 = ssub.s32 %s9, %s16
    %p18 = scmp.eq.s32.totalorder %s17, 0
    %s20 = sadd.s32 %s19, 1
    %s21 = scalar_select %p18, %s19, %s20
    %p24 = pneg %p18
    %p25 = scmp.eq.s32.totalorder %s9, 1
    %p26 = por %p24, %p25
    %p27 = scmp.ne.s32.totalorder %s19, %s22
    %p28 = scmp.eq.s32.totalorder %s9, 0
    %p29 = por %p27, %p28
    %p30 = scmp.ne.s32.totalorder %s19, %s22
    %p31 = scmp.eq.s32.totalorder %s14, 1
    %p32 = por %p30, %p31
    %p33 = scmp.ne.s32.totalorder %s22, %s23
    %p34 = scmp.eq.s32.totalorder %s14, 0
    %p35 = por %p33, %p34
    %p36 = scmp.ne.s32.totalorder %s22, %s23
    %p37 = scmp.eq.s32.totalorder %s15, 1
    %p38 = por %p36, %p37
    %p40 = scmp.ne.s32.totalorder %s23, %s39
    %p41 = scmp.eq.s32.totalorder %s15, 0
    %p42 = por %p40, %p41
    %s44 = sadd.s32 %s43, 1
    %p47 = scmp.eq.s32.totalorder %s9, 1
    %p48 = scmp.ne.s32.totalorder %s43, %s45
    %p49 = scmp.eq.s32.totalorder %s9, 0
    %p50 = por %p48, %p49
    %p51 = scmp.ne.s32.totalorder %s43, %s45
    %p52 = scmp.eq.s32.totalorder %s14, 1
    %p53 = por %p51, %p52
    %p54 = scmp.ne.s32.totalorder %s45, %s46
    %p55 = scmp.eq.s32.totalorder %s14, 0
    %p56 = por %p54, %p55
    %p57 = scmp.ne.s32.totalorder %s45, %s46
    %p58 = scmp.eq.s32.totalorder %s15, 1
    %p59 = por %p57, %p58
    %p61 = scmp.ne.s32.totalorder %s46, %s60
    %p62 = scmp.eq.s32.totalorder %s15, 0
    %p63 = por %p61, %p62
    %s65 = sadd.s32 %s64, 1
    %p68 = scmp.eq.s32.totalorder %s9, 1
    %p69 = scmp.ne.s32.totalorder %s64, %s66
    %p70 = scmp.eq.s32.totalorder %s9, 0
    %p71 = por %p69, %p70
    %p72 = scmp.ne.s32.totalorder %s64, %s66
    %p73 = scmp.eq.s32.totalorder %s14, 1
    %p74 = por %p72, %p73
    %p75 = scmp.ne.s32.totalorder %s66, %s67
    %p76 = scmp.eq.s32.totalorder %s14, 0
    %p77 = por %p75, %p76
    %p78 = scmp.ne.s32.totalorder %s66, %s67
    %p79 = scmp.eq.s32.totalorder %s15, 1
    %p80 = por %p78, %p79
    %p82 = scmp.ne.s32.totalorder %s67, %s81
    %p83 = scmp.eq.s32.totalorder %s15, 0
    %p84 = por %p82, %p83
    %s85 = ssub.s32 %s9, %s16
    %p86 = scmp.eq.s32.totalorder %s85, 0
    %s88 = sadd.s32 %s87, 1
    %s89 = scalar_select %p86, %s87, %s88
    %p92 = pneg %p86
    %p93 = scmp.eq.s32.totalorder %s9, 1
    %p94 = por %p92, %p93
    %p95 = scmp.ne.s32.totalorder %s87, %s90
    %p96 = scmp.eq.s32.totalorder %s9, 0
    %p97 = por %p95, %p96
    %p98 = scmp.ne.s32.totalorder %s87, %s90
    %p99 = scmp.eq.s32.totalorder %s14, 1
    %p100 = por %p98, %p99
    %p101 = scmp.ne.s32.totalorder %s90, %s91
    %p102 = scmp.eq.s32.totalorder %s14, 0
    %p103 = por %p101, %p102
    %p104 = scmp.ne.s32.totalorder %s90, %s91
    %p105 = scmp.eq.s32.totalorder %s15, 1
    %p106 = por %p104, %p105
    %p108 = scmp.ne.s32.totalorder %s91, %s107
    %p109 = scmp.eq.s32.totalorder %s15, 0
    %p110 = por %p108, %p109
    %p111 = scmp.le.s32.totalorder 1, %s9
    %p112 = scmp.lt.s32.totalorder %s9, 3
    %p113 = pnand %p111, %p112
    %p114 = pneg %p113
    // Predicated region
    $region9: #{cnn_forward.4} parent=5 // pred_check
      _
    $region10: #{cnn_forward.4} parent=5 // pred_check_branch
      %116 = sbr.rel (%p113) target = $region12
    $region11: #{cnn_forward.4} parent=5 // pred_region
      %s117 = ssub.s32 %s9, 1
      // Predicated region
      $region13: #{cnn_forward.4} parent=11 // pred_check
        %p118 = pneg %p56
      $region14: #{cnn_forward.4} parent=11 // pred_check_branch
        %120 = sbr.rel (%p118) target = $region16
      $region15: #{cnn_forward.4} parent=11 // pred_region
        _
      $region16: #{cnn_forward.4} parent=11 // pred_fallthru
        _
      // Predicated region
      $region17: #{cnn_forward.4} parent=11 // pred_check
        %p121 = pneg %p77
      $region18: #{cnn_forward.4} parent=11 // pred_check_branch
        %123 = sbr.rel (%p121) target = $region20
      $region19: #{cnn_forward.4} parent=11 // pred_region
        _
      $region20: #{cnn_forward.4} parent=11 // pred_fallthru
        _
    $region12: #{cnn_forward.4} parent=5 // pred_fallthru
      _
    %p124 = scmp.lt.s32.totalorder %s9, 2
    // Predicated region
    $region21: #{cnn_forward.4} parent=5 // pred_check
      %p125 = pneg %p124
    $region22: #{cnn_forward.4} parent=5 // pred_check_branch
      %127 = sbr.rel (%p125) target = $region24
    $region23: #{cnn_forward.4} parent=5 // pred_region
      // Predicated region
      $region25: #{cnn_forward.4} parent=23 // pred_check
        %p128 = pneg %p29
      $region26: #{cnn_forward.4} parent=23 // pred_check_branch
        %130 = sbr.rel (%p128) target = $region28
      $region27: #{cnn_forward.4} parent=23 // pred_region
        %s131 = smul.u32 28, %s9
        %p132 = scmp.lt.s32.totalorder %s131, 55
        %s133 = scalar_select %p132, %s131, 55
        %s134 = smul.addr %s133, 3
        %s135 = smul.addr %s134, 4
        %s136 = scalar_lea.vmem %s0, %s135
        %s137 = smul.u32 28, %s9
      $region28: #{cnn_forward.4} parent=23 // pred_fallthru
        _
    $region24: #{cnn_forward.4} parent=5 // pred_fallthru
      _
    %p138 = scmp.le.s32.totalorder 1, %s9
    %p139 = scmp.lt.s32.totalorder %s9, 3
    %p140 = pnand %p138, %p139
    %p141 = pneg %p140
    // Predicated region
    $region29: #{cnn_forward.4} parent=5 // pred_check
      _
    $region30: #{cnn_forward.4} parent=5 // pred_check_branch
      %143 = sbr.rel (%p140) target = $region32
    $region31: #{cnn_forward.4} parent=5 // pred_region
      %s144 = ssub.s32 %s9, 1
      %s145 = smul.u32 28, %s14
      %p146 = scmp.lt.s32.totalorder %s145, 55
      %s147 = scalar_select %p146, %s145, 55
      %s148 = smul.addr %s147, 3
      %s149 = smul.addr %s148, 4
      %s150 = scalar_lea.vmem %s0, %s149
      %p151 = pneg %p35
      %p152 = pneg %p32
      %p153 = pneg %p56
      %p154 = pneg %p53
      %p155 = pneg %p77
      %p156 = pneg %p74
      %p157 = pneg %p103
      %p158 = pneg %p100
      %p159 = scmp.lt.s32.totalorder %s14, 1
      %s160 = scalar_select %p159, %s14, 1
      %s161 = smul.addr %s160, 7
      %s162 = smul.addr %s161, 4
      %s163 = scalar_lea.vmem %s3, %s162
      %s164 = smul.u32 28, %s14
      %p165 = scmp.lt.s32.totalorder %s164, 55
      %s166 = scalar_select %p165, %s164, 55
      %s167 = smul.addr %s166, 3
      %s168 = smul.addr %s167, 4
      %s169 = scalar_lea.vmem %s0, %s168
      %s170 = smul.u32 28, %s14
      %p171 = scmp.lt.s32.totalorder %s14, 1
      %s172 = scalar_select %p171, %s14, 1
      %s173 = smul.addr %s172, 7
      %s174 = smul.addr %s173, 4
      %s175 = scalar_lea.vmem %s3, %s174
      %v177 = vld [vmem:[%s169] sm:$0xff]
      %v178 = vld [vmem:[%s169 + $0x8] sm:$0xf]
      %v179 = vld [vmem:[%s169 + $0xc] sm:$0xff]
      %v180 = vld [vmem:[%s169 + $0x14] sm:$0xf]
      %v181 = vld [vmem:[%s169 + $0x18] sm:$0xff]
      %v182 = vld [vmem:[%s169 + $0x20] sm:$0xf]
      %v183 = vld [vmem:[%s169 + $0x24] sm:$0xff]
      %v184 = vld [vmem:[%s169 + $0x2c] sm:$0xf]
      %v185 = vld [vmem:[%s169 + $0x30] sm:$0xff]
      %v186 = vld [vmem:[%s169 + $0x38] sm:$0xf]
      %v187 = vld [vmem:[%s169 + $0x3c] sm:$0xff]
      %v188 = vld [vmem:[%s169 + $0x44] sm:$0xf]
      %v189 = vld [vmem:[%s169 + $0x48] sm:$0xff]
      %v190 = vld [vmem:[%s169 + $0x50] sm:$0xf]
      %v191 = vld [vmem:[%s169 + $0x54] sm:$0xff]
      %v192 = vld [vmem:[%s169 + $0x5c] sm:$0xf]
      %v193 = vld [vmem:[%s169 + $0x60] sm:$0xff]
      %v194 = vld [vmem:[%s169 + $0x68] sm:$0xf]
      %v195 = vld [vmem:[%s169 + $0x6c] sm:$0xff]
      %v196 = vld [vmem:[%s169 + $0x74] sm:$0xf]
      %v197 = vld [vmem:[%s169 + $0x78] sm:$0xff]
      %v198 = vld [vmem:[%s169 + $0x80] sm:$0xf]
      %v199 = vld [vmem:[%s169 + $0x84] sm:$0xff]
      %v200 = vld [vmem:[%s169 + $0x8c] sm:$0xf]
      %v201 = vld [vmem:[%s169 + $0x90] sm:$0xff]
      %v202 = vld [vmem:[%s169 + $0x98] sm:$0xf]
      %v203 = vld [vmem:[%s169 + $0x9c] sm:$0xff]
      %v204 = vld [vmem:[%s169 + $0xa4] sm:$0xf]
      %v205 = vld [vmem:[%s169 + $0xa8] sm:$0xff]
      %v206 = vld [vmem:[%s169 + $0xb0] sm:$0xf]
      %v207 = vld [vmem:[%s169 + $0xb4] sm:$0xff]
      %v208 = vld [vmem:[%s169 + $0xbc] sm:$0xf]
      %v209 = vld [vmem:[%s169 + $0xc0] sm:$0xff]
      %v210 = vld [vmem:[%s169 + $0xc8] sm:$0xf]
      %v211 = vld [vmem:[%s169 + $0xcc] sm:$0xff]
      %v212 = vld [vmem:[%s169 + $0xd4] sm:$0xf]
      %v213 = vld [vmem:[%s169 + $0xd8] sm:$0xff]
      %v214 = vld [vmem:[%s169 + $0xe0] sm:$0xf]
      %v215 = vld [vmem:[%s169 + $0xe4] sm:$0xff]
      %v216 = vld [vmem:[%s169 + $0xec] sm:$0xf]
      %v217 = vld [vmem:[%s169 + $0xf0] sm:$0xff]
      %v218 = vld [vmem:[%s169 + $0xf8] sm:$0xf]
      %v219 = vld [vmem:[%s169 + $0xfc] sm:$0xff]
      %v220 = vld [vmem:[%s169 + $0x104] sm:$0xf]
      %v221 = vld [vmem:[%s169 + $0x108] sm:$0xff]
      %v222 = vld [vmem:[%s169 + $0x110] sm:$0xf]
      %v223 = vld [vmem:[%s169 + $0x114] sm:$0xff]
      %v224 = vld [vmem:[%s169 + $0x11c] sm:$0xf]
      %v225 = vld [vmem:[%s169 + $0x120] sm:$0xff]
      %v226 = vld [vmem:[%s169 + $0x128] sm:$0xf]
      %v227 = vld [vmem:[%s169 + $0x12c] sm:$0xff]
      %v228 = vld [vmem:[%s169 + $0x134] sm:$0xf]
      %v229 = vld [vmem:[%s169 + $0x138] sm:$0xff]
      %v230 = vld [vmem:[%s169 + $0x140] sm:$0xf]
      %v231 = vld [vmem:[%s169 + $0x144] sm:$0xff]
      %v232 = vld [vmem:[%s169 + $0x14c] sm:$0xf]
      %v233 = vld [vmem:[%s1] sm:$0xf]
      %v234 = vld [vmem:[%s1 + $0x4] sm:$0xf]
      %v235 = vld [vmem:[%s1 + $0x8] sm:$0xf]
      %v236 = vld [vmem:[%s1 + $0xc] sm:$0xf]
      %v237 = vld [vmem:[%s1 + $0x10] sm:$0xf]
      %v238 = vld [vmem:[%s1 + $0x14] sm:$0xf]
      %v239 = vld [vmem:[%s1 + $0x18] sm:$0xf]
      %v240 = vld [vmem:[%s1 + $0x1c] sm:$0xf]
      %v241 = vld [vmem:[%s1 + $0x20] sm:$0xf]
      %v242 = vld [vmem:[%s1 + $0x24] sm:$0xf]
      %v243 = vld [vmem:[%s1 + $0x28] sm:$0xf]
      %v244 = vld [vmem:[%s1 + $0x2c] sm:$0xf]
      %v245 = vld [vmem:[%s1 + $0x30] sm:$0xf]
      %v246 = vld [vmem:[%s1 + $0x34] sm:$0xf]
      %v247 = vld [vmem:[%s1 + $0x38] sm:$0xf]
      %v248 = vld [vmem:[%s1 + $0x3c] sm:$0xf]
      %v249 = vld [vmem:[%s1 + $0x40] sm:$0xf]
      %v250 = vld [vmem:[%s1 + $0x44] sm:$0xf]
      %v251 = vld [vmem:[%s1 + $0x48] sm:$0xf]
      %v252 = vld [vmem:[%s1 + $0x4c] sm:$0xf]
      %v253 = vld [vmem:[%s1 + $0x50] sm:$0xf]
      %v254 = vld [vmem:[%s1 + $0x54] sm:$0xf]
      %v255 = vld [vmem:[%s1 + $0x58] sm:$0xf]
      %v256 = vld [vmem:[%s1 + $0x5c] sm:$0xf]
      %v257 = vld [vmem:[%s1 + $0x60] sm:$0xf]
      %v258 = vld [vmem:[%s1 + $0x64] sm:$0xf]
      %v259 = vld [vmem:[%s1 + $0x68] sm:$0xf]
      %v260 = vld [vmem:[%s1 + $0x6c] sm:$0xf]
      %v261 = vld [vmem:[%s1 + $0x70] sm:$0xf]
      %v262 = vld [vmem:[%s1 + $0x74] sm:$0xf]
      %v263 = vld [vmem:[%s1 + $0x78] sm:$0xf]
      %v264 = vld [vmem:[%s1 + $0x7c] sm:$0xf]
      %v265 = vld [vmem:[%s1 + $0x80] sm:$0xf]
      %v266 = vld [vmem:[%s1 + $0x84] sm:$0xf]
      %v267 = vld [vmem:[%s1 + $0x88] sm:$0xf]
      %v268 = vld [vmem:[%s1 + $0x8c] sm:$0xf]
      %v269 = vld [vmem:[%s2] sm:$0x1]
      %v271 = vperm.slane %v269, 0
      %v329 = vunpack.c.l.b16 %v177
      %v330 = vunpack.c.h.b16 %v177
      %v331 = vunpack.c.l.b16 %v178
      %v332 = vunpack.c.l.b16 %v179
      %v333 = vunpack.c.h.b16 %v179
      %v334 = vunpack.c.l.b16 %v180
      %v335 = vunpack.c.l.b16 %v181
      %v336 = vunpack.c.h.b16 %v181
      %v337 = vunpack.c.l.b16 %v182
      %v338 = vunpack.c.l.b16 %v183
      %v339 = vunpack.c.h.b16 %v183
      %v340 = vunpack.c.l.b16 %v184
      %v341 = vunpack.c.l.b16 %v185
      %v342 = vunpack.c.h.b16 %v185
      %v343 = vunpack.c.l.b16 %v186
      %v344 = vunpack.c.l.b16 %v187
      %v345 = vunpack.c.h.b16 %v187
      %v346 = vunpack.c.l.b16 %v188
      %v347 = vunpack.c.l.b16 %v189
      %v348 = vunpack.c.h.b16 %v189
      %v349 = vunpack.c.l.b16 %v190
      %v350 = vunpack.c.l.b16 %v191
      %v351 = vunpack.c.h.b16 %v191
      %v352 = vunpack.c.l.b16 %v192
      %v353 = vunpack.c.l.b16 %v193
      %v354 = vunpack.c.h.b16 %v193
      %v355 = vunpack.c.l.b16 %v194
      %v356 = vunpack.c.l.b16 %v195
      %v357 = vunpack.c.h.b16 %v195
      %v358 = vunpack.c.l.b16 %v196
      %v359 = vunpack.c.l.b16 %v197
      %v360 = vunpack.c.h.b16 %v197
      %v361 = vunpack.c.l.b16 %v198
      %v362 = vunpack.c.l.b16 %v199
      %v363 = vunpack.c.h.b16 %v199
      %v364 = vunpack.c.l.b16 %v200
      %v365 = vunpack.c.l.b16 %v201
      %v366 = vunpack.c.h.b16 %v201
      %v367 = vunpack.c.l.b16 %v202
      %v368 = vunpack.c.l.b16 %v203
      %v369 = vunpack.c.h.b16 %v203
      %v370 = vunpack.c.l.b16 %v204
      %v371 = vunpack.c.l.b16 %v205
      %v372 = vunpack.c.h.b16 %v205
      %v373 = vunpack.c.l.b16 %v206
      %v374 = vunpack.c.l.b16 %v207
      %v375 = vunpack.c.h.b16 %v207
      %v376 = vunpack.c.l.b16 %v208
      %v377 = vunpack.c.l.b16 %v209
      %v378 = vunpack.c.h.b16 %v209
      %v379 = vunpack.c.l.b16 %v210
      %v380 = vunpack.c.l.b16 %v211
      %v381 = vunpack.c.h.b16 %v211
      %v382 = vunpack.c.l.b16 %v212
      %v383 = vunpack.c.l.b16 %v213
      %v384 = vunpack.c.h.b16 %v213
      %v385 = vunpack.c.l.b16 %v214
      %v386 = vunpack.c.l.b16 %v215
      %v387 = vunpack.c.h.b16 %v215
      %v388 = vunpack.c.l.b16 %v216
      %v389 = vunpack.c.l.b16 %v217
      %v390 = vunpack.c.h.b16 %v217
      %v391 = vunpack.c.l.b16 %v218
      %v392 = vunpack.c.l.b16 %v219
      %v393 = vunpack.c.h.b16 %v219
      %v394 = vunpack.c.l.b16 %v220
      %v395 = vunpack.c.l.b16 %v221
      %v396 = vunpack.c.h.b16 %v221
      %v397 = vunpack.c.l.b16 %v222
      %v398 = vunpack.c.l.b16 %v223
      %v399 = vunpack.c.h.b16 %v223
      %v400 = vunpack.c.l.b16 %v224
      %v401 = vunpack.c.l.b16 %v225
      %v402 = vunpack.c.h.b16 %v225
      %v403 = vunpack.c.l.b16 %v226
      %v404 = vunpack.c.l.b16 %v227
      %v405 = vunpack.c.h.b16 %v227
      %v406 = vunpack.c.l.b16 %v228
      %v407 = vunpack.c.l.b16 %v229
      %v408 = vunpack.c.h.b16 %v229
      %v409 = vunpack.c.l.b16 %v230
      %v410 = vunpack.c.l.b16 %v231
      %v411 = vunpack.c.h.b16 %v231
      %v412 = vunpack.c.l.b16 %v232
      %v413 = vpack.c.b16 %v332, %v329
      %v414 = vpack.c.b16 %v333, %v330
      %v415 = vpack.c.b16 %v334, %v331
      %v416 = vpack.c.b16 %v338, %v335
      %v417 = vpack.c.b16 %v339, %v336
      %v418 = vpack.c.b16 %v340, %v337
      %v419 = vpack.c.b16 %v344, %v341
      %v420 = vpack.c.b16 %v345, %v342
      %v421 = vpack.c.b16 %v346, %v343
      %v422 = vpack.c.b16 %v350, %v347
      %v423 = vpack.c.b16 %v351, %v348
      %v424 = vpack.c.b16 %v352, %v349
      %v425 = vpack.c.b16 %v356, %v353
      %v426 = vpack.c.b16 %v357, %v354
      %v427 = vpack.c.b16 %v358, %v355
      %v428 = vpack.c.b16 %v362, %v359
      %v429 = vpack.c.b16 %v363, %v360
      %v430 = vpack.c.b16 %v364, %v361
      %v431 = vpack.c.b16 %v368, %v365
      %v432 = vpack.c.b16 %v369, %v366
      %v433 = vpack.c.b16 %v370, %v367
      %v434 = vpack.c.b16 %v374, %v371
      %v435 = vpack.c.b16 %v375, %v372
      %v436 = vpack.c.b16 %v376, %v373
      %v437 = vpack.c.b16 %v380, %v377
      %v438 = vpack.c.b16 %v381, %v378
      %v439 = vpack.c.b16 %v382, %v379
      %v440 = vpack.c.b16 %v386, %v383
      %v441 = vpack.c.b16 %v387, %v384
      %v442 = vpack.c.b16 %v388, %v385
      %v443 = vpack.c.b16 %v392, %v389
      %v444 = vpack.c.b16 %v393, %v390
      %v445 = vpack.c.b16 %v394, %v391
      %v446 = vpack.c.b16 %v398, %v395
      %v447 = vpack.c.b16 %v399, %v396
      %v448 = vpack.c.b16 %v400, %v397
      %v449 = vpack.c.b16 %v404, %v401
      %v450 = vpack.c.b16 %v405, %v402
      %v451 = vpack.c.b16 %v406, %v403
      %v452 = vpack.c.b16 %v410, %v407
      %v453 = vpack.c.b16 %v411, %v408
      %v454 = vpack.c.b16 %v412, %v409
      %v519 = vunpack.c.l.b16 %v233
      %v520 = vunpack.c.l.b16 %v234
      %v521 = vunpack.c.l.b16 %v235
      %v522 = vunpack.c.l.b16 %v236
      %v523 = vunpack.c.l.b16 %v237
      %v524 = vunpack.c.l.b16 %v238
      %v525 = vunpack.c.l.b16 %v239
      %v526 = vunpack.c.l.b16 %v240
      %v527 = vunpack.c.l.b16 %v241
      %v528 = vunpack.c.l.b16 %v242
      %v529 = vunpack.c.l.b16 %v243
      %v530 = vunpack.c.l.b16 %v244
      %v531 = vunpack.c.l.b16 %v245
      %v532 = vunpack.c.l.b16 %v246
      %v533 = vunpack.c.l.b16 %v247
      %v534 = vunpack.c.l.b16 %v248
      %v535 = vunpack.c.l.b16 %v249
      %v536 = vunpack.c.l.b16 %v250
      %v537 = vunpack.c.l.b16 %v251
      %v538 = vunpack.c.l.b16 %v252
      %v539 = vunpack.c.l.b16 %v253
      %v540 = vunpack.c.l.b16 %v254
      %v541 = vunpack.c.l.b16 %v255
      %v542 = vunpack.c.l.b16 %v256
      %v543 = vunpack.c.l.b16 %v257
      %v544 = vunpack.c.l.b16 %v258
      %v545 = vunpack.c.l.b16 %v259
      %v546 = vunpack.c.l.b16 %v260
      %v547 = vunpack.c.l.b16 %v261
      %v548 = vunpack.c.l.b16 %v262
      %v549 = vunpack.c.l.b16 %v263
      %v550 = vunpack.c.l.b16 %v264
      %v551 = vunpack.c.l.b16 %v265
      %v552 = vunpack.c.l.b16 %v266
      %v553 = vunpack.c.l.b16 %v267
      %v554 = vunpack.c.l.b16 %v268
      %v555 = vpack.c.b16 %v520, %v519
      %v556 = vpack.c.b16 %v522, %v521
      %v557 = vpack.c.b16 %v524, %v523
      %v558 = vpack.c.b16 %v526, %v525
      %v559 = vpack.c.b16 %v528, %v527
      %v560 = vpack.c.b16 %v530, %v529
      %v561 = vpack.c.b16 %v532, %v531
      %v562 = vpack.c.b16 %v534, %v533
      %v563 = vpack.c.b16 %v536, %v535
      %v564 = vpack.c.b16 %v538, %v537
      %v565 = vpack.c.b16 %v540, %v539
      %v566 = vpack.c.b16 %v542, %v541
      %v567 = vpack.c.b16 %v544, %v543
      %v568 = vpack.c.b16 %v546, %v545
      %v569 = vpack.c.b16 %v548, %v547
      %v570 = vpack.c.b16 %v550, %v549
      %v571 = vpack.c.b16 %v552, %v551
      %v572 = vpack.c.b16 %v554, %v553
      %vm591 = vcmask 261120
      %v593 = vsel %vm591, %v415, 0
      %v596 = vsel %vm591, %v418, 0
      %v599 = vsel %vm591, %v421, 0
      %v602 = vsel %vm591, %v424, 0
      %v605 = vsel %vm591, %v427, 0
      %v608 = vsel %vm591, %v430, 0
      %v611 = vsel %vm591, %v433, 0
      %v614 = vsel %vm591, %v436, 0
      %v617 = vsel %vm591, %v439, 0
      %v620 = vsel %vm591, %v442, 0
      %v623 = vsel %vm591, %v445, 0
      %v626 = vsel %vm591, %v448, 0
      %v629 = vsel %vm591, %v451, 0
      %v632 = vsel %vm591, %v454, 0
      %634 = vmatpush.bf16.msra.mxu0 %v562
      %635 = vmatpush.bf16.msra.mxu0 %v561
      %636 = vmatpush.bf16.msra.mxu0 %v560
      %637 = vmatpush.bf16.msra.mxu0 %v559
      %638 = vmatpush.bf16.msra.mxu0 %v558
      %639 = vmatpush.bf16.msra.mxu0 %v557
      %640 = vmatpush.bf16.msra.mxu0 %v556
      %641 = vmatpush.bf16.msra.mxu0 %v555
      %642 = vmatmul.bf16.gmra.mxu0 %v413
      %v643 = vpop.f32.mrf.mxu0
      %v644 = vadd.f32 %v271, %v643
      %v645 = vpop.f32.mrf.mxu0
      %v646 = vadd.f32 %v271, %v645
      %647 = vmatmul.bf16.gmra.mxu0 %v416
      %v648 = vpop.f32.mrf.mxu0
      %v649 = vadd.f32 %v271, %v648
      %v650 = vpop.f32.mrf.mxu0
      %v651 = vadd.f32 %v271, %v650
      %652 = vmatmul.bf16.gmra.mxu0 %v419
      %v653 = vpop.f32.mrf.mxu0
      %v654 = vadd.f32 %v271, %v653
      %v655 = vpop.f32.mrf.mxu0
      %v656 = vadd.f32 %v271, %v655
      %657 = vmatmul.bf16.gmra.mxu0 %v422
      %v658 = vpop.f32.mrf.mxu0
      %v659 = vadd.f32 %v271, %v658
      %v660 = vpop.f32.mrf.mxu0
      %v661 = vadd.f32 %v271, %v660
      %662 = vmatmul.bf16.gmra.mxu0 %v425
      %v663 = vpop.f32.mrf.mxu0
      %v664 = vadd.f32 %v271, %v663
      %v665 = vpop.f32.mrf.mxu0
      %v666 = vadd.f32 %v271, %v665
      %667 = vmatmul.bf16.gmra.mxu0 %v428
      %v668 = vpop.f32.mrf.mxu0
      %v669 = vadd.f32 %v271, %v668
      %v670 = vpop.f32.mrf.mxu0
      %v671 = vadd.f32 %v271, %v670
      %672 = vmatmul.bf16.gmra.mxu0 %v431
      %v673 = vpop.f32.mrf.mxu0
      %v674 = vadd.f32 %v271, %v673
      %v675 = vpop.f32.mrf.mxu0
      %v676 = vadd.f32 %v271, %v675
      %677 = vmatmul.bf16.gmra.mxu0 %v434
      %v678 = vpop.f32.mrf.mxu0
      %v679 = vadd.f32 %v271, %v678
      %v680 = vpop.f32.mrf.mxu0
      %v681 = vadd.f32 %v271, %v680
      %682 = vmatmul.bf16.gmra.mxu0 %v437
      %v683 = vpop.f32.mrf.mxu0
      %v684 = vadd.f32 %v271, %v683
      %v685 = vpop.f32.mrf.mxu0
      %v686 = vadd.f32 %v271, %v685
      %687 = vmatmul.bf16.gmra.mxu0 %v440
      %v688 = vpop.f32.mrf.mxu0
      %v689 = vadd.f32 %v271, %v688
      %v690 = vpop.f32.mrf.mxu0
      %v691 = vadd.f32 %v271, %v690
      %692 = vmatmul.bf16.gmra.mxu0 %v443
      %v693 = vpop.f32.mrf.mxu0
      %v694 = vadd.f32 %v271, %v693
      %v695 = vpop.f32.mrf.mxu0
      %v696 = vadd.f32 %v271, %v695
      %697 = vmatmul.bf16.gmra.mxu0 %v446
      %v698 = vpop.f32.mrf.mxu0
      %v699 = vadd.f32 %v271, %v698
      %v700 = vpop.f32.mrf.mxu0
      %v701 = vadd.f32 %v271, %v700
      %702 = vmatmul.bf16.gmra.mxu0 %v449
      %v703 = vpop.f32.mrf.mxu0
      %v704 = vadd.f32 %v271, %v703
      %v705 = vpop.f32.mrf.mxu0
      %v706 = vadd.f32 %v271, %v705
      %707 = vmatmul.bf16.gmra.mxu0 %v452
      %v708 = vpop.f32.mrf.mxu0
      %v709 = vadd.f32 %v271, %v708
      %v710 = vpop.f32.mrf.mxu0
      %v711 = vadd.f32 %v271, %v710
      %712 = vdwg.mxu0
      %713 = vmatpush.bf16.msra.mxu0 %v570
      %714 = vmatpush.bf16.msra.mxu0 %v569
      %715 = vmatpush.bf16.msra.mxu0 %v568
      %716 = vmatpush.bf16.msra.mxu0 %v567
      %717 = vmatpush.bf16.msra.mxu0 %v566
      %718 = vmatpush.bf16.msra.mxu0 %v565
      %719 = vmatpush.bf16.msra.mxu0 %v564
      %720 = vmatpush.bf16.msra.mxu0 %v563
      %721 = vmatmul.bf16.gmra.mxu0 %v414
      %v722 = vpop.f32.mrf.mxu0
      %v723 = vadd.f32 %v644, %v722
      %v724 = vpop.f32.mrf.mxu0
      %v725 = vadd.f32 %v646, %v724
      %726 = vmatmul.bf16.gmra.mxu0 %v417
      %v727 = vpop.f32.mrf.mxu0
      %v728 = vadd.f32 %v649, %v727
      %v729 = vpop.f32.mrf.mxu0
      %v730 = vadd.f32 %v651, %v729
      %731 = vmatmul.bf16.gmra.mxu0 %v420
      %v732 = vpop.f32.mrf.mxu0
      %v733 = vadd.f32 %v654, %v732
      %v734 = vpop.f32.mrf.mxu0
      %v735 = vadd.f32 %v656, %v734
      %736 = vmatmul.bf16.gmra.mxu0 %v423
      %v737 = vpop.f32.mrf.mxu0
      %v738 = vadd.f32 %v659, %v737
      %v739 = vpop.f32.mrf.mxu0
      %v740 = vadd.f32 %v661, %v739
      %741 = vmatmul.bf16.gmra.mxu0 %v426
      %v742 = vpop.f32.mrf.mxu0
      %v743 = vadd.f32 %v664, %v742
      %v744 = vpop.f32.mrf.mxu0
      %v745 = vadd.f32 %v666, %v744
      %746 = vmatmul.bf16.gmra.mxu0 %v429
      %v747 = vpop.f32.mrf.mxu0
      %v748 = vadd.f32 %v669, %v747
      %v749 = vpop.f32.mrf.mxu0
      %v750 = vadd.f32 %v671, %v749
      %751 = vmatmul.bf16.gmra.mxu0 %v432
      %v752 = vpop.f32.mrf.mxu0
      %v753 = vadd.f32 %v674, %v752
      %v754 = vpop.f32.mrf.mxu0
      %v755 = vadd.f32 %v676, %v754
      %756 = vmatmul.bf16.gmra.mxu0 %v435
      %v757 = vpop.f32.mrf.mxu0
      %v758 = vadd.f32 %v679, %v757
      %v759 = vpop.f32.mrf.mxu0
      %v760 = vadd.f32 %v681, %v759
      %761 = vmatmul.bf16.gmra.mxu0 %v438
      %v762 = vpop.f32.mrf.mxu0
      %v763 = vadd.f32 %v684, %v762
      %v764 = vpop.f32.mrf.mxu0
      %v765 = vadd.f32 %v686, %v764
      %766 = vmatmul.bf16.gmra.mxu0 %v441
      %v767 = vpop.f32.mrf.mxu0
      %v768 = vadd.f32 %v689, %v767
      %v769 = vpop.f32.mrf.mxu0
      %v770 = vadd.f32 %v691, %v769
      %771 = vmatmul.bf16.gmra.mxu0 %v444
      %v772 = vpop.f32.mrf.mxu0
      %v773 = vadd.f32 %v694, %v772
      %v774 = vpop.f32.mrf.mxu0
      %v775 = vadd.f32 %v696, %v774
      %776 = vmatmul.bf16.gmra.mxu0 %v447
      %v777 = vpop.f32.mrf.mxu0
      %v778 = vadd.f32 %v699, %v777
      %v779 = vpop.f32.mrf.mxu0
      %v780 = vadd.f32 %v701, %v779
      %781 = vmatmul.bf16.gmra.mxu0 %v450
      %v782 = vpop.f32.mrf.mxu0
      %v783 = vadd.f32 %v704, %v782
      %v784 = vpop.f32.mrf.mxu0
      %v785 = vadd.f32 %v706, %v784
      %786 = vmatmul.bf16.gmra.mxu0 %v453
      %v787 = vpop.f32.mrf.mxu0
      %v788 = vadd.f32 %v709, %v787
      %v789 = vpop.f32.mrf.mxu0
      %v790 = vadd.f32 %v711, %v789
      %791 = vdwg.mxu0
      %792 = vmatpush.bf16.msra.mxu0 0
      %793 = vmatpush.bf16.msra.mxu0 0
      %794 = vmatpush.bf16.msra.mxu0 0
      %795 = vmatpush.bf16.msra.mxu0 0
      %796 = vmatpush.bf16.msra.mxu0 0
      %797 = vmatpush.bf16.msra.mxu0 0
      %798 = vmatpush.bf16.msra.mxu0 %v572
      %799 = vmatpush.bf16.msra.mxu0 %v571
      %800 = vmatmul.bf16.gmra.mxu0 %v593
      %v801 = vpop.f32.mrf.mxu0
      %v802 = vadd.f32 %v723, %v801
      %v803 = vpop.f32.mrf.mxu0
      %v804 = vadd.f32 %v725, %v803
      %805 = vmatmul.bf16.gmra.mxu0 %v596
      %v806 = vpop.f32.mrf.mxu0
      %v807 = vadd.f32 %v728, %v806
      %v808 = vpop.f32.mrf.mxu0
      %v809 = vadd.f32 %v730, %v808
      %810 = vmatmul.bf16.gmra.mxu0 %v599
      %v811 = vpop.f32.mrf.mxu0
      %v812 = vadd.f32 %v733, %v811
      %v813 = vpop.f32.mrf.mxu0
      %v814 = vadd.f32 %v735, %v813
      %815 = vmatmul.bf16.gmra.mxu0 %v602
      %v816 = vpop.f32.mrf.mxu0
      %v817 = vadd.f32 %v738, %v816
      %v818 = vpop.f32.mrf.mxu0
      %v819 = vadd.f32 %v740, %v818
      %820 = vmatmul.bf16.gmra.mxu0 %v605
      %v821 = vpop.f32.mrf.mxu0
      %v822 = vadd.f32 %v743, %v821
      %v823 = vpop.f32.mrf.mxu0
      %v824 = vadd.f32 %v745, %v823
      %825 = vmatmul.bf16.gmra.mxu0 %v608
      %v826 = vpop.f32.mrf.mxu0
      %v827 = vadd.f32 %v748, %v826
      %v828 = vpop.f32.mrf.mxu0
      %v829 = vadd.f32 %v750, %v828
      %830 = vmatmul.bf16.gmra.mxu0 %v611
      %v831 = vpop.f32.mrf.mxu0
      %v832 = vadd.f32 %v753, %v831
      %v833 = vpop.f32.mrf.mxu0
      %v834 = vadd.f32 %v755, %v833
      %835 = vmatmul.bf16.gmra.mxu0 %v614
      %v836 = vpop.f32.mrf.mxu0
      %v837 = vadd.f32 %v758, %v836
      %v838 = vpop.f32.mrf.mxu0
      %v839 = vadd.f32 %v760, %v838
      %840 = vmatmul.bf16.gmra.mxu0 %v617
      %v841 = vpop.f32.mrf.mxu0
      %v842 = vadd.f32 %v763, %v841
      %v843 = vpop.f32.mrf.mxu0
      %v844 = vadd.f32 %v765, %v843
      %845 = vmatmul.bf16.gmra.mxu0 %v620
      %v846 = vpop.f32.mrf.mxu0
      %v847 = vadd.f32 %v768, %v846
      %v848 = vpop.f32.mrf.mxu0
      %v849 = vadd.f32 %v770, %v848
      %850 = vmatmul.bf16.gmra.mxu0 %v623
      %v851 = vpop.f32.mrf.mxu0
      %v852 = vadd.f32 %v773, %v851
      %v853 = vpop.f32.mrf.mxu0
      %v854 = vadd.f32 %v775, %v853
      %855 = vmatmul.bf16.gmra.mxu0 %v626
      %v856 = vpop.f32.mrf.mxu0
      %v857 = vadd.f32 %v778, %v856
      %v858 = vpop.f32.mrf.mxu0
      %v859 = vadd.f32 %v780, %v858
      %860 = vmatmul.bf16.gmra.mxu0 %v629
      %v861 = vpop.f32.mrf.mxu0
      %v862 = vadd.f32 %v783, %v861
      %v863 = vpop.f32.mrf.mxu0
      %v864 = vadd.f32 %v785, %v863
      %865 = vmatmul.bf16.gmra.mxu0 %v632
      %v866 = vpop.f32.mrf.mxu0
      %v867 = vadd.f32 %v788, %v866
      %v868 = vpop.f32.mrf.mxu0
      %v869 = vadd.f32 %v790, %v868
      %870 = vdwg.mxu0
      %v871 = vmax.f32 %v802, 0.0
      %v872 = vmax.f32 %v804, 0.0
      %v873 = vmax.f32 %v807, 0.0
      %v874 = vmax.f32 %v809, 0.0
      %v875 = vmax.f32 %v812, 0.0
      %v876 = vmax.f32 %v814, 0.0
      %v877 = vmax.f32 %v817, 0.0
      %v878 = vmax.f32 %v819, 0.0
      %v879 = vmax.f32 %v822, 0.0
      %v880 = vmax.f32 %v824, 0.0
      %v881 = vmax.f32 %v827, 0.0
      %v882 = vmax.f32 %v829, 0.0
      %v883 = vmax.f32 %v832, 0.0
      %v884 = vmax.f32 %v834, 0.0
      %v885 = vmax.f32 %v837, 0.0
      %v886 = vmax.f32 %v839, 0.0
      %v887 = vmax.f32 %v842, 0.0
      %v888 = vmax.f32 %v844, 0.0
      %v889 = vmax.f32 %v847, 0.0
      %v890 = vmax.f32 %v849, 0.0
      %v891 = vmax.f32 %v852, 0.0
      %v892 = vmax.f32 %v854, 0.0
      %v893 = vmax.f32 %v857, 0.0
      %v894 = vmax.f32 %v859, 0.0
      %v895 = vmax.f32 %v862, 0.0
      %v896 = vmax.f32 %v864, 0.0
      %v897 = vmax.f32 %v867, 0.0
      %v898 = vmax.f32 %v869, 0.0
      %v899 = vmax.f32 %v871, %v878
      %v900 = vmax.f32 %v872, %v879
      %v901 = vmax.f32 %v873, %v880
      %v902 = vmax.f32 %v874, %v881
      %v903 = vmax.f32 %v875, %v882
      %v904 = vmax.f32 %v876, %v883
      %v905 = vmax.f32 %v877, %v884
      %v906 = vmax.f32 %v885, %v892
      %v907 = vmax.f32 %v886, %v893
      %v908 = vmax.f32 %v887, %v894
      %v909 = vmax.f32 %v888, %v895
      %v910 = vmax.f32 %v889, %v896
      %v911 = vmax.f32 %v890, %v897
      %v912 = vmax.f32 %v891, %v898
      %v913 = vmax.f32 %v899, %v906
      %v914 = vmax.f32 %v900, %v907
      %v915 = vmax.f32 %v901, %v908
      %v916 = vmax.f32 %v902, %v909
      %v917 = vmax.f32 %v903, %v910
      %v918 = vmax.f32 %v904, %v911
      %v919 = vmax.f32 %v905, %v912
      %v920 = vpack.c.bf16 %v913, %v913
      %v921 = vpack.c.bf16 %v914, %v914
      %v922 = vpack.c.bf16 %v915, %v915
      %v923 = vpack.c.bf16 %v916, %v916
      %v924 = vpack.c.bf16 %v917, %v917
      %v925 = vpack.c.bf16 %v918, %v918
      %v926 = vpack.c.bf16 %v919, %v919
      %vm927 = vcmask 519168
      %928 = vst.msk [vmem:[%s175] sm:$0xf] %vm927, %v920
      %929 = vst.msk [vmem:[%s175 + $0x4] sm:$0xf] %vm927, %v921
      %930 = vst.msk [vmem:[%s175 + $0x8] sm:$0xf] %vm927, %v922
      %931 = vst.msk [vmem:[%s175 + $0xc] sm:$0xf] %vm927, %v923
      %932 = vst.msk [vmem:[%s175 + $0x10] sm:$0xf] %vm927, %v924
      %933 = vst.msk [vmem:[%s175 + $0x14] sm:$0xf] %vm927, %v925
      %vm934 = vcmask 516096
      %vm935 = vsmask.f32 256
      %vm936 = vmand %vm934, %vm935
      %v937 = vld [vmem:[%s175 + $0x18] sm:$0x1]
      %v938 = vsel %vm936, %v926, %v937
      %939 = vst [vmem:[%s175 + $0x18] sm:$0x1] %v938
      %p940 = scmp.lt.s32.totalorder %s14, 1
      %s941 = scalar_select %p940, %s14, 1
      %s942 = smul.addr %s941, 7
      %s943 = smul.addr %s942, 4
      %s944 = scalar_lea.vmem %s3, %s943
      // Predicated region
      $region33: #{cnn_forward.4} parent=31 // pred_check
        %p945 = pneg %p100
      $region34: #{cnn_forward.4} parent=31 // pred_check_branch
        %947 = sbr.rel (%p945) target = $region36
      $region35: #{cnn_forward.4} parent=31 // pred_region
        _
      $region36: #{cnn_forward.4} parent=31 // pred_fallthru
        _
    $region32: #{cnn_forward.4} parent=5 // pred_fallthru
      _
    %p948 = scmp.le.s32.totalorder 2, %s9
    // Predicated region
    $region37: #{cnn_forward.4} parent=5 // pred_check
      %p949 = pneg %p948
    $region38: #{cnn_forward.4} parent=5 // pred_check_branch
      %951 = sbr.rel (%p949) target = $region40
    $region39: #{cnn_forward.4} parent=5 // pred_region
      %s952 = ssub.s32 %s9, 2
      // Predicated region
      $region41: #{cnn_forward.4} parent=39 // pred_check
        %p953 = pneg %p106
      $region42: #{cnn_forward.4} parent=39 // pred_check_branch
        %955 = sbr.rel (%p953) target = $region44
      $region43: #{cnn_forward.4} parent=39 // pred_region
        %p956 = scmp.lt.s32.totalorder %s15, 1
        %s957 = scalar_select %p956, %s15, 1
        %s958 = smul.addr %s957, 7
        %s959 = smul.addr %s958, 4
        %s960 = scalar_lea.vmem %s3, %s959
      $region44: #{cnn_forward.4} parent=39 // pred_fallthru
        _
    $region40: #{cnn_forward.4} parent=5 // pred_fallthru
      _
  $region6: #{cnn_forward.4} parent=0 // loop_footer
    %s13 = sadd.s32 1, %s9
  $region7: #{cnn_forward.4} parent=0 // loop_footer_branch
    %8 = sbr.rel target = $region3
  $region8: #{cnn_forward.4} parent=0 // loop_exit
    _

// kernel: cnn_forward.5
$region0: #{cnn_forward.5}
  #allocation0 [shape = 'u32[]', space=smem, size = 0x4, offset = 0x4, fixed_abs, tag = 'smem constant byte address 0x4 - core index']
  #allocation1 [shape = 'u32[72,128]{1,0:T(1,128)}', space=vmem, size = 0x9000, scoped, tag = 'internal scratch']
  %s0 = inlined_call_operand.vmem [shape: bf16[2,1,3136], index: 0, kind: input, shape index: {}]
  %s1 = inlined_call_operand.vmem [shape: bf16[3136,128], index: 1, kind: input, shape index: {}]
  %s2 = inlined_call_operand.vmem [shape: f32[1,128], index: 2, kind: input, shape index: {}]
  %s3 = inlined_call_operand.vmem [shape: bf16[128,128], index: 3, kind: input, shape index: {}]
  %s4 = inlined_call_operand.vmem [shape: f32[1,128], index: 4, kind: input, shape index: {}]
  %s5 = inlined_call_operand.hbm [shape: f32[2,1,128], index: 5, kind: output, shape index: {}]
  %s6 = sld [smem:[#allocation0]]
  $region53: #{cnn_forward.5} parent=0
    _
  %s8 = ssub.s32 1, %s6
  %s9 = scalar_select 0, %s8, %s6
  $region1: #{cnn_forward.5} parent=0
    #allocation2 [shape = 'u8[1024]{0}', space=vmem, size = 0x400, scoped, tag = 'output window, operand 0']
    #allocation3 [shape = 's32[2]{0}', space=sflag, size = 0x8, scoped, tag = 'scoped memory for cnn_forward.5']
    %10 = vsyncpa [#allocation3], 0
    %s11 = scalar_lea.sflag [#allocation3], 1
    %12 = vsyncpa %s11, 0
    loop: start=0, step=1, limit=4
    $region2: #{cnn_forward.5} parent=1 // loop_pre_header
      _
    $region3: #{cnn_forward.5} parent=1 // loop_header
      %s14 = sphi 0, %s18
      %p15 = scmp.ge.s32.totalorder %s14, 4
      %s24 = sphi 0, %s26
      %s27 = sphi 0, %s24
      %s28 = sphi 0, %s27
      %s44 = sphi 0, %s28
      %s48 = sphi 0, %s48
      %s50 = sphi 0, %s48
      %s51 = sphi 0, %s50
      %s65 = sphi 0, %s51
      %s69 = sphi 0, %s69
      %s71 = sphi 0, %s69
      %s72 = sphi 0, %s71
      %s86 = sphi 0, %s72
      %s90 = sphi 0, %s90
      %s92 = sphi 0, %s90
      %s93 = sphi 0, %s92
      %s107 = sphi 0, %s93
      %s111 = sphi 0, %s111
      %s113 = sphi 0, %s111
      %s114 = sphi 0, %s113
      %s128 = sphi 0, %s114
      %s134 = sphi 0, %s136
      %s137 = sphi 0, %s134
      %s138 = sphi 0, %s137
      %s154 = sphi 0, %s138
    $region4: #{cnn_forward.5} parent=1 // loop_header_branch
      %17 = sbr.rel (%p15) target = $region8
    $region5: #{cnn_forward.5} parent=1 // loop_body
      %s19 = ssub.s32 %s14, 1
      %s20 = ssub.s32 %s14, 2
      %s21 = sadd.s32 %s14, 1
      %s22 = ssub.s32 %s14, %s21
      %p23 = scmp.eq.s32.totalorder %s22, 0
      %s25 = sadd.s32 %s24, 1
      %s26 = scalar_select %p23, %s24, %s25
      %p29 = pneg %p23
      %p30 = scmp.eq.s32.totalorder %s14, 1
      %p31 = por %p29, %p30
      %p32 = scmp.ne.s32.totalorder %s24, %s27
      %p33 = scmp.eq.s32.totalorder %s14, 0
      %p34 = por %p32, %p33
      %p35 = scmp.ne.s32.totalorder %s24, %s27
      %p36 = scmp.eq.s32.totalorder %s19, 1
      %p37 = por %p35, %p36
      %p38 = scmp.ne.s32.totalorder %s27, %s28
      %p39 = scmp.eq.s32.totalorder %s19, 0
      %p40 = por %p38, %p39
      %p41 = scmp.ne.s32.totalorder %s27, %s28
      %p42 = scmp.eq.s32.totalorder %s20, 1
      %p43 = por %p41, %p42
      %p45 = scmp.ne.s32.totalorder %s28, %s44
      %p46 = scmp.eq.s32.totalorder %s20, 0
      %p47 = por %p45, %p46
      %s49 = sadd.s32 %s48, 1
      %p52 = scmp.eq.s32.totalorder %s14, 1
      %p53 = scmp.ne.s32.totalorder %s48, %s50
      %p54 = scmp.eq.s32.totalorder %s14, 0
      %p55 = por %p53, %p54
      %p56 = scmp.ne.s32.totalorder %s48, %s50
      %p57 = scmp.eq.s32.totalorder %s19, 1
      %p58 = por %p56, %p57
      %p59 = scmp.ne.s32.totalorder %s50, %s51
      %p60 = scmp.eq.s32.totalorder %s19, 0
      %p61 = por %p59, %p60
      %p62 = scmp.ne.s32.totalorder %s50, %s51
      %p63 = scmp.eq.s32.totalorder %s20, 1
      %p64 = por %p62, %p63
      %p66 = scmp.ne.s32.totalorder %s51, %s65
      %p67 = scmp.eq.s32.totalorder %s20, 0
      %p68 = por %p66, %p67
      %s70 = sadd.s32 %s69, 1
      %p73 = scmp.eq.s32.totalorder %s14, 1
      %p74 = scmp.ne.s32.totalorder %s69, %s71
      %p75 = scmp.eq.s32.totalorder %s14, 0
      %p76 = por %p74, %p75
      %p77 = scmp.ne.s32.totalorder %s69, %s71
      %p78 = scmp.eq.s32.totalorder %s19, 1
      %p79 = por %p77, %p78
      %p80 = scmp.ne.s32.totalorder %s71, %s72
      %p81 = scmp.eq.s32.totalorder %s19, 0
      %p82 = por %p80, %p81
      %p83 = scmp.ne.s32.totalorder %s71, %s72
      %p84 = scmp.eq.s32.totalorder %s20, 1
      %p85 = por %p83, %p84
      %p87 = scmp.ne.s32.totalorder %s72, %s86
      %p88 = scmp.eq.s32.totalorder %s20, 0
      %p89 = por %p87, %p88
      %s91 = sadd.s32 %s90, 1
      %p94 = scmp.eq.s32.totalorder %s14, 1
      %p95 = scmp.ne.s32.totalorder %s90, %s92
      %p96 = scmp.eq.s32.totalorder %s14, 0
      %p97 = por %p95, %p96
      %p98 = scmp.ne.s32.totalorder %s90, %s92
      %p99 = scmp.eq.s32.totalorder %s19, 1
      %p100 = por %p98, %p99
      %p101 = scmp.ne.s32.totalorder %s92, %s93
      %p102 = scmp.eq.s32.totalorder %s19, 0
      %p103 = por %p101, %p102
      %p104 = scmp.ne.s32.totalorder %s92, %s93
      %p105 = scmp.eq.s32.totalorder %s20, 1
      %p106 = por %p104, %p105
      %p108 = scmp.ne.s32.totalorder %s93, %s107
      %p109 = scmp.eq.s32.totalorder %s20, 0
      %p110 = por %p108, %p109
      %s112 = sadd.s32 %s111, 1
      %p115 = scmp.eq.s32.totalorder %s14, 1
      %p116 = scmp.ne.s32.totalorder %s111, %s113
      %p117 = scmp.eq.s32.totalorder %s14, 0
      %p118 = por %p116, %p117
      %p119 = scmp.ne.s32.totalorder %s111, %s113
      %p120 = scmp.eq.s32.totalorder %s19, 1
      %p121 = por %p119, %p120
      %p122 = scmp.ne.s32.totalorder %s113, %s114
      %p123 = scmp.eq.s32.totalorder %s19, 0
      %p124 = por %p122, %p123
      %p125 = scmp.ne.s32.totalorder %s113, %s114
      %p126 = scmp.eq.s32.totalorder %s20, 1
      %p127 = por %p125, %p126
      %p129 = scmp.ne.s32.totalorder %s114, %s128
      %p130 = scmp.eq.s32.totalorder %s20, 0
      %p131 = por %p129, %p130
      %s132 = ssub.s32 %s14, %s21
      %p133 = scmp.eq.s32.totalorder %s132, 0
      %s135 = sadd.s32 %s134, 1
      %s136 = scalar_select %p133, %s134, %s135
      %p139 = pneg %p133
      %p140 = scmp.eq.s32.totalorder %s14, 1
      %p141 = por %p139, %p140
      %p142 = scmp.ne.s32.totalorder %s134, %s137
      %p143 = scmp.eq.s32.totalorder %s14, 0
      %p144 = por %p142, %p143
      %p145 = scmp.ne.s32.totalorder %s134, %s137
      %p146 = scmp.eq.s32.totalorder %s19, 1
      %p147 = por %p145, %p146
      %p148 = scmp.ne.s32.totalorder %s137, %s138
      %p149 = scmp.eq.s32.totalorder %s19, 0
      %p150 = por %p148, %p149
      %p151 = scmp.ne.s32.totalorder %s137, %s138
      %p152 = scmp.eq.s32.totalorder %s20, 1
      %p153 = por %p151, %p152
      %p155 = scmp.ne.s32.totalorder %s138, %s154
      %p156 = scmp.eq.s32.totalorder %s20, 0
      %p157 = por %p155, %p156
      %p158 = scmp.le.s32.totalorder 1, %s14
      %p159 = scmp.lt.s32.totalorder %s14, 3
      %p160 = pnand %p158, %p159
      %p161 = pneg %p160
      // Predicated region
      $region9: #{cnn_forward.5} parent=5 // pred_check
        _
      $region10: #{cnn_forward.5} parent=5 // pred_check_branch
        %163 = sbr.rel (%p160) target = $region12
      $region11: #{cnn_forward.5} parent=5 // pred_region
        %s164 = ssub.s32 %s14, 1
        // Predicated region
        $region13: #{cnn_forward.5} parent=11 // pred_check
          %p165 = pneg %p61
        $region14: #{cnn_forward.5} parent=11 // pred_check_branch
          %167 = sbr.rel (%p165) target = $region16
        $region15: #{cnn_forward.5} parent=11 // pred_region
          _
        $region16: #{cnn_forward.5} parent=11 // pred_fallthru
          _
        // Predicated region
        $region17: #{cnn_forward.5} parent=11 // pred_check
          %p168 = pneg %p82
        $region18: #{cnn_forward.5} parent=11 // pred_check_branch
          %170 = sbr.rel (%p168) target = $region20
        $region19: #{cnn_forward.5} parent=11 // pred_region
          _
        $region20: #{cnn_forward.5} parent=11 // pred_fallthru
          _
        // Predicated region
        $region21: #{cnn_forward.5} parent=11 // pred_check
          %p171 = pneg %p103
        $region22: #{cnn_forward.5} parent=11 // pred_check_branch
          %173 = sbr.rel (%p171) target = $region24
        $region23: #{cnn_forward.5} parent=11 // pred_region
          _
        $region24: #{cnn_forward.5} parent=11 // pred_fallthru
          _
        // Predicated region
        $region25: #{cnn_forward.5} parent=11 // pred_check
          %p174 = pneg %p124
        $region26: #{cnn_forward.5} parent=11 // pred_check_branch
          %176 = sbr.rel (%p174) target = $region28
        $region27: #{cnn_forward.5} parent=11 // pred_region
          _
        $region28: #{cnn_forward.5} parent=11 // pred_fallthru
          _
      $region12: #{cnn_forward.5} parent=5 // pred_fallthru
        _
      %p177 = scmp.lt.s32.totalorder %s14, 2
      // Predicated region
      $region29: #{cnn_forward.5} parent=5 // pred_check
        %p178 = pneg %p177
      $region30: #{cnn_forward.5} parent=5 // pred_check_branch
        %180 = sbr.rel (%p178) target = $region32
      $region31: #{cnn_forward.5} parent=5 // pred_region
        // Predicated region
        $region33: #{cnn_forward.5} parent=31 // pred_check
          %p181 = pneg %p34
        $region34: #{cnn_forward.5} parent=31 // pred_check_branch
          %183 = sbr.rel (%p181) target = $region36
        $region35: #{cnn_forward.5} parent=31 // pred_region
          %p184 = scmp.lt.s32.totalorder %s14, 1
          %s185 = scalar_select %p184, %s14, 1
          %s186 = smul.addr %s185, 25
          %s187 = scalar_lea.vmem %s0, %s186
        $region36: #{cnn_forward.5} parent=31 // pred_fallthru
          _
      $region32: #{cnn_forward.5} parent=5 // pred_fallthru
        _
      %p188 = scmp.le.s32.totalorder 1, %s14
      %p189 = scmp.lt.s32.totalorder %s14, 3
      %p190 = pnand %p188, %p189
      %p191 = pneg %p190
      // Predicated region
      $region37: #{cnn_forward.5} parent=5 // pred_check
        _
      $region38: #{cnn_forward.5} parent=5 // pred_check_branch
        %193 = sbr.rel (%p190) target = $region40
      $region39: #{cnn_forward.5} parent=5 // pred_region
        %s194 = ssub.s32 %s14, 1
        %p195 = scmp.lt.s32.totalorder %s19, 1
        %s196 = scalar_select %p195, %s19, 1
        %s197 = smul.addr %s196, 25
        %s198 = scalar_lea.vmem %s0, %s197
        %p199 = pneg %p40
        %p200 = pneg %p37
        %p201 = pneg %p61
        %p202 = pneg %p58
        %p203 = pneg %p82
        %p204 = pneg %p79
        %p205 = pneg %p103
        %p206 = pneg %p100
        %p207 = pneg %p124
        %p208 = pneg %p121
        %p209 = pneg %p150
        %p210 = pneg %p147
        %s211 = sand.u32 %s137, 1
        %s212 = scalar_lea.sflag [#allocation3], %s211
        %s213 = sand.u32 %s137, 1
        %s214 = scalar_lea.vmem [#allocation2], %s213
        %p215 = scmp.lt.s32.totalorder %s19, 1
        %s216 = scalar_select %p215, %s19, 1
        %s217 = smul.addr %s216, 25
        %s218 = scalar_lea.vmem %s0, %s217
        %v220 = vld [vmem:[%s218] sm:$0xff]
        %v221 = vld [vmem:[%s218 + $0x8] sm:$0xff]
        %v222 = vld [vmem:[%s218 + $0x10] sm:$0xff]
        %v223 = vld [vmem:[%s218 + $0x18] sm:$0x1]
        %v224 = vld [vmem:[%s1] sm:$0xf]
        %v225 = vld [vmem:[%s1 + $0x4] sm:$0xf]
        %v226 = vld [vmem:[%s1 + $0x8] sm:$0xf]
        %v227 = vld [vmem:[%s1 + $0xc] sm:$0xf]
        %v228 = vld [vmem:[%s1 + $0x10] sm:$0xf]
        %v229 = vld [vmem:[%s1 + $0x14] sm:$0xf]
        %v230 = vld [vmem:[%s1 + $0x18] sm:$0xf]
        %v231 = vld [vmem:[%s1 + $0x1c] sm:$0xf]
        %v232 = vld [vmem:[%s1 + $0x20] sm:$0xf]
        %v233 = vld [vmem:[%s1 + $0x24] sm:$0xf]
        %v234 = vld [vmem:[%s1 + $0x28] sm:$0xf]
        %v235 = vld [vmem:[%s1 + $0x2c] sm:$0xf]
        %v236 = vld [vmem:[%s1 + $0x30] sm:$0xf]
        %v237 = vld [vmem:[%s1 + $0x34] sm:$0xf]
        %v238 = vld [vmem:[%s1 + $0x38] sm:$0xf]
        %v239 = vld [vmem:[%s1 + $0x3c] sm:$0xf]
        %v240 = vld [vmem:[%s1 + $0x40] sm:$0xf]
        %v241 = vld [vmem:[%s1 + $0x44] sm:$0xf]
        %v242 = vld [vmem:[%s1 + $0x48] sm:$0xf]
        %v243 = vld [vmem:[%s1 + $0x4c] sm:$0xf]
        %v244 = vld [vmem:[%s1 + $0x50] sm:$0xf]
        %v245 = vld [vmem:[%s1 + $0x54] sm:$0xf]
        %v246 = vld [vmem:[%s1 + $0x58] sm:$0xf]
        %v247 = vld [vmem:[%s1 + $0x5c] sm:$0xf]
        %v248 = vld [vmem:[%s1 + $0x60] sm:$0xf]
        %v249 = vld [vmem:[%s1 + $0x64] sm:$0xf]
        %v250 = vld [vmem:[%s1 + $0x68] sm:$0xf]
        %v251 = vld [vmem:[%s1 + $0x6c] sm:$0xf]
        %v252 = vld [vmem:[%s1 + $0x70] sm:$0xf]
        %v253 = vld [vmem:[%s1 + $0x74] sm:$0xf]
        %v254 = vld [vmem:[%s1 + $0x78] sm:$0xf]
        %v255 = vld [vmem:[%s1 + $0x7c] sm:$0xf]
        %v256 = vld [vmem:[%s1 + $0x80] sm:$0xf]
        %v257 = vld [vmem:[%s1 + $0x84] sm:$0xf]
        %v258 = vld [vmem:[%s1 + $0x88] sm:$0xf]
        %v259 = vld [vmem:[%s1 + $0x8c] sm:$0xf]
        %v260 = vld [vmem:[%s1 + $0x90] sm:$0xf]
        %v261 = vld [vmem:[%s1 + $0x94] sm:$0xf]
        %v262 = vld [vmem:[%s1 + $0x98] sm:$0xf]
        %v263 = vld [vmem:[%s1 + $0x9c] sm:$0xf]
        %v264 = vld [vmem:[%s1 + $0xa0] sm:$0xf]
        %v265 = vld [vmem:[%s1 + $0xa4] sm:$0xf]
        %v266 = vld [vmem:[%s1 + $0xa8] sm:$0xf]
        %v267 = vld [vmem:[%s1 + $0xac] sm:$0xf]
        %v268 = vld [vmem:[%s1 + $0xb0] sm:$0xf]
        %v269 = vld [vmem:[%s1 + $0xb4] sm:$0xf]
        %v270 = vld [vmem:[%s1 + $0xb8] sm:$0xf]
        %v271 = vld [vmem:[%s1 + $0xbc] sm:$0xf]
        %v272 = vld [vmem:[%s1 + $0xc0] sm:$0xf]
        %v273 = vld [vmem:[%s1 + $0xc4] sm:$0xf]
        %v274 = vld [vmem:[%s1 + $0xc8] sm:$0xf]
        %v275 = vld [vmem:[%s1 + $0xcc] sm:$0xf]
        %v276 = vld [vmem:[%s1 + $0xd0] sm:$0xf]
        %v277 = vld [vmem:[%s1 + $0xd4] sm:$0xf]
        %v278 = vld [vmem:[%s1 + $0xd8] sm:$0xf]
        %v279 = vld [vmem:[%s1 + $0xdc] sm:$0xf]
        %v280 = vld [vmem:[%s1 + $0xe0] sm:$0xf]
        %v281 = vld [vmem:[%s1 + $0xe4] sm:$0xf]
        %v282 = vld [vmem:[%s1 + $0xe8] sm:$0xf]
        %v283 = vld [vmem:[%s1 + $0xec] sm:$0xf]
        %v284 = vld [vmem:[%s1 + $0xf0] sm:$0xf]
        %v285 = vld [vmem:[%s1 + $0xf4] sm:$0xf]
        %v286 = vld [vmem:[%s1 + $0xf8] sm:$0xf]
        %v287 = vld [vmem:[%s1 + $0xfc] sm:$0xf]
        %v288 = vld [vmem:[%s1 + $0x100] sm:$0xf]
        %v289 = vld [vmem:[%s1 + $0x104] sm:$0xf]
        %v290 = vld [vmem:[%s1 + $0x108] sm:$0xf]
        %v291 = vld [vmem:[%s1 + $0x10c] sm:$0xf]
        %v292 = vld [vmem:[%s1 + $0x110] sm:$0xf]
        %v293 = vld [vmem:[%s1 + $0x114] sm:$0xf]
        %v294 = vld [vmem:[%s1 + $0x118] sm:$0xf]
        %v295 = vld [vmem:[%s1 + $0x11c] sm:$0xf]
        %v296 = vld [vmem:[%s1 + $0x120] sm:$0xf]
        %v297 = vld [vmem:[%s1 + $0x124] sm:$0xf]
        %v298 = vld [vmem:[%s1 + $0x128] sm:$0xf]
        %v299 = vld [vmem:[%s1 + $0x12c] sm:$0xf]
        %v300 = vld [vmem:[%s1 + $0x130] sm:$0xf]
        %v301 = vld [vmem:[%s1 + $0x134] sm:$0xf]
        %v302 = vld [vmem:[%s1 + $0x138] sm:$0xf]
        %v303 = vld [vmem:[%s1 + $0x13c] sm:$0xf]
        %v304 = vld [vmem:[%s1 + $0x140] sm:$0xf]
        %v305 = vld [vmem:[%s1 + $0x144] sm:$0xf]
        %v306 = vld [vmem:[%s1 + $0x148] sm:$0xf]
        %v307 = vld [vmem:[%s1 + $0x14c] sm:$0xf]
        %v308 = vld [vmem:[%s1 + $0x150] sm:$0xf]
        %v309 = vld [vmem:[%s1 + $0x154] sm:$0xf]
        %v310 = vld [vmem:[%s1 + $0x158] sm:$0xf]
        %v311 = vld [vmem:[%s1 + $0x15c] sm:$0xf]
        %v312 = vld [vmem:[%s1 + $0x160] sm:$0xf]
        %v313 = vld [vmem:[%s1 + $0x164] sm:$0xf]
        %v314 = vld [vmem:[%s1 + $0x168] sm:$0xf]
        %v315 = vld [vmem:[%s1 + $0x16c] sm:$0xf]
        %v316 = vld [vmem:[%s1 + $0x170] sm:$0xf]
        %v317 = vld [vmem:[%s1 + $0x174] sm:$0xf]
        %v318 = vld [vmem:[%s1 + $0x178] sm:$0xf]
        %v319 = vld [vmem:[%s1 + $0x17c] sm:$0xf]
        %v320 = vld [vmem:[%s1 + $0x180] sm:$0xf]
        %v321 = vld [vmem:[%s1 + $0x184] sm:$0xf]
        %v322 = vld [vmem:[%s1 + $0x188] sm:$0xf]
        %v323 = vld [vmem:[%s1 + $0x18c] sm:$0xf]
        %v324 = vld [vmem:[%s1 + $0x190] sm:$0xf]
        %v325 = vld [vmem:[%s1 + $0x194] sm:$0xf]
        %v326 = vld [vmem:[%s1 + $0x198] sm:$0xf]
        %v327 = vld [vmem:[%s1 + $0x19c] sm:$0xf]
        %v328 = vld [vmem:[%s1 + $0x1a0] sm:$0xf]
        %v329 = vld [vmem:[%s1 + $0x1a4] sm:$0xf]
        %v330 = vld [vmem:[%s1 + $0x1a8] sm:$0xf]
        %v331 = vld [vmem:[%s1 + $0x1ac] sm:$0xf]
        %v332 = vld [vmem:[%s1 + $0x1b0] sm:$0xf]
        %v333 = vld [vmem:[%s1 + $0x1b4] sm:$0xf]
        %v334 = vld [vmem:[%s1 + $0x1b8] sm:$0xf]
        %v335 = vld [vmem:[%s1 + $0x1bc] sm:$0xf]
        %v336 = vld [vmem:[%s1 + $0x1c0] sm:$0xf]
        %v337 = vld [vmem:[%s1 + $0x1c4] sm:$0xf]
        %v338 = vld [vmem:[%s1 + $0x1c8] sm:$0xf]
        %v339 = vld [vmem:[%s1 + $0x1cc] sm:$0xf]
        %v340 = vld [vmem:[%s1 + $0x1d0] sm:$0xf]
        %v341 = vld [vmem:[%s1 + $0x1d4] sm:$0xf]
        %v342 = vld [vmem:[%s1 + $0x1d8] sm:$0xf]
        %v343 = vld [vmem:[%s1 + $0x1dc] sm:$0xf]
        %v344 = vld [vmem:[%s1 + $0x1e0] sm:$0xf]
        %v345 = vld [vmem:[%s1 + $0x1e4] sm:$0xf]
        %v346 = vld [vmem:[%s1 + $0x1e8] sm:$0xf]
        %v347 = vld [vmem:[%s1 + $0x1ec] sm:$0xf]
        %v348 = vld [vmem:[%s1 + $0x1f0] sm:$0xf]
        %v349 = vld [vmem:[%s1 + $0x1f4] sm:$0xf]
        %v350 = vld [vmem:[%s1 + $0x1f8] sm:$0xf]
        %v351 = vld [vmem:[%s1 + $0x1fc] sm:$0xf]
        %v352 = vld [vmem:[%s1 + $0x200] sm:$0xf]
        %v353 = vld [vmem:[%s1 + $0x204] sm:$0xf]
        %v354 = vld [vmem:[%s1 + $0x208] sm:$0xf]
        %v355 = vld [vmem:[%s1 + $0x20c] sm:$0xf]
        %v356 = vld [vmem:[%s1 + $0x210] sm:$0xf]
        %v357 = vld [vmem:[%s1 + $0x214] sm:$0xf]
        %v358 = vld [vmem:[%s1 + $0x218] sm:$0xf]
        %v359 = vld [vmem:[%s1 + $0x21c] sm:$0xf]
        %v360 = vld [vmem:[%s1 + $0x220] sm:$0xf]
        %v361 = vld [vmem:[%s1 + $0x224] sm:$0xf]
        %v362 = vld [vmem:[%s1 + $0x228] sm:$0xf]
        %v363 = vld [vmem:[%s1 + $0x22c] sm:$0xf]
        %v364 = vld [vmem:[%s1 + $0x230] sm:$0xf]
        %v365 = vld [vmem:[%s1 + $0x234] sm:$0xf]
        %v366 = vld [vmem:[%s1 + $0x238] sm:$0xf]
        %v367 = vld [vmem:[%s1 + $0x23c] sm:$0xf]
        %v368 = vld [vmem:[%s1 + $0x240] sm:$0xf]
        %v369 = vld [vmem:[%s1 + $0x244] sm:$0xf]
        %v370 = vld [vmem:[%s1 + $0x248] sm:$0xf]
        %v371 = vld [vmem:[%s1 + $0x24c] sm:$0xf]
        %v372 = vld [vmem:[%s1 + $0x250] sm:$0xf]
        %v373 = vld [vmem:[%s1 + $0x254] sm:$0xf]
        %v374 = vld [vmem:[%s1 + $0x258] sm:$0xf]
        %v375 = vld [vmem:[%s1 + $0x25c] sm:$0xf]
        %v376 = vld [vmem:[%s1 + $0x260] sm:$0xf]
        %v377 = vld [vmem:[%s1 + $0x264] sm:$0xf]
        %v378 = vld [vmem:[%s1 + $0x268] sm:$0xf]
        %v379 = vld [vmem:[%s1 + $0x26c] sm:$0xf]
        %v380 = vld [vmem:[%s1 + $0x270] sm:$0xf]
        %v381 = vld [vmem:[%s1 + $0x274] sm:$0xf]
        %v382 = vld [vmem:[%s1 + $0x278] sm:$0xf]
        %v383 = vld [vmem:[%s1 + $0x27c] sm:$0xf]
        %v384 = vld [vmem:[%s1 + $0x280] sm:$0xf]
        %v385 = vld [vmem:[%s1 + $0x284] sm:$0xf]
        %v386 = vld [vmem:[%s1 + $0x288] sm:$0xf]
        %v387 = vld [vmem:[%s1 + $0x28c] sm:$0xf]
        %v388 = vld [vmem:[%s1 + $0x290] sm:$0xf]
        %v389 = vld [vmem:[%s1 + $0x294] sm:$0xf]
        %v390 = vld [vmem:[%s1 + $0x298] sm:$0xf]
        %v391 = vld [vmem:[%s1 + $0x29c] sm:$0xf]
        %v392 = vld [vmem:[%s1 + $0x2a0] sm:$0xf]
        %v393 = vld [vmem:[%s1 + $0x2a4] sm:$0xf]
        %v394 = vld [vmem:[%s1 + $0x2a8] sm:$0xf]
        %v395 = vld [vmem:[%s1 + $0x2ac] sm:$0xf]
        %v396 = vld [vmem:[%s1 + $0x2b0] sm:$0xf]
        %v397 = vld [vmem:[%s1 + $0x2b4] sm:$0xf]
        %v398 = vld [vmem:[%s1 + $0x2b8] sm:$0xf]
        %v399 = vld [vmem:[%s1 + $0x2bc] sm:$0xf]
        %v400 = vld [vmem:[%s1 + $0x2c0] sm:$0xf]
        %v401 = vld [vmem:[%s1 + $0x2c4] sm:$0xf]
        %v402 = vld [vmem:[%s1 + $0x2c8] sm:$0xf]
        %v403 = vld [vmem:[%s1 + $0x2cc] sm:$0xf]
        %v404 = vld [vmem:[%s1 + $0x2d0] sm:$0xf]
        %v405 = vld [vmem:[%s1 + $0x2d4] sm:$0xf]
        %v406 = vld [vmem:[%s1 + $0x2d8] sm:$0xf]
        %v407 = vld [vmem:[%s1 + $0x2dc] sm:$0xf]
        %v408 = vld [vmem:[%s1 + $0x2e0] sm:$0xf]
        %v409 = vld [vmem:[%s1 + $0x2e4] sm:$0xf]
        %v410 = vld [vmem:[%s1 + $0x2e8] sm:$0xf]
        %v411 = vld [vmem:[%s1 + $0x2ec] sm:$0xf]
        %v412 = vld [vmem:[%s1 + $0x2f0] sm:$0xf]
        %v413 = vld [vmem:[%s1 + $0x2f4] sm:$0xf]
        %v414 = vld [vmem:[%s1 + $0x2f8] sm:$0xf]
        %v415 = vld [vmem:[%s1 + $0x2fc] sm:$0xf]
        %v416 = vld [vmem:[%s1 + $0x300] sm:$0xf]
        %v417 = vld [vmem:[%s1 + $0x304] sm:$0xf]
        %v418 = vld [vmem:[%s1 + $0x308] sm:$0xf]
        %v419 = vld [vmem:[%s1 + $0x30c] sm:$0xf]
        %v420 = vld [vmem:[%s1 + $0x310] sm:$0xf]
        %v421 = vld [vmem:[%s1 + $0x314] sm:$0xf]
        %v422 = vld [vmem:[%s1 + $0x318] sm:$0xf]
        %v423 = vld [vmem:[%s1 + $0x31c] sm:$0xf]
        %v424 = vld [vmem:[%s1 + $0x320] sm:$0xf]
        %v425 = vld [vmem:[%s1 + $0x324] sm:$0xf]
        %v426 = vld [vmem:[%s1 + $0x328] sm:$0xf]
        %v427 = vld [vmem:[%s1 + $0x32c] sm:$0xf]
        %v428 = vld [vmem:[%s1 + $0x330] sm:$0xf]
        %v429 = vld [vmem:[%s1 + $0x334] sm:$0xf]
        %v430 = vld [vmem:[%s1 + $0x338] sm:$0xf]
        %v431 = vld [vmem:[%s1 + $0x33c] sm:$0xf]
        %v432 = vld [vmem:[%s1 + $0x340] sm:$0xf]
        %v433 = vld [vmem:[%s1 + $0x344] sm:$0xf]
        %v434 = vld [vmem:[%s1 + $0x348] sm:$0xf]
        %v435 = vld [vmem:[%s1 + $0x34c] sm:$0xf]
        %v436 = vld [vmem:[%s1 + $0x350] sm:$0xf]
        %v437 = vld [vmem:[%s1 + $0x354] sm:$0xf]
        %v438 = vld [vmem:[%s1 + $0x358] sm:$0xf]
        %v439 = vld [vmem:[%s1 + $0x35c] sm:$0xf]
        %v440 = vld [vmem:[%s1 + $0x360] sm:$0xf]
        %v441 = vld [vmem:[%s1 + $0x364] sm:$0xf]
        %v442 = vld [vmem:[%s1 + $0x368] sm:$0xf]
        %v443 = vld [vmem:[%s1 + $0x36c] sm:$0xf]
        %v444 = vld [vmem:[%s1 + $0x370] sm:$0xf]
        %v445 = vld [vmem:[%s1 + $0x374] sm:$0xf]
        %v446 = vld [vmem:[%s1 + $0x378] sm:$0xf]
        %v447 = vld [vmem:[%s1 + $0x37c] sm:$0xf]
        %v448 = vld [vmem:[%s1 + $0x380] sm:$0xf]
        %v449 = vld [vmem:[%s1 + $0x384] sm:$0xf]
        %v450 = vld [vmem:[%s1 + $0x388] sm:$0xf]
        %v451 = vld [vmem:[%s1 + $0x38c] sm:$0xf]
        %v452 = vld [vmem:[%s1 + $0x390] sm:$0xf]
        %v453 = vld [vmem:[%s1 + $0x394] sm:$0xf]
        %v454 = vld [vmem:[%s1 + $0x398] sm:$0xf]
        %v455 = vld [vmem:[%s1 + $0x39c] sm:$0xf]
        %v456 = vld [vmem:[%s1 + $0x3a0] sm:$0xf]
        %v457 = vld [vmem:[%s1 + $0x3a4] sm:$0xf]
        %v458 = vld [vmem:[%s1 + $0x3a8] sm:$0xf]
        %v459 = vld [vmem:[%s1 + $0x3ac] sm:$0xf]
        %v460 = vld [vmem:[%s1 + $0x3b0] sm:$0xf]
        %v461 = vld [vmem:[%s1 + $0x3b4] sm:$0xf]
        %v462 = vld [vmem:[%s1 + $0x3b8] sm:$0xf]
        %v463 = vld [vmem:[%s1 + $0x3bc] sm:$0xf]
        %v464 = vld [vmem:[%s1 + $0x3c0] sm:$0xf]
        %v465 = vld [vmem:[%s1 + $0x3c4] sm:$0xf]
        %v466 = vld [vmem:[%s1 + $0x3c8] sm:$0xf]
        %v467 = vld [vmem:[%s1 + $0x3cc] sm:$0xf]
        %v468 = vld [vmem:[%s1 + $0x3d0] sm:$0xf]
        %v469 = vld [vmem:[%s1 + $0x3d4] sm:$0xf]
        %v470 = vld [vmem:[%s1 + $0x3d8] sm:$0xf]
        %v471 = vld [vmem:[%s1 + $0x3dc] sm:$0xf]
        %v472 = vld [vmem:[%s1 + $0x3e0] sm:$0xf]
        %v473 = vld [vmem:[%s1 + $0x3e4] sm:$0xf]
        %v474 = vld [vmem:[%s1 + $0x3e8] sm:$0xf]
        %v475 = vld [vmem:[%s1 + $0x3ec] sm:$0xf]
        %v476 = vld [vmem:[%s1 + $0x3f0] sm:$0xf]
        %v477 = vld [vmem:[%s1 + $0x3f4] sm:$0xf]
        %v478 = vld [vmem:[%s1 + $0x3f8] sm:$0xf]
        %v479 = vld [vmem:[%s1 + $0x3fc] sm:$0xf]
        %v480 = vld [vmem:[%s1 + $0x400] sm:$0xf]
        %v481 = vld [vmem:[%s1 + $0x404] sm:$0xf]
        %v482 = vld [vmem:[%s1 + $0x408] sm:$0xf]
        %v483 = vld [vmem:[%s1 + $0x40c] sm:$0xf]
        %v484 = vld [vmem:[%s1 + $0x410] sm:$0xf]
        %v485 = vld [vmem:[%s1 + $0x414] sm:$0xf]
        %v486 = vld [vmem:[%s1 + $0x418] sm:$0xf]
        %v487 = vld [vmem:[%s1 + $0x41c] sm:$0xf]
        %v488 = vld [vmem:[%s1 + $0x420] sm:$0xf]
        %v489 = vld [vmem:[%s1 + $0x424] sm:$0xf]
        %v490 = vld [vmem:[%s1 + $0x428] sm:$0xf]
        %v491 = vld [vmem:[%s1 + $0x42c] sm:$0xf]
        %v492 = vld [vmem:[%s1 + $0x430] sm:$0xf]
        %v493 = vld [vmem:[%s1 + $0x434] sm:$0xf]
        %v494 = vld [vmem:[%s1 + $0x438] sm:$0xf]
        %v495 = vld [vmem:[%s1 + $0x43c] sm:$0xf]
        %v496 = vld [vmem:[%s1 + $0x440] sm:$0xf]
        %v497 = vld [vmem:[%s1 + $0x444] sm:$0xf]
        %v498 = vld [vmem:[%s1 + $0x448] sm:$0xf]
        %v499 = vld [vmem:[%s1 + $0x44c] sm:$0xf]
        %v500 = vld [vmem:[%s1 + $0x450] sm:$0xf]
        %v501 = vld [vmem:[%s1 + $0x454] sm:$0xf]
        %v502 = vld [vmem:[%s1 + $0x458] sm:$0xf]
        %v503 = vld [vmem:[%s1 + $0x45c] sm:$0xf]
        %v504 = vld [vmem:[%s1 + $0x460] sm:$0xf]
        %v505 = vld [vmem:[%s1 + $0x464] sm:$0xf]
        %v506 = vld [vmem:[%s1 + $0x468] sm:$0xf]
        %v507 = vld [vmem:[%s1 + $0x46c] sm:$0xf]
        %v508 = vld [vmem:[%s1 + $0x470] sm:$0xf]
        %v509 = vld [vmem:[%s1 + $0x474] sm:$0xf]
        %v510 = vld [vmem:[%s1 + $0x478] sm:$0xf]
        %v511 = vld [vmem:[%s1 + $0x47c] sm:$0xf]
        %v512 = vld [vmem:[%s1 + $0x480] sm:$0xf]
        %v513 = vld [vmem:[%s1 + $0x484] sm:$0xf]
        %v514 = vld [vmem:[%s1 + $0x488] sm:$0xf]
        %v515 = vld [vmem:[%s1 + $0x48c] sm:$0xf]
        %v516 = vld [vmem:[%s1 + $0x490] sm:$0xf]
        %v517 = vld [vmem:[%s1 + $0x494] sm:$0xf]
        %v518 = vld [vmem:[%s1 + $0x498] sm:$0xf]
        %v519 = vld [vmem:[%s1 + $0x49c] sm:$0xf]
        %v520 = vld [vmem:[%s1 + $0x4a0] sm:$0xf]
        %v521 = vld [vmem:[%s1 + $0x4a4] sm:$0xf]
        %v522 = vld [vmem:[%s1 + $0x4a8] sm:$0xf]
        %v523 = vld [vmem:[%s1 + $0x4ac] sm:$0xf]
        %v524 = vld [vmem:[%s1 + $0x4b0] sm:$0xf]
        %v525 = vld [vmem:[%s1 + $0x4b4] sm:$0xf]
        %v526 = vld [vmem:[%s1 + $0x4b8] sm:$0xf]
        %v527 = vld [vmem:[%s1 + $0x4bc] sm:$0xf]
        %v528 = vld [vmem:[%s1 + $0x4c0] sm:$0xf]
        %v529 = vld [vmem:[%s1 + $0x4c4] sm:$0xf]
        %v530 = vld [vmem:[%s1 + $0x4c8] sm:$0xf]
        %v531 = vld [vmem:[%s1 + $0x4cc] sm:$0xf]
        %v532 = vld [vmem:[%s1 + $0x4d0] sm:$0xf]
        %v533 = vld [vmem:[%s1 + $0x4d4] sm:$0xf]
        %v534 = vld [vmem:[%s1 + $0x4d8] sm:$0xf]
        %v535 = vld [vmem:[%s1 + $0x4dc] sm:$0xf]
        %v536 = vld [vmem:[%s1 + $0x4e0] sm:$0xf]
        %v537 = vld [vmem:[%s1 + $0x4e4] sm:$0xf]
        %v538 = vld [vmem:[%s1 + $0x4e8] sm:$0xf]
        %v539 = vld [vmem:[%s1 + $0x4ec] sm:$0xf]
        %v540 = vld [vmem:[%s1 + $0x4f0] sm:$0xf]
        %v541 = vld [vmem:[%s1 + $0x4f4] sm:$0xf]
        %v542 = vld [vmem:[%s1 + $0x4f8] sm:$0xf]
        %v543 = vld [vmem:[%s1 + $0x4fc] sm:$0xf]
        %v544 = vld [vmem:[%s1 + $0x500] sm:$0xf]
        %v545 = vld [vmem:[%s1 + $0x504] sm:$0xf]
        %v546 = vld [vmem:[%s1 + $0x508] sm:$0xf]
        %v547 = vld [vmem:[%s1 + $0x50c] sm:$0xf]
        %v548 = vld [vmem:[%s1 + $0x510] sm:$0xf]
        %v549 = vld [vmem:[%s1 + $0x514] sm:$0xf]
        %v550 = vld [vmem:[%s1 + $0x518] sm:$0xf]
        %v551 = vld [vmem:[%s1 + $0x51c] sm:$0xf]
        %v552 = vld [vmem:[%s1 + $0x520] sm:$0xf]
        %v553 = vld [vmem:[%s1 + $0x524] sm:$0xf]
        %v554 = vld [vmem:[%s1 + $0x528] sm:$0xf]
        %v555 = vld [vmem:[%s1 + $0x52c] sm:$0xf]
        %v556 = vld [vmem:[%s1 + $0x530] sm:$0xf]
        %v557 = vld [vmem:[%s1 + $0x534] sm:$0xf]
        %v558 = vld [vmem:[%s1 + $0x538] sm:$0xf]
        %v559 = vld [vmem:[%s1 + $0x53c] sm:$0xf]
        %v560 = vld [vmem:[%s1 + $0x540] sm:$0xf]
        %v561 = vld [vmem:[%s1 + $0x544] sm:$0xf]
        %v562 = vld [vmem:[%s1 + $0x548] sm:$0xf]
        %v563 = vld [vmem:[%s1 + $0x54c] sm:$0xf]
        %v564 = vld [vmem:[%s1 + $0x550] sm:$0xf]
        %v565 = vld [vmem:[%s1 + $0x554] sm:$0xf]
        %v566 = vld [vmem:[%s1 + $0x558] sm:$0xf]
        %v567 = vld [vmem:[%s1 + $0x55c] sm:$0xf]
        %v568 = vld [vmem:[%s1 + $0x560] sm:$0xf]
        %v569 = vld [vmem:[%s1 + $0x564] sm:$0xf]
        %v570 = vld [vmem:[%s1 + $0x568] sm:$0xf]
        %v571 = vld [vmem:[%s1 + $0x56c] sm:$0xf]
        %v572 = vld [vmem:[%s1 + $0x570] sm:$0xf]
        %v573 = vld [vmem:[%s1 + $0x574] sm:$0xf]
        %v574 = vld [vmem:[%s1 + $0x578] sm:$0xf]
        %v575 = vld [vmem:[%s1 + $0x57c] sm:$0xf]
        %v576 = vld [vmem:[%s1 + $0x580] sm:$0xf]
        %v577 = vld [vmem:[%s1 + $0x584] sm:$0xf]
        %v578 = vld [vmem:[%s1 + $0x588] sm:$0xf]
        %v579 = vld [vmem:[%s1 + $0x58c] sm:$0xf]
        %v580 = vld [vmem:[%s1 + $0x590] sm:$0xf]
        %v581 = vld [vmem:[%s1 + $0x594] sm:$0xf]
        %v582 = vld [vmem:[%s1 + $0x598] sm:$0xf]
        %v583 = vld [vmem:[%s1 + $0x59c] sm:$0xf]
        %v584 = vld [vmem:[%s1 + $0x5a0] sm:$0xf]
        %v585 = vld [vmem:[%s1 + $0x5a4] sm:$0xf]
        %v586 = vld [vmem:[%s1 + $0x5a8] sm:$0xf]
        %v587 = vld [vmem:[%s1 + $0x5ac] sm:$0xf]
        %v588 = vld [vmem:[%s1 + $0x5b0] sm:$0xf]
        %v589 = vld [vmem:[%s1 + $0x5b4] sm:$0xf]
        %v590 = vld [vmem:[%s1 + $0x5b8] sm:$0xf]
        %v591 = vld [vmem:[%s1 + $0x5bc] sm:$0xf]
        %v592 = vld [vmem:[%s1 + $0x5c0] sm:$0xf]
        %v593 = vld [vmem:[%s1 + $0x5c4] sm:$0xf]
        %v594 = vld [vmem:[%s1 + $0x5c8] sm:$0xf]
        %v595 = vld [vmem:[%s1 + $0x5cc] sm:$0xf]
        %v596 = vld [vmem:[%s1 + $0x5d0] sm:$0xf]
        %v597 = vld [vmem:[%s1 + $0x5d4] sm:$0xf]
        %v598 = vld [vmem:[%s1 + $0x5d8] sm:$0xf]
        %v599 = vld [vmem:[%s1 + $0x5dc] sm:$0xf]
        %v600 = vld [vmem:[%s1 + $0x5e0] sm:$0xf]
        %v601 = vld [vmem:[%s1 + $0x5e4] sm:$0xf]
        %v602 = vld [vmem:[%s1 + $0x5e8] sm:$0xf]
        %v603 = vld [vmem:[%s1 + $0x5ec] sm:$0xf]
        %v604 = vld [vmem:[%s1 + $0x5f0] sm:$0xf]
        %v605 = vld [vmem:[%s1 + $0x5f4] sm:$0xf]
        %v606 = vld [vmem:[%s1 + $0x5f8] sm:$0xf]
        %v607 = vld [vmem:[%s1 + $0x5fc] sm:$0xf]
        %v608 = vld [vmem:[%s1 + $0x600] sm:$0xf]
        %v609 = vld [vmem:[%s1 + $0x604] sm:$0xf]
        %v610 = vld [vmem:[%s1 + $0x608] sm:$0xf]
        %v611 = vld [vmem:[%s1 + $0x60c] sm:$0xf]
        %v612 = vld [vmem:[%s1 + $0x610] sm:$0xf]
        %v613 = vld [vmem:[%s1 + $0x614] sm:$0xf]
        %v614 = vld [vmem:[%s1 + $0x618] sm:$0xf]
        %v615 = vld [vmem:[%s1 + $0x61c] sm:$0xf]
        %v616 = vld [vmem:[%s2] sm:$0x1]
        %618 = vst [vmem:[#allocation1] ss:$9 sm:$0xff] %v220
        %v619 = vld [vmem:[#allocation1] sm:$0xff]
        %v620 = vld [vmem:[#allocation1 + $0x9] sm:$0xff]
        %v621 = vld [vmem:[#allocation1 + $0x12] sm:$0xff]
        %v622 = vld [vmem:[#allocation1 + $0x1b] sm:$0xff]
        %v623 = vld [vmem:[#allocation1 + $0x24] sm:$0xff]
        %v624 = vld [vmem:[#allocation1 + $0x2d] sm:$0xff]
        %v625 = vld [vmem:[#allocation1 + $0x36] sm:$0xff]
        %v626 = vld [vmem:[#allocation1 + $0x3f] sm:$0xff]
        %628 = vst [vmem:[#allocation1] ss:$9 sm:$0xff] %v221
        %v629 = vld [vmem:[#allocation1] sm:$0xff]
        %v630 = vld [vmem:[#allocation1 + $0x9] sm:$0xff]
        %v631 = vld [vmem:[#allocation1 + $0x12] sm:$0xff]
        %v632 = vld [vmem:[#allocation1 + $0x1b] sm:$0xff]
        %v633 = vld [vmem:[#allocation1 + $0x24] sm:$0xff]
        %v634 = vld [vmem:[#allocation1 + $0x2d] sm:$0xff]
        %v635 = vld [vmem:[#allocation1 + $0x36] sm:$0xff]
        %v636 = vld [vmem:[#allocation1 + $0x3f] sm:$0xff]
        %638 = vst [vmem:[#allocation1] ss:$9 sm:$0xff] %v222
        %v639 = vld [vmem:[#allocation1] sm:$0xff]
        %v640 = vld [vmem:[#allocation1 + $0x9] sm:$0xff]
        %v641 = vld [vmem:[#allocation1 + $0x12] sm:$0xff]
        %v642 = vld [vmem:[#allocation1 + $0x1b] sm:$0xff]
        %v643 = vld [vmem:[#allocation1 + $0x24] sm:$0xff]
        %v644 = vld [vmem:[#allocation1 + $0x2d] sm:$0xff]
        %v645 = vld [vmem:[#allocation1 + $0x36] sm:$0xff]
        %v646 = vld [vmem:[#allocation1 + $0x3f] sm:$0xff]
        %648 = vst [vmem:[#allocation1] ss:$9 sm:$0xff] %v223
        %v649 = vld [vmem:[#allocation1] sm:$0xff]
        %v1066 = vunpack.c.l.b16 %v224
        %v1067 = vunpack.c.l.b16 %v225
        %v1068 = vunpack.c.l.b16 %v226
        %v1069 = vunpack.c.l.b16 %v227
        %v1070 = vunpack.c.l.b16 %v228
        %v1071 = vunpack.c.l.b16 %v229
        %v1072 = vunpack.c.l.b16 %v230
        %v1073 = vunpack.c.l.b16 %v231
        %v1074 = vunpack.c.l.b16 %v232
        %v1075 = vunpack.c.l.b16 %v233
        %v1076 = vunpack.c.l.b16 %v234
        %v1077 = vunpack.c.l.b16 %v235
        %v1078 = vunpack.c.l.b16 %v236
        %v1079 = vunpack.c.l.b16 %v237
        %v1080 = vunpack.c.l.b16 %v238
        %v1081 = vunpack.c.l.b16 %v239
        %v1082 = vunpack.c.l.b16 %v240
        %v1083 = vunpack.c.l.b16 %v241
        %v1084 = vunpack.c.l.b16 %v242
        %v1085 = vunpack.c.l.b16 %v243
        %v1086 = vunpack.c.l.b16 %v244
        %v1087 = vunpack.c.l.b16 %v245
        %v1088 = vunpack.c.l.b16 %v246
        %v1089 = vunpack.c.l.b16 %v247
        %v1090 = vunpack.c.l.b16 %v248
        %v1091 = vunpack.c.l.b16 %v249
        %v1092 = vunpack.c.l.b16 %v250
        %v1093 = vunpack.c.l.b16 %v251
        %v1094 = vunpack.c.l.b16 %v252
        %v1095 = vunpack.c.l.b16 %v253
        %v1096 = vunpack.c.l.b16 %v254
        %v1097 = vunpack.c.l.b16 %v255
        %v1098 = vunpack.c.l.b16 %v256
        %v1099 = vunpack.c.l.b16 %v257
        %v1100 = vunpack.c.l.b16 %v258
        %v1101 = vunpack.c.l.b16 %v259
        %v1102 = vunpack.c.l.b16 %v260
        %v1103 = vunpack.c.l.b16 %v261
        %v1104 = vunpack.c.l.b16 %v262
        %v1105 = vunpack.c.l.b16 %v263
        %v1106 = vunpack.c.l.b16 %v264
        %v1107 = vunpack.c.l.b16 %v265
        %v1108 = vunpack.c.l.b16 %v266
        %v1109 = vunpack.c.l.b16 %v267
        %v1110 = vunpack.c.l.b16 %v268
        %v1111 = vunpack.c.l.b16 %v269
        %v1112 = vunpack.c.l.b16 %v270
        %v1113 = vunpack.c.l.b16 %v271
        %v1114 = vunpack.c.l.b16 %v272
        %v1115 = vunpack.c.l.b16 %v273
        %v1116 = vunpack.c.l.b16 %v274
        %v1117 = vunpack.c.l.b16 %v275
        %v1118 = vunpack.c.l.b16 %v276
        %v1119 = vunpack.c.l.b16 %v277
        %v1120 = vunpack.c.l.b16 %v278
        %v1121 = vunpack.c.l.b16 %v279
        %v1122 = vunpack.c.l.b16 %v280
        %v1123 = vunpack.c.l.b16 %v281
        %v1124 = vunpack.c.l.b16 %v282
        %v1125 = vunpack.c.l.b16 %v283
        %v1126 = vunpack.c.l.b16 %v284
        %v1127 = vunpack.c.l.b16 %v285
        %v1128 = vunpack.c.l.b16 %v286
        %v1129 = vunpack.c.l.b16 %v287
        %v1130 = vunpack.c.l.b16 %v288
        %v1131 = vunpack.c.l.b16 %v289
        %v1132 = vunpack.c.l.b16 %v290
        %v1133 = vunpack.c.l.b16 %v291
        %v1134 = vunpack.c.l.b16 %v292
        %v1135 = vunpack.c.l.b16 %v293
        %v1136 = vunpack.c.l.b16 %v294
        %v1137 = vunpack.c.l.b16 %v295
        %v1138 = vunpack.c.l.b16 %v296
        %v1139 = vunpack.c.l.b16 %v297
        %v1140 = vunpack.c.l.b16 %v298
        %v1141 = vunpack.c.l.b16 %v299
        %v1142 = vunpack.c.l.b16 %v300
        %v1143 = vunpack.c.l.b16 %v301
        %v1144 = vunpack.c.l.b16 %v302
        %v1145 = vunpack.c.l.b16 %v303
        %v1146 = vunpack.c.l.b16 %v304
        %v1147 = vunpack.c.l.b16 %v305
        %v1148 = vunpack.c.l.b16 %v306
        %v1149 = vunpack.c.l.b16 %v307
        %v1150 = vunpack.c.l.b16 %v308
        %v1151 = vunpack.c.l.b16 %v309
        %v1152 = vunpack.c.l.b16 %v310
        %v1153 = vunpack.c.l.b16 %v311
        %v1154 = vunpack.c.l.b16 %v312
        %v1155 = vunpack.c.l.b16 %v313
        %v1156 = vunpack.c.l.b16 %v314
        %v1157 = vunpack.c.l.b16 %v315
        %v1158 = vunpack.c.l.b16 %v316
        %v1159 = vunpack.c.l.b16 %v317
        %v1160 = vunpack.c.l.b16 %v318
        %v1161 = vunpack.c.l.b16 %v319
        %v1162 = vunpack.c.l.b16 %v320
        %v1163 = vunpack.c.l.b16 %v321
        %v1164 = vunpack.c.l.b16 %v322
        %v1165 = vunpack.c.l.b16 %v323
        %v1166 = vunpack.c.l.b16 %v324
        %v1167 = vunpack.c.l.b16 %v325
        %v1168 = vunpack.c.l.b16 %v326
        %v1169 = vunpack.c.l.b16 %v327
        %v1170 = vunpack.c.l.b16 %v328
        %v1171 = vunpack.c.l.b16 %v329
        %v1172 = vunpack.c.l.b16 %v330
        %v1173 = vunpack.c.l.b16 %v331
        %v1174 = vunpack.c.l.b16 %v332
        %v1175 = vunpack.c.l.b16 %v333
        %v1176 = vunpack.c.l.b16 %v334
        %v1177 = vunpack.c.l.b16 %v335
        %v1178 = vunpack.c.l.b16 %v336
        %v1179 = vunpack.c.l.b16 %v337
        %v1180 = vunpack.c.l.b16 %v338
        %v1181 = vunpack.c.l.b16 %v339
        %v1182 = vunpack.c.l.b16 %v340
        %v1183 = vunpack.c.l.b16 %v341
        %v1184 = vunpack.c.l.b16 %v342
        %v1185 = vunpack.c.l.b16 %v343
        %v1186 = vunpack.c.l.b16 %v344
        %v1187 = vunpack.c.l.b16 %v345
        %v1188 = vunpack.c.l.b16 %v346
        %v1189 = vunpack.c.l.b16 %v347
        %v1190 = vunpack.c.l.b16 %v348
        %v1191 = vunpack.c.l.b16 %v349
        %v1192 = vunpack.c.l.b16 %v350
        %v1193 = vunpack.c.l.b16 %v351
        %v1194 = vunpack.c.l.b16 %v352
        %v1195 = vunpack.c.l.b16 %v353
        %v1196 = vunpack.c.l.b16 %v354
        %v1197 = vunpack.c.l.b16 %v355
        %v1198 = vunpack.c.l.b16 %v356
        %v1199 = vunpack.c.l.b16 %v357
        %v1200 = vunpack.c.l.b16 %v358
        %v1201 = vunpack.c.l.b16 %v359
        %v1202 = vunpack.c.l.b16 %v360
        %v1203 = vunpack.c.l.b16 %v361
        %v1204 = vunpack.c.l.b16 %v362
        %v1205 = vunpack.c.l.b16 %v363
        %v1206 = vunpack.c.l.b16 %v364
        %v1207 = vunpack.c.l.b16 %v365
        %v1208 = vunpack.c.l.b16 %v366
        %v1209 = vunpack.c.l.b16 %v367
        %v1210 = vunpack.c.l.b16 %v368
        %v1211 = vunpack.c.l.b16 %v369
        %v1212 = vunpack.c.l.b16 %v370
        %v1213 = vunpack.c.l.b16 %v371
        %v1214 = vunpack.c.l.b16 %v372
        %v1215 = vunpack.c.l.b16 %v373
        %v1216 = vunpack.c.l.b16 %v374
        %v1217 = vunpack.c.l.b16 %v375
        %v1218 = vunpack.c.l.b16 %v376
        %v1219 = vunpack.c.l.b16 %v377
        %v1220 = vunpack.c.l.b16 %v378
        %v1221 = vunpack.c.l.b16 %v379
        %v1222 = vunpack.c.l.b16 %v380
        %v1223 = vunpack.c.l.b16 %v381
        %v1224 = vunpack.c.l.b16 %v382
        %v1225 = vunpack.c.l.b16 %v383
        %v1226 = vunpack.c.l.b16 %v384
        %v1227 = vunpack.c.l.b16 %v385
        %v1228 = vunpack.c.l.b16 %v386
        %v1229 = vunpack.c.l.b16 %v387
        %v1230 = vunpack.c.l.b16 %v388
        %v1231 = vunpack.c.l.b16 %v389
        %v1232 = vunpack.c.l.b16 %v390
        %v1233 = vunpack.c.l.b16 %v391
        %v1234 = vunpack.c.l.b16 %v392
        %v1235 = vunpack.c.l.b16 %v393
        %v1236 = vunpack.c.l.b16 %v394
        %v1237 = vunpack.c.l.b16 %v395
        %v1238 = vunpack.c.l.b16 %v396
        %v1239 = vunpack.c.l.b16 %v397
        %v1240 = vunpack.c.l.b16 %v398
        %v1241 = vunpack.c.l.b16 %v399
        %v1242 = vunpack.c.l.b16 %v400
        %v1243 = vunpack.c.l.b16 %v401
        %v1244 = vunpack.c.l.b16 %v402
        %v1245 = vunpack.c.l.b16 %v403
        %v1246 = vunpack.c.l.b16 %v404
        %v1247 = vunpack.c.l.b16 %v405
        %v1248 = vunpack.c.l.b16 %v406
        %v1249 = vunpack.c.l.b16 %v407
        %v1250 = vunpack.c.l.b16 %v408
        %v1251 = vunpack.c.l.b16 %v409
        %v1252 = vunpack.c.l.b16 %v410
        %v1253 = vunpack.c.l.b16 %v411
        %v1254 = vunpack.c.l.b16 %v412
        %v1255 = vunpack.c.l.b16 %v413
        %v1256 = vunpack.c.l.b16 %v414
        %v1257 = vunpack.c.l.b16 %v415
        %v1258 = vunpack.c.l.b16 %v416
        %v1259 = vunpack.c.l.b16 %v417
        %v1260 = vunpack.c.l.b16 %v418
        %v1261 = vunpack.c.l.b16 %v419
        %v1262 = vunpack.c.l.b16 %v420
        %v1263 = vunpack.c.l.b16 %v421
        %v1264 = vunpack.c.l.b16 %v422
        %v1265 = vunpack.c.l.b16 %v423
        %v1266 = vunpack.c.l.b16 %v424
        %v1267 = vunpack.c.l.b16 %v425
        %v1268 = vunpack.c.l.b16 %v426
        %v1269 = vunpack.c.l.b16 %v427
        %v1270 = vunpack.c.l.b16 %v428
        %v1271 = vunpack.c.l.b16 %v429
        %v1272 = vunpack.c.l.b16 %v430
        %v1273 = vunpack.c.l.b16 %v431
        %v1274 = vunpack.c.l.b16 %v432
        %v1275 = vunpack.c.l.b16 %v433
        %v1276 = vunpack.c.l.b16 %v434
        %v1277 = vunpack.c.l.b16 %v435
        %v1278 = vunpack.c.l.b16 %v436
        %v1279 = vunpack.c.l.b16 %v437
        %v1280 = vunpack.c.l.b16 %v438
        %v1281 = vunpack.c.l.b16 %v439
        %v1282 = vunpack.c.l.b16 %v440
        %v1283 = vunpack.c.l.b16 %v441
        %v1284 = vunpack.c.l.b16 %v442
        %v1285 = vunpack.c.l.b16 %v443
        %v1286 = vunpack.c.l.b16 %v444
        %v1287 = vunpack.c.l.b16 %v445
        %v1288 = vunpack.c.l.b16 %v446
        %v1289 = vunpack.c.l.b16 %v447
        %v1290 = vunpack.c.l.b16 %v448
        %v1291 = vunpack.c.l.b16 %v449
        %v1292 = vunpack.c.l.b16 %v450
        %v1293 = vunpack.c.l.b16 %v451
        %v1294 = vunpack.c.l.b16 %v452
        %v1295 = vunpack.c.l.b16 %v453
        %v1296 = vunpack.c.l.b16 %v454
        %v1297 = vunpack.c.l.b16 %v455
        %v1298 = vunpack.c.l.b16 %v456
        %v1299 = vunpack.c.l.b16 %v457
        %v1300 = vunpack.c.l.b16 %v458
        %v1301 = vunpack.c.l.b16 %v459
        %v1302 = vunpack.c.l.b16 %v460
        %v1303 = vunpack.c.l.b16 %v461
        %v1304 = vunpack.c.l.b16 %v462
        %v1305 = vunpack.c.l.b16 %v463
        %v1306 = vunpack.c.l.b16 %v464
        %v1307 = vunpack.c.l.b16 %v465
        %v1308 = vunpack.c.l.b16 %v466
        %v1309 = vunpack.c.l.b16 %v467
        %v1310 = vunpack.c.l.b16 %v468
        %v1311 = vunpack.c.l.b16 %v469
        %v1312 = vunpack.c.l.b16 %v470
        %v1313 = vunpack.c.l.b16 %v471
        %v1314 = vunpack.c.l.b16 %v472
        %v1315 = vunpack.c.l.b16 %v473
        %v1316 = vunpack.c.l.b16 %v474
        %v1317 = vunpack.c.l.b16 %v475
        %v1318 = vunpack.c.l.b16 %v476
        %v1319 = vunpack.c.l.b16 %v477
        %v1320 = vunpack.c.l.b16 %v478
        %v1321 = vunpack.c.l.b16 %v479
        %v1322 = vunpack.c.l.b16 %v480
        %v1323 = vunpack.c.l.b16 %v481
        %v1324 = vunpack.c.l.b16 %v482
        %v1325 = vunpack.c.l.b16 %v483
        %v1326 = vunpack.c.l.b16 %v484
        %v1327 = vunpack.c.l.b16 %v485
        %v1328 = vunpack.c.l.b16 %v486
        %v1329 = vunpack.c.l.b16 %v487
        %v1330 = vunpack.c.l.b16 %v488
        %v1331 = vunpack.c.l.b16 %v489
        %v1332 = vunpack.c.l.b16 %v490
        %v1333 = vunpack.c.l.b16 %v491
        %v1334 = vunpack.c.l.b16 %v492
        %v1335 = vunpack.c.l.b16 %v493
        %v1336 = vunpack.c.l.b16 %v494
        %v1337 = vunpack.c.l.b16 %v495
        %v1338 = vunpack.c.l.b16 %v496
        %v1339 = vunpack.c.l.b16 %v497
        %v1340 = vunpack.c.l.b16 %v498
        %v1341 = vunpack.c.l.b16 %v499
        %v1342 = vunpack.c.l.b16 %v500
        %v1343 = vunpack.c.l.b16 %v501
        %v1344 = vunpack.c.l.b16 %v502
        %v1345 = vunpack.c.l.b16 %v503
        %v1346 = vunpack.c.l.b16 %v504
        %v1347 = vunpack.c.l.b16 %v505
        %v1348 = vunpack.c.l.b16 %v506
        %v1349 = vunpack.c.l.b16 %v507
        %v1350 = vunpack.c.l.b16 %v508
        %v1351 = vunpack.c.l.b16 %v509
        %v1352 = vunpack.c.l.b16 %v510
        %v1353 = vunpack.c.l.b16 %v511
        %v1354 = vunpack.c.l.b16 %v512
        %v1355 = vunpack.c.l.b16 %v513
        %v1356 = vunpack.c.l.b16 %v514
        %v1357 = vunpack.c.l.b16 %v515
        %v1358 = vunpack.c.l.b16 %v516
        %v1359 = vunpack.c.l.b16 %v517
        %v1360 = vunpack.c.l.b16 %v518
        %v1361 = vunpack.c.l.b16 %v519
        %v1362 = vunpack.c.l.b16 %v520
        %v1363 = vunpack.c.l.b16 %v521
        %v1364 = vunpack.c.l.b16 %v522
        %v1365 = vunpack.c.l.b16 %v523
        %v1366 = vunpack.c.l.b16 %v524
        %v1367 = vunpack.c.l.b16 %v525
        %v1368 = vunpack.c.l.b16 %v526
        %v1369 = vunpack.c.l.b16 %v527
        %v1370 = vunpack.c.l.b16 %v528
        %v1371 = vunpack.c.l.b16 %v529
        %v1372 = vunpack.c.l.b16 %v530
        %v1373 = vunpack.c.l.b16 %v531
        %v1374 = vunpack.c.l.b16 %v532
        %v1375 = vunpack.c.l.b16 %v533
        %v1376 = vunpack.c.l.b16 %v534
        %v1377 = vunpack.c.l.b16 %v535
        %v1378 = vunpack.c.l.b16 %v536
        %v1379 = vunpack.c.l.b16 %v537
        %v1380 = vunpack.c.l.b16 %v538
        %v1381 = vunpack.c.l.b16 %v539
        %v1382 = vunpack.c.l.b16 %v540
        %v1383 = vunpack.c.l.b16 %v541
        %v1384 = vunpack.c.l.b16 %v542
        %v1385 = vunpack.c.l.b16 %v543
        %v1386 = vunpack.c.l.b16 %v544
        %v1387 = vunpack.c.l.b16 %v545
        %v1388 = vunpack.c.l.b16 %v546
        %v1389 = vunpack.c.l.b16 %v547
        %v1390 = vunpack.c.l.b16 %v548
        %v1391 = vunpack.c.l.b16 %v549
        %v1392 = vunpack.c.l.b16 %v550
        %v1393 = vunpack.c.l.b16 %v551
        %v1394 = vunpack.c.l.b16 %v552
        %v1395 = vunpack.c.l.b16 %v553
        %v1396 = vunpack.c.l.b16 %v554
        %v1397 = vunpack.c.l.b16 %v555
        %v1398 = vunpack.c.l.b16 %v556
        %v1399 = vunpack.c.l.b16 %v557
        %v1400 = vunpack.c.l.b16 %v558
        %v1401 = vunpack.c.l.b16 %v559
        %v1402 = vunpack.c.l.b16 %v560
        %v1403 = vunpack.c.l.b16 %v561
        %v1404 = vunpack.c.l.b16 %v562
        %v1405 = vunpack.c.l.b16 %v563
        %v1406 = vunpack.c.l.b16 %v564
        %v1407 = vunpack.c.l.b16 %v565
        %v1408 = vunpack.c.l.b16 %v566
        %v1409 = vunpack.c.l.b16 %v567
        %v1410 = vunpack.c.l.b16 %v568
        %v1411 = vunpack.c.l.b16 %v569
        %v1412 = vunpack.c.l.b16 %v570
        %v1413 = vunpack.c.l.b16 %v571
        %v1414 = vunpack.c.l.b16 %v572
        %v1415 = vunpack.c.l.b16 %v573
        %v1416 = vunpack.c.l.b16 %v574
        %v1417 = vunpack.c.l.b16 %v575
        %v1418 = vunpack.c.l.b16 %v576
        %v1419 = vunpack.c.l.b16 %v577
        %v1420 = vunpack.c.l.b16 %v578
        %v1421 = vunpack.c.l.b16 %v579
        %v1422 = vunpack.c.l.b16 %v580
        %v1423 = vunpack.c.l.b16 %v581
        %v1424 = vunpack.c.l.b16 %v582
        %v1425 = vunpack.c.l.b16 %v583
        %v1426 = vunpack.c.l.b16 %v584
        %v1427 = vunpack.c.l.b16 %v585
        %v1428 = vunpack.c.l.b16 %v586
        %v1429 = vunpack.c.l.b16 %v587
        %v1430 = vunpack.c.l.b16 %v588
        %v1431 = vunpack.c.l.b16 %v589
        %v1432 = vunpack.c.l.b16 %v590
        %v1433 = vunpack.c.l.b16 %v591
        %v1434 = vunpack.c.l.b16 %v592
        %v1435 = vunpack.c.l.b16 %v593
        %v1436 = vunpack.c.l.b16 %v594
        %v1437 = vunpack.c.l.b16 %v595
        %v1438 = vunpack.c.l.b16 %v596
        %v1439 = vunpack.c.l.b16 %v597
        %v1440 = vunpack.c.l.b16 %v598
        %v1441 = vunpack.c.l.b16 %v599
        %v1442 = vunpack.c.l.b16 %v600
        %v1443 = vunpack.c.l.b16 %v601
        %v1444 = vunpack.c.l.b16 %v602
        %v1445 = vunpack.c.l.b16 %v603
        %v1446 = vunpack.c.l.b16 %v604
        %v1447 = vunpack.c.l.b16 %v605
        %v1448 = vunpack.c.l.b16 %v606
        %v1449 = vunpack.c.l.b16 %v607
        %v1450 = vunpack.c.l.b16 %v608
        %v1451 = vunpack.c.l.b16 %v609
        %v1452 = vunpack.c.l.b16 %v610
        %v1453 = vunpack.c.l.b16 %v611
        %v1454 = vunpack.c.l.b16 %v612
        %v1455 = vunpack.c.l.b16 %v613
        %v1456 = vunpack.c.l.b16 %v614
        %v1457 = vunpack.c.l.b16 %v615
        %v1458 = vpack.c.b16 %v1067, %v1066
        %v1459 = vpack.c.b16 %v1069, %v1068
        %v1460 = vpack.c.b16 %v1071, %v1070
        %v1461 = vpack.c.b16 %v1073, %v1072
        %v1462 = vpack.c.b16 %v1075, %v1074
        %v1463 = vpack.c.b16 %v1077, %v1076
        %v1464 = vpack.c.b16 %v1079, %v1078
        %v1465 = vpack.c.b16 %v1081, %v1080
        %v1466 = vpack.c.b16 %v1083, %v1082
        %v1467 = vpack.c.b16 %v1085, %v1084
        %v1468 = vpack.c.b16 %v1087, %v1086
        %v1469 = vpack.c.b16 %v1089, %v1088
        %v1470 = vpack.c.b16 %v1091, %v1090
        %v1471 = vpack.c.b16 %v1093, %v1092
        %v1472 = vpack.c.b16 %v1095, %v1094
        %v1473 = vpack.c.b16 %v1097, %v1096
        %v1474 = vpack.c.b16 %v1099, %v1098
        %v1475 = vpack.c.b16 %v1101, %v1100
        %v1476 = vpack.c.b16 %v1103, %v1102
        %v1477 = vpack.c.b16 %v1105, %v1104
        %v1478 = vpack.c.b16 %v1107, %v1106
        %v1479 = vpack.c.b16 %v1109, %v1108
        %v1480 = vpack.c.b16 %v1111, %v1110
        %v1481 = vpack.c.b16 %v1113, %v1112
        %v1482 = vpack.c.b16 %v1115, %v1114
        %v1483 = vpack.c.b16 %v1117, %v1116
        %v1484 = vpack.c.b16 %v1119, %v1118
        %v1485 = vpack.c.b16 %v1121, %v1120
        %v1486 = vpack.c.b16 %v1123, %v1122
        %v1487 = vpack.c.b16 %v1125, %v1124
        %v1488 = vpack.c.b16 %v1127, %v1126
        %v1489 = vpack.c.b16 %v1129, %v1128
        %v1490 = vpack.c.b16 %v1131, %v1130
        %v1491 = vpack.c.b16 %v1133, %v1132
        %v1492 = vpack.c.b16 %v1135, %v1134
        %v1493 = vpack.c.b16 %v1137, %v1136
        %v1494 = vpack.c.b16 %v1139, %v1138
        %v1495 = vpack.c.b16 %v1141, %v1140
        %v1496 = vpack.c.b16 %v1143, %v1142
        %v1497 = vpack.c.b16 %v1145, %v1144
        %v1498 = vpack.c.b16 %v1147, %v1146
        %v1499 = vpack.c.b16 %v1149, %v1148
        %v1500 = vpack.c.b16 %v1151, %v1150
        %v1501 = vpack.c.b16 %v1153, %v1152
        %v1502 = vpack.c.b16 %v1155, %v1154
        %v1503 = vpack.c.b16 %v1157, %v1156
        %v1504 = vpack.c.b16 %v1159, %v1158
        %v1505 = vpack.c.b16 %v1161, %v1160
        %v1506 = vpack.c.b16 %v1163, %v1162
        %v1507 = vpack.c.b16 %v1165, %v1164
        %v1508 = vpack.c.b16 %v1167, %v1166
        %v1509 = vpack.c.b16 %v1169, %v1168
        %v1510 = vpack.c.b16 %v1171, %v1170
        %v1511 = vpack.c.b16 %v1173, %v1172
        %v1512 = vpack.c.b16 %v1175, %v1174
        %v1513 = vpack.c.b16 %v1177, %v1176
        %v1514 = vpack.c.b16 %v1179, %v1178
        %v1515 = vpack.c.b16 %v1181, %v1180
        %v1516 = vpack.c.b16 %v1183, %v1182
        %v1517 = vpack.c.b16 %v1185, %v1184
        %v1518 = vpack.c.b16 %v1187, %v1186
        %v1519 = vpack.c.b16 %v1189, %v1188
        %v1520 = vpack.c.b16 %v1191, %v1190
        %v1521 = vpack.c.b16 %v1193, %v1192
        %v1522 = vpack.c.b16 %v1195, %v1194
        %v1523 = vpack.c.b16 %v1197, %v1196
        %v1524 = vpack.c.b16 %v1199, %v1198
        %v1525 = vpack.c.b16 %v1201, %v1200
        %v1526 = vpack.c.b16 %v1203, %v1202
        %v1527 = vpack.c.b16 %v1205, %v1204
        %v1528 = vpack.c.b16 %v1207, %v1206
        %v1529 = vpack.c.b16 %v1209, %v1208
        %v1530 = vpack.c.b16 %v1211, %v1210
        %v1531 = vpack.c.b16 %v1213, %v1212
        %v1532 = vpack.c.b16 %v1215, %v1214
        %v1533 = vpack.c.b16 %v1217, %v1216
        %v1534 = vpack.c.b16 %v1219, %v1218
        %v1535 = vpack.c.b16 %v1221, %v1220
        %v1536 = vpack.c.b16 %v1223, %v1222
        %v1537 = vpack.c.b16 %v1225, %v1224
        %v1538 = vpack.c.b16 %v1227, %v1226
        %v1539 = vpack.c.b16 %v1229, %v1228
        %v1540 = vpack.c.b16 %v1231, %v1230
        %v1541 = vpack.c.b16 %v1233, %v1232
        %v1542 = vpack.c.b16 %v1235, %v1234
        %v1543 = vpack.c.b16 %v1237, %v1236
        %v1544 = vpack.c.b16 %v1239, %v1238
        %v1545 = vpack.c.b16 %v1241, %v1240
        %v1546 = vpack.c.b16 %v1243, %v1242
        %v1547 = vpack.c.b16 %v1245, %v1244
        %v1548 = vpack.c.b16 %v1247, %v1246
        %v1549 = vpack.c.b16 %v1249, %v1248
        %v1550 = vpack.c.b16 %v1251, %v1250
        %v1551 = vpack.c.b16 %v1253, %v1252
        %v1552 = vpack.c.b16 %v1255, %v1254
        %v1553 = vpack.c.b16 %v1257, %v1256
        %v1554 = vpack.c.b16 %v1259, %v1258
        %v1555 = vpack.c.b16 %v1261, %v1260
        %v1556 = vpack.c.b16 %v1263, %v1262
        %v1557 = vpack.c.b16 %v1265, %v1264
        %v1558 = vpack.c.b16 %v1267, %v1266
        %v1559 = vpack.c.b16 %v1269, %v1268
        %v1560 = vpack.c.b16 %v1271, %v1270
        %v1561 = vpack.c.b16 %v1273, %v1272
        %v1562 = vpack.c.b16 %v1275, %v1274
        %v1563 = vpack.c.b16 %v1277, %v1276
        %v1564 = vpack.c.b16 %v1279, %v1278
        %v1565 = vpack.c.b16 %v1281, %v1280
        %v1566 = vpack.c.b16 %v1283, %v1282
        %v1567 = vpack.c.b16 %v1285, %v1284
        %v1568 = vpack.c.b16 %v1287, %v1286
        %v1569 = vpack.c.b16 %v1289, %v1288
        %v1570 = vpack.c.b16 %v1291, %v1290
        %v1571 = vpack.c.b16 %v1293, %v1292
        %v1572 = vpack.c.b16 %v1295, %v1294
        %v1573 = vpack.c.b16 %v1297, %v1296
        %v1574 = vpack.c.b16 %v1299, %v1298
        %v1575 = vpack.c.b16 %v1301, %v1300
        %v1576 = vpack.c.b16 %v1303, %v1302
        %v1577 = vpack.c.b16 %v1305, %v1304
        %v1578 = vpack.c.b16 %v1307, %v1306
        %v1579 = vpack.c.b16 %v1309, %v1308
        %v1580 = vpack.c.b16 %v1311, %v1310
        %v1581 = vpack.c.b16 %v1313, %v1312
        %v1582 = vpack.c.b16 %v1315, %v1314
        %v1583 = vpack.c.b16 %v1317, %v1316
        %v1584 = vpack.c.b16 %v1319, %v1318
        %v1585 = vpack.c.b16 %v1321, %v1320
        %v1586 = vpack.c.b16 %v1323, %v1322
        %v1587 = vpack.c.b16 %v1325, %v1324
        %v1588 = vpack.c.b16 %v1327, %v1326
        %v1589 = vpack.c.b16 %v1329, %v1328
        %v1590 = vpack.c.b16 %v1331, %v1330
        %v1591 = vpack.c.b16 %v1333, %v1332
        %v1592 = vpack.c.b16 %v1335, %v1334
        %v1593 = vpack.c.b16 %v1337, %v1336
        %v1594 = vpack.c.b16 %v1339, %v1338
        %v1595 = vpack.c.b16 %v1341, %v1340
        %v1596 = vpack.c.b16 %v1343, %v1342
        %v1597 = vpack.c.b16 %v1345, %v1344
        %v1598 = vpack.c.b16 %v1347, %v1346
        %v1599 = vpack.c.b16 %v1349, %v1348
        %v1600 = vpack.c.b16 %v1351, %v1350
        %v1601 = vpack.c.b16 %v1353, %v1352
        %v1602 = vpack.c.b16 %v1355, %v1354
        %v1603 = vpack.c.b16 %v1357, %v1356
        %v1604 = vpack.c.b16 %v1359, %v1358
        %v1605 = vpack.c.b16 %v1361, %v1360
        %v1606 = vpack.c.b16 %v1363, %v1362
        %v1607 = vpack.c.b16 %v1365, %v1364
        %v1608 = vpack.c.b16 %v1367, %v1366
        %v1609 = vpack.c.b16 %v1369, %v1368
        %v1610 = vpack.c.b16 %v1371, %v1370
        %v1611 = vpack.c.b16 %v1373, %v1372
        %v1612 = vpack.c.b16 %v1375, %v1374
        %v1613 = vpack.c.b16 %v1377, %v1376
        %v1614 = vpack.c.b16 %v1379, %v1378
        %v1615 = vpack.c.b16 %v1381, %v1380
        %v1616 = vpack.c.b16 %v1383, %v1382
        %v1617 = vpack.c.b16 %v1385, %v1384
        %v1618 = vpack.c.b16 %v1387, %v1386
        %v1619 = vpack.c.b16 %v1389, %v1388
        %v1620 = vpack.c.b16 %v1391, %v1390
        %v1621 = vpack.c.b16 %v1393, %v1392
        %v1622 = vpack.c.b16 %v1395, %v1394
        %v1623 = vpack.c.b16 %v1397, %v1396
        %v1624 = vpack.c.b16 %v1399, %v1398
        %v1625 = vpack.c.b16 %v1401, %v1400
        %v1626 = vpack.c.b16 %v1403, %v1402
        %v1627 = vpack.c.b16 %v1405, %v1404
        %v1628 = vpack.c.b16 %v1407, %v1406
        %v1629 = vpack.c.b16 %v1409, %v1408
        %v1630 = vpack.c.b16 %v1411, %v1410
        %v1631 = vpack.c.b16 %v1413, %v1412
        %v1632 = vpack.c.b16 %v1415, %v1414
        %v1633 = vpack.c.b16 %v1417, %v1416
        %v1634 = vpack.c.b16 %v1419, %v1418
        %v1635 = vpack.c.b16 %v1421, %v1420
        %v1636 = vpack.c.b16 %v1423, %v1422
        %v1637 = vpack.c.b16 %v1425, %v1424
        %v1638 = vpack.c.b16 %v1427, %v1426
        %v1639 = vpack.c.b16 %v1429, %v1428
        %v1640 = vpack.c.b16 %v1431, %v1430
        %v1641 = vpack.c.b16 %v1433, %v1432
        %v1642 = vpack.c.b16 %v1435, %v1434
        %v1643 = vpack.c.b16 %v1437, %v1436
        %v1644 = vpack.c.b16 %v1439, %v1438
        %v1645 = vpack.c.b16 %v1441, %v1440
        %v1646 = vpack.c.b16 %v1443, %v1442
        %v1647 = vpack.c.b16 %v1445, %v1444
        %v1648 = vpack.c.b16 %v1447, %v1446
        %v1649 = vpack.c.b16 %v1449, %v1448
        %v1650 = vpack.c.b16 %v1451, %v1450
        %v1651 = vpack.c.b16 %v1453, %v1452
        %v1652 = vpack.c.b16 %v1455, %v1454
        %v1653 = vpack.c.b16 %v1457, %v1456
        %vm1850 = vcmask 523264
        %v1851 = vsel %vm1850, %v649, 0
        %1853 = vmatpush.bf16.msra.mxu0 %v1465
        %1854 = vmatpush.bf16.msra.mxu0 %v1464
        %1855 = vmatpush.bf16.msra.mxu0 %v1463
        %1856 = vmatpush.bf16.msra.mxu0 %v1462
        %1857 = vmatpush.bf16.msra.mxu0 %v1461
        %1858 = vmatpush.bf16.msra.mxu0 %v1460
        %1859 = vmatpush.bf16.msra.mxu0 %v1459
        %1860 = vmatpush.bf16.msra.mxu0 %v1458
        %1861 = vmatmul.bf16.gmra.mxu0 %v619
        %v1862 = vpop.f32.mrf.mxu0
        %v1863 = vadd.f32 %v616, %v1862
        %v1864 = vpop.f32.mrf.mxu0
        %1865 = vdwg.mxu0
        %1866 = vmatpush.bf16.msra.mxu0 %v1473
        %1867 = vmatpush.bf16.msra.mxu0 %v1472
        %1868 = vmatpush.bf16.msra.mxu0 %v1471
        %1869 = vmatpush.bf16.msra.mxu0 %v1470
        %1870 = vmatpush.bf16.msra.mxu0 %v1469
        %1871 = vmatpush.bf16.msra.mxu0 %v1468
        %1872 = vmatpush.bf16.msra.mxu0 %v1467
        %1873 = vmatpush.bf16.msra.mxu0 %v1466
        %1874 = vmatmul.bf16.gmra.mxu0 %v620
        %v1875 = vpop.f32.mrf.mxu0
        %v1876 = vadd.f32 %v1863, %v1875
        %v1877 = vpop.f32.mrf.mxu0
        %1878 = vdwg.mxu0
        %1879 = vmatpush.bf16.msra.mxu0 %v1481
        %1880 = vmatpush.bf16.msra.mxu0 %v1480
        %1881 = vmatpush.bf16.msra.mxu0 %v1479
        %1882 = vmatpush.bf16.msra.mxu0 %v1478
        %1883 = vmatpush.bf16.msra.mxu0 %v1477
        %1884 = vmatpush.bf16.msra.mxu0 %v1476
        %1885 = vmatpush.bf16.msra.mxu0 %v1475
        %1886 = vmatpush.bf16.msra.mxu0 %v1474
        %1887 = vmatmul.bf16.gmra.mxu0 %v621
        %v1888 = vpop.f32.mrf.mxu0
        %v1889 = vadd.f32 %v1876, %v1888
        %v1890 = vpop.f32.mrf.mxu0
        %1891 = vdwg.mxu0
        %1892 = vmatpush.bf16.msra.mxu0 %v1489
        %1893 = vmatpush.bf16.msra.mxu0 %v1488
        %1894 = vmatpush.bf16.msra.mxu0 %v1487
        %1895 = vmatpush.bf16.msra.mxu0 %v1486
        %1896 = vmatpush.bf16.msra.mxu0 %v1485
        %1897 = vmatpush.bf16.msra.mxu0 %v1484
        %1898 = vmatpush.bf16.msra.mxu0 %v1483
        %1899 = vmatpush.bf16.msra.mxu0 %v1482
        %1900 = vmatmul.bf16.gmra.mxu0 %v622
        %v1901 = vpop.f32.mrf.mxu0
        %v1902 = vadd.f32 %v1889, %v1901
        %v1903 = vpop.f32.mrf.mxu0
        %1904 = vdwg.mxu0
        %1905 = vmatpush.bf16.msra.mxu0 %v1497
        %1906 = vmatpush.bf16.msra.mxu0 %v1496
        %1907 = vmatpush.bf16.msra.mxu0 %v1495
        %1908 = vmatpush.bf16.msra.mxu0 %v1494
        %1909 = vmatpush.bf16.msra.mxu0 %v1493
        %1910 = vmatpush.bf16.msra.mxu0 %v1492
        %1911 = vmatpush.bf16.msra.mxu0 %v1491
        %1912 = vmatpush.bf16.msra.mxu0 %v1490
        %1913 = vmatmul.bf16.gmra.mxu0 %v623
        %v1914 = vpop.f32.mrf.mxu0
        %v1915 = vadd.f32 %v1902, %v1914
        %v1916 = vpop.f32.mrf.mxu0
        %1917 = vdwg.mxu0
        %1918 = vmatpush.bf16.msra.mxu0 %v1505
        %1919 = vmatpush.bf16.msra.mxu0 %v1504
        %1920 = vmatpush.bf16.msra.mxu0 %v1503
        %1921 = vmatpush.bf16.msra.mxu0 %v1502
        %1922 = vmatpush.bf16.msra.mxu0 %v1501
        %1923 = vmatpush.bf16.msra.mxu0 %v1500
        %1924 = vmatpush.bf16.msra.mxu0 %v1499
        %1925 = vmatpush.bf16.msra.mxu0 %v1498
        %1926 = vmatmul.bf16.gmra.mxu0 %v624
        %v1927 = vpop.f32.mrf.mxu0
        %v1928 = vadd.f32 %v1915, %v1927
        %v1929 = vpop.f32.mrf.mxu0
        %1930 = vdwg.mxu0
        %1931 = vmatpush.bf16.msra.mxu0 %v1513
        %1932 = vmatpush.bf16.msra.mxu0 %v1512
        %1933 = vmatpush.bf16.msra.mxu0 %v1511
        %1934 = vmatpush.bf16.msra.mxu0 %v1510
        %1935 = vmatpush.bf16.msra.mxu0 %v1509
        %1936 = vmatpush.bf16.msra.mxu0 %v1508
        %1937 = vmatpush.bf16.msra.mxu0 %v1507
        %1938 = vmatpush.bf16.msra.mxu0 %v1506
        %1939 = vmatmul.bf16.gmra.mxu0 %v625
        %v1940 = vpop.f32.mrf.mxu0
        %v1941 = vadd.f32 %v1928, %v1940
        %v1942 = vpop.f32.mrf.mxu0
        %1943 = vdwg.mxu0
        %1944 = vmatpush.bf16.msra.mxu0 %v1521
        %1945 = vmatpush.bf16.msra.mxu0 %v1520
        %1946 = vmatpush.bf16.msra.mxu0 %v1519
        %1947 = vmatpush.bf16.msra.mxu0 %v1518
        %1948 = vmatpush.bf16.msra.mxu0 %v1517
        %1949 = vmatpush.bf16.msra.mxu0 %v1516
        %1950 = vmatpush.bf16.msra.mxu0 %v1515
        %1951 = vmatpush.bf16.msra.mxu0 %v1514
        %1952 = vmatmul.bf16.gmra.mxu0 %v626
        %v1953 = vpop.f32.mrf.mxu0
        %v1954 = vadd.f32 %v1941, %v1953
        %v1955 = vpop.f32.mrf.mxu0
        %1956 = vdwg.mxu0
        %1957 = vmatpush.bf16.msra.mxu0 %v1529
        %1958 = vmatpush.bf16.msra.mxu0 %v1528
        %1959 = vmatpush.bf16.msra.mxu0 %v1527
        %1960 = vmatpush.bf16.msra.mxu0 %v1526
        %1961 = vmatpush.bf16.msra.mxu0 %v1525
        %1962 = vmatpush.bf16.msra.mxu0 %v1524
        %1963 = vmatpush.bf16.msra.mxu0 %v1523
        %1964 = vmatpush.bf16.msra.mxu0 %v1522
        %1965 = vmatmul.bf16.gmra.mxu0 %v629
        %v1966 = vpop.f32.mrf.mxu0
        %v1967 = vadd.f32 %v1954, %v1966
        %v1968 = vpop.f32.mrf.mxu0
        %1969 = vdwg.mxu0
        %1970 = vmatpush.bf16.msra.mxu0 %v1537
        %1971 = vmatpush.bf16.msra.mxu0 %v1536
        %1972 = vmatpush.bf16.msra.mxu0 %v1535
        %1973 = vmatpush.bf16.msra.mxu0 %v1534
        %1974 = vmatpush.bf16.msra.mxu0 %v1533
        %1975 = vmatpush.bf16.msra.mxu0 %v1532
        %1976 = vmatpush.bf16.msra.mxu0 %v1531
        %1977 = vmatpush.bf16.msra.mxu0 %v1530
        %1978 = vmatmul.bf16.gmra.mxu0 %v630
        %v1979 = vpop.f32.mrf.mxu0
        %v1980 = vadd.f32 %v1967, %v1979
        %v1981 = vpop.f32.mrf.mxu0
        %1982 = vdwg.mxu0
        %1983 = vmatpush.bf16.msra.mxu0 %v1545
        %1984 = vmatpush.bf16.msra.mxu0 %v1544
        %1985 = vmatpush.bf16.msra.mxu0 %v1543
        %1986 = vmatpush.bf16.msra.mxu0 %v1542
        %1987 = vmatpush.bf16.msra.mxu0 %v1541
        %1988 = vmatpush.bf16.msra.mxu0 %v1540
        %1989 = vmatpush.bf16.msra.mxu0 %v1539
        %1990 = vmatpush.bf16.msra.mxu0 %v1538
        %1991 = vmatmul.bf16.gmra.mxu0 %v631
        %v1992 = vpop.f32.mrf.mxu0
        %v1993 = vadd.f32 %v1980, %v1992
        %v1994 = vpop.f32.mrf.mxu0
        %1995 = vdwg.mxu0
        %1996 = vmatpush.bf16.msra.mxu0 %v1553
        %1997 = vmatpush.bf16.msra.mxu0 %v1552
        %1998 = vmatpush.bf16.msra.mxu0 %v1551
        %1999 = vmatpush.bf16.msra.mxu0 %v1550
        %2000 = vmatpush.bf16.msra.mxu0 %v1549
        %2001 = vmatpush.bf16.msra.mxu0 %v1548
        %2002 = vmatpush.bf16.msra.mxu0 %v1547
        %2003 = vmatpush.bf16.msra.mxu0 %v1546
        %2004 = vmatmul.bf16.gmra.mxu0 %v632
        %v2005 = vpop.f32.mrf.mxu0
        %v2006 = vadd.f32 %v1993, %v2005
        %v2007 = vpop.f32.mrf.mxu0
        %2008 = vdwg.mxu0
        %2009 = vmatpush.bf16.msra.mxu0 %v1561
        %2010 = vmatpush.bf16.msra.mxu0 %v1560
        %2011 = vmatpush.bf16.msra.mxu0 %v1559
        %2012 = vmatpush.bf16.msra.mxu0 %v1558
        %2013 = vmatpush.bf16.msra.mxu0 %v1557
        %2014 = vmatpush.bf16.msra.mxu0 %v1556
        %2015 = vmatpush.bf16.msra.mxu0 %v1555
        %2016 = vmatpush.bf16.msra.mxu0 %v1554
        %2017 = vmatmul.bf16.gmra.mxu0 %v633
        %v2018 = vpop.f32.mrf.mxu0
        %v2019 = vadd.f32 %v2006, %v2018
        %v2020 = vpop.f32.mrf.mxu0
        %2021 = vdwg.mxu0
        %2022 = vmatpush.bf16.msra.mxu0 %v1569
        %2023 = vmatpush.bf16.msra.mxu0 %v1568
        %2024 = vmatpush.bf16.msra.mxu0 %v1567
        %2025 = vmatpush.bf16.msra.mxu0 %v1566
        %2026 = vmatpush.bf16.msra.mxu0 %v1565
        %2027 = vmatpush.bf16.msra.mxu0 %v1564
        %2028 = vmatpush.bf16.msra.mxu0 %v1563
        %2029 = vmatpush.bf16.msra.mxu0 %v1562
        %2030 = vmatmul.bf16.gmra.mxu0 %v634
        %v2031 = vpop.f32.mrf.mxu0
        %v2032 = vadd.f32 %v2019, %v2031
        %v2033 = vpop.f32.mrf.mxu0
        %2034 = vdwg.mxu0
        %2035 = vmatpush.bf16.msra.mxu0 %v1577
        %2036 = vmatpush.bf16.msra.mxu0 %v1576
        %2037 = vmatpush.bf16.msra.mxu0 %v1575
        %2038 = vmatpush.bf16.msra.mxu0 %v1574
        %2039 = vmatpush.bf16.msra.mxu0 %v1573
        %2040 = vmatpush.bf16.msra.mxu0 %v1572
        %2041 = vmatpush.bf16.msra.mxu0 %v1571
        %2042 = vmatpush.bf16.msra.mxu0 %v1570
        %2043 = vmatmul.bf16.gmra.mxu0 %v635
        %v2044 = vpop.f32.mrf.mxu0
        %v2045 = vadd.f32 %v2032, %v2044
        %v2046 = vpop.f32.mrf.mxu0
        %2047 = vdwg.mxu0
        %2048 = vmatpush.bf16.msra.mxu0 %v1585
        %2049 = vmatpush.bf16.msra.mxu0 %v1584
        %2050 = vmatpush.bf16.msra.mxu0 %v1583
        %2051 = vmatpush.bf16.msra.mxu0 %v1582
        %2052 = vmatpush.bf16.msra.mxu0 %v1581
        %2053 = vmatpush.bf16.msra.mxu0 %v1580
        %2054 = vmatpush.bf16.msra.mxu0 %v1579
        %2055 = vmatpush.bf16.msra.mxu0 %v1578
        %2056 = vmatmul.bf16.gmra.mxu0 %v636
        %v2057 = vpop.f32.mrf.mxu0
        %v2058 = vadd.f32 %v2045, %v2057
        %v2059 = vpop.f32.mrf.mxu0
        %2060 = vdwg.mxu0
        %2061 = vmatpush.bf16.msra.mxu0 %v1593
        %2062 = vmatpush.bf16.msra.mxu0 %v1592
        %2063 = vmatpush.bf16.msra.mxu0 %v1591
        %2064 = vmatpush.bf16.msra.mxu0 %v1590
        %2065 = vmatpush.bf16.msra.mxu0 %v1589
        %2066 = vmatpush.bf16.msra.mxu0 %v1588
        %2067 = vmatpush.bf16.msra.mxu0 %v1587
        %2068 = vmatpush.bf16.msra.mxu0 %v1586
        %2069 = vmatmul.bf16.gmra.mxu0 %v639
        %v2070 = vpop.f32.mrf.mxu0
        %v2071 = vadd.f32 %v2058, %v2070
        %v2072 = vpop.f32.mrf.mxu0
        %2073 = vdwg.mxu0
        %2074 = vmatpush.bf16.msra.mxu0 %v1601
        %2075 = vmatpush.bf16.msra.mxu0 %v1600
        %2076 = vmatpush.bf16.msra.mxu0 %v1599
        %2077 = vmatpush.bf16.msra.mxu0 %v1598
        %2078 = vmatpush.bf16.msra.mxu0 %v1597
        %2079 = vmatpush.bf16.msra.mxu0 %v1596
        %2080 = vmatpush.bf16.msra.mxu0 %v1595
        %2081 = vmatpush.bf16.msra.mxu0 %v1594
        %2082 = vmatmul.bf16.gmra.mxu0 %v640
        %v2083 = vpop.f32.mrf.mxu0
        %v2084 = vadd.f32 %v2071, %v2083
        %v2085 = vpop.f32.mrf.mxu0
        %2086 = vdwg.mxu0
        %2087 = vmatpush.bf16.msra.mxu0 %v1609
        %2088 = vmatpush.bf16.msra.mxu0 %v1608
        %2089 = vmatpush.bf16.msra.mxu0 %v1607
        %2090 = vmatpush.bf16.msra.mxu0 %v1606
        %2091 = vmatpush.bf16.msra.mxu0 %v1605
        %2092 = vmatpush.bf16.msra.mxu0 %v1604
        %2093 = vmatpush.bf16.msra.mxu0 %v1603
        %2094 = vmatpush.bf16.msra.mxu0 %v1602
        %2095 = vmatmul.bf16.gmra.mxu0 %v641
        %v2096 = vpop.f32.mrf.mxu0
        %v2097 = vadd.f32 %v2084, %v2096
        %v2098 = vpop.f32.mrf.mxu0
        %2099 = vdwg.mxu0
        %2100 = vmatpush.bf16.msra.mxu0 %v1617
        %2101 = vmatpush.bf16.msra.mxu0 %v1616
        %2102 = vmatpush.bf16.msra.mxu0 %v1615
        %2103 = vmatpush.bf16.msra.mxu0 %v1614
        %2104 = vmatpush.bf16.msra.mxu0 %v1613
        %2105 = vmatpush.bf16.msra.mxu0 %v1612
        %2106 = vmatpush.bf16.msra.mxu0 %v1611
        %2107 = vmatpush.bf16.msra.mxu0 %v1610
        %2108 = vmatmul.bf16.gmra.mxu0 %v642
        %v2109 = vpop.f32.mrf.mxu0
        %v2110 = vadd.f32 %v2097, %v2109
        %v2111 = vpop.f32.mrf.mxu0
        %2112 = vdwg.mxu0
        %2113 = vmatpush.bf16.msra.mxu0 %v1625
        %2114 = vmatpush.bf16.msra.mxu0 %v1624
        %2115 = vmatpush.bf16.msra.mxu0 %v1623
        %2116 = vmatpush.bf16.msra.mxu0 %v1622
        %2117 = vmatpush.bf16.msra.mxu0 %v1621
        %2118 = vmatpush.bf16.msra.mxu0 %v1620
        %2119 = vmatpush.bf16.msra.mxu0 %v1619
        %2120 = vmatpush.bf16.msra.mxu0 %v1618
        %2121 = vmatmul.bf16.gmra.mxu0 %v643
        %v2122 = vpop.f32.mrf.mxu0
        %v2123 = vadd.f32 %v2110, %v2122
        %v2124 = vpop.f32.mrf.mxu0
        %2125 = vdwg.mxu0
        %2126 = vmatpush.bf16.msra.mxu0 %v1633
        %2127 = vmatpush.bf16.msra.mxu0 %v1632
        %2128 = vmatpush.bf16.msra.mxu0 %v1631
        %2129 = vmatpush.bf16.msra.mxu0 %v1630
        %2130 = vmatpush.bf16.msra.mxu0 %v1629
        %2131 = vmatpush.bf16.msra.mxu0 %v1628
        %2132 = vmatpush.bf16.msra.mxu0 %v1627
        %2133 = vmatpush.bf16.msra.mxu0 %v1626
        %2134 = vmatmul.bf16.gmra.mxu0 %v644
        %v2135 = vpop.f32.mrf.mxu0
        %v2136 = vadd.f32 %v2123, %v2135
        %v2137 = vpop.f32.mrf.mxu0
        %2138 = vdwg.mxu0
        %2139 = vmatpush.bf16.msra.mxu0 %v1641
        %2140 = vmatpush.bf16.msra.mxu0 %v1640
        %2141 = vmatpush.bf16.msra.mxu0 %v1639
        %2142 = vmatpush.bf16.msra.mxu0 %v1638
        %2143 = vmatpush.bf16.msra.mxu0 %v1637
        %2144 = vmatpush.bf16.msra.mxu0 %v1636
        %2145 = vmatpush.bf16.msra.mxu0 %v1635
        %2146 = vmatpush.bf16.msra.mxu0 %v1634
        %2147 = vmatmul.bf16.gmra.mxu0 %v645
        %v2148 = vpop.f32.mrf.mxu0
        %v2149 = vadd.f32 %v2136, %v2148
        %v2150 = vpop.f32.mrf.mxu0
        %2151 = vdwg.mxu0
        %2152 = vmatpush.bf16.msra.mxu0 %v1649
        %2153 = vmatpush.bf16.msra.mxu0 %v1648
        %2154 = vmatpush.bf16.msra.mxu0 %v1647
        %2155 = vmatpush.bf16.msra.mxu0 %v1646
        %2156 = vmatpush.bf16.msra.mxu0 %v1645
        %2157 = vmatpush.bf16.msra.mxu0 %v1644
        %2158 = vmatpush.bf16.msra.mxu0 %v1643
        %2159 = vmatpush.bf16.msra.mxu0 %v1642
        %2160 = vmatmul.bf16.gmra.mxu0 %v646
        %v2161 = vpop.f32.mrf.mxu0
        %v2162 = vadd.f32 %v2149, %v2161
        %v2163 = vpop.f32.mrf.mxu0
        %2164 = vdwg.mxu0
        %2165 = vmatpush.bf16.msra.mxu0 0
        %2166 = vmatpush.bf16.msra.mxu0 0
        %2167 = vmatpush.bf16.msra.mxu0 0
        %2168 = vmatpush.bf16.msra.mxu0 0
        %2169 = vmatpush.bf16.msra.mxu0 %v1653
        %2170 = vmatpush.bf16.msra.mxu0 %v1652
        %2171 = vmatpush.bf16.msra.mxu0 %v1651
        %2172 = vmatpush.bf16.msra.mxu0 %v1650
        %2173 = vmatmul.bf16.gmra.mxu0 %v1851
        %v2174 = vpop.f32.mrf.mxu0
        %v2175 = vadd.f32 %v2162, %v2174
        %v2176 = vpop.f32.mrf.mxu0
        %2177 = vdwg.mxu0
        %v2178 = vmax.f32 %v2175, 0.0
        %v2179 = vpack.c.bf16 %v2178, %v2178
        %v2180 = vld [vmem:[%s3] sm:$0xf]
        %v2181 = vld [vmem:[%s3 + $0x4] sm:$0xf]
        %v2182 = vld [vmem:[%s3 + $0x8] sm:$0xf]
        %v2183 = vld [vmem:[%s3 + $0xc] sm:$0xf]
        %v2184 = vld [vmem:[%s3 + $0x10] sm:$0xf]
        %v2185 = vld [vmem:[%s3 + $0x14] sm:$0xf]
        %v2186 = vld [vmem:[%s3 + $0x18] sm:$0xf]
        %v2187 = vld [vmem:[%s3 + $0x1c] sm:$0xf]
        %v2188 = vld [vmem:[%s3 + $0x20] sm:$0xf]
        %v2189 = vld [vmem:[%s3 + $0x24] sm:$0xf]
        %v2190 = vld [vmem:[%s3 + $0x28] sm:$0xf]
        %v2191 = vld [vmem:[%s3 + $0x2c] sm:$0xf]
        %v2192 = vld [vmem:[%s3 + $0x30] sm:$0xf]
        %v2193 = vld [vmem:[%s3 + $0x34] sm:$0xf]
        %v2194 = vld [vmem:[%s3 + $0x38] sm:$0xf]
        %v2195 = vld [vmem:[%s3 + $0x3c] sm:$0xf]
        %v2196 = vld [vmem:[%s4] sm:$0x1]
        %v2213 = vunpack.c.l.b16 %v2180
        %v2214 = vunpack.c.l.b16 %v2181
        %v2215 = vunpack.c.l.b16 %v2182
        %v2216 = vunpack.c.l.b16 %v2183
        %v2217 = vunpack.c.l.b16 %v2184
        %v2218 = vunpack.c.l.b16 %v2185
        %v2219 = vunpack.c.l.b16 %v2186
        %v2220 = vunpack.c.l.b16 %v2187
        %v2221 = vunpack.c.l.b16 %v2188
        %v2222 = vunpack.c.l.b16 %v2189
        %v2223 = vunpack.c.l.b16 %v2190
        %v2224 = vunpack.c.l.b16 %v2191
        %v2225 = vunpack.c.l.b16 %v2192
        %v2226 = vunpack.c.l.b16 %v2193
        %v2227 = vunpack.c.l.b16 %v2194
        %v2228 = vunpack.c.l.b16 %v2195
        %v2229 = vpack.c.b16 %v2214, %v2213
        %v2230 = vpack.c.b16 %v2216, %v2215
        %v2231 = vpack.c.b16 %v2218, %v2217
        %v2232 = vpack.c.b16 %v2220, %v2219
        %v2233 = vpack.c.b16 %v2222, %v2221
        %v2234 = vpack.c.b16 %v2224, %v2223
        %v2235 = vpack.c.b16 %v2226, %v2225
        %v2236 = vpack.c.b16 %v2228, %v2227
        %2245 = vmatpush.bf16.msra.mxu0 %v2236
        %2246 = vmatpush.bf16.msra.mxu0 %v2235
        %2247 = vmatpush.bf16.msra.mxu0 %v2234
        %2248 = vmatpush.bf16.msra.mxu0 %v2233
        %2249 = vmatpush.bf16.msra.mxu0 %v2232
        %2250 = vmatpush.bf16.msra.mxu0 %v2231
        %2251 = vmatpush.bf16.msra.mxu0 %v2230
        %2252 = vmatpush.bf16.msra.mxu0 %v2229
        %2253 = vmatmul.bf16.gmra.mxu0 %v2179
        %v2254 = vpop.f32.mrf.mxu0
        %v2255 = vadd.f32 %v2196, %v2254
        %v2256 = vpop.f32.mrf.mxu0
        %2257 = vdwg.mxu0
        %2258 = vst [vmem:[%s214] sm:$0x1] %v2255
        %s2259 = sand.u32 %s137, 1
        %s2260 = scalar_lea.sflag [#allocation3], %s2259
        %s2261 = sand.u32 %s137, 1
        %s2262 = scalar_lea.vmem [#allocation2], %s2261
        // Predicated region
        $region41: #{cnn_forward.5} parent=39 // pred_check
          %p2263 = pneg %p147
        $region42: #{cnn_forward.5} parent=39 // pred_check_branch
          %2265 = sbr.rel (%p2263) target = $region44
        $region43: #{cnn_forward.5} parent=39 // pred_region
          %2267 = vsyncadd %s2260, 0
          %s2268 = scalar_lea.hbm %s5, %s19
          %s2270 = sshll.u32 %s2262, 4
          %s2271 = int_to_ptr.vmem [resolvable:$true] %s2270
          %s2272 = sshll.u32 %s2268, 4
          %s2273 = int_to_ptr.hbm [resolvable:$true] %s2272
          %2275 = dma.vmem_to_hbm [thread:$0]  %s2271, 16, %s2273, %s2260
        $region44: #{cnn_forward.5} parent=39 // pred_fallthru
          _
      $region40: #{cnn_forward.5} parent=5 // pred_fallthru
        _
      %p2276 = scmp.le.s32.totalorder 2, %s14
      // Predicated region
      $region45: #{cnn_forward.5} parent=5 // pred_check
        %p2277 = pneg %p2276
      $region46: #{cnn_forward.5} parent=5 // pred_check_branch
        %2279 = sbr.rel (%p2277) target = $region48
      $region47: #{cnn_forward.5} parent=5 // pred_region
        %s2280 = ssub.s32 %s14, 2
        // Predicated region
        $region49: #{cnn_forward.5} parent=47 // pred_check
          %p2281 = pneg %p153
        $region50: #{cnn_forward.5} parent=47 // pred_check_branch
          %2283 = sbr.rel (%p2281) target = $region52
        $region51: #{cnn_forward.5} parent=47 // pred_region
          %s2284 = sand.u32 %s138, 1
          %s2285 = scalar_lea.sflag [#allocation3], %s2284
          %s2286 = sand.u32 %s138, 1
          %s2287 = scalar_lea.vmem [#allocation2], %s2286
          %2289 = dma.done %s2285, 16
        $region52: #{cnn_forward.5} parent=47 // pred_fallthru
          _
      $region48: #{cnn_forward.5} parent=5 // pred_fallthru
        _
    $region6: #{cnn_forward.5} parent=1 // loop_footer
      %s18 = sadd.s32 1, %s14
    $region7: #{cnn_forward.5} parent=1 // loop_footer_branch
      %13 = sbr.rel target = $region3
    $region8: #{cnn_forward.5} parent=1 // loop_exit
      _
    %2290 = vsyncpa [#allocation3], 1
    %s2291 = scalar_lea.sflag [#allocation3], 1
    %2292 = vsyncpa %s2291, 1

</llo_original>
